<compile_context>
chip_gen: v6e
topology: v6e:2x2x1
jax: 0.10.0
libtpu: 0.0.40
codegen_flags: <defaults>
</compile_context>

<pallas_src>
import jax
import jax.numpy as jnp
from jax.experimental import pallas as pl
from jax.experimental.pallas import tpu as pltpu

H1 = 32              # fc1 out features
H2 = 8               # fc2 out features
_LANES = 128
_CHUNK_ROWS = 32     # (32,128) register-resident sub-chunk inside the kernel
_MAX_BLOCK_ROWS = 512  # up to (512,128) f32 per grid step = 65536 samples, 256 KiB


def _self_relu(x):
    # torch.where(x > 0, x, -0.01): constant -0.01 below zero (matches the PyTorch module).
    return jnp.where(x > 0, x, jnp.float32(-0.01))


def mlp_kernel(w1_ref, b1_ref, w2_ref, b2_ref, w3_ref, b3_ref, x_ref, o_ref):
    # x_ref/o_ref: (block_rows, 128) f32, batch on sublanes+lanes.
    # Weights/biases are SMEM-resident scalars.
    n_chunks = x_ref.shape[0] // _CHUNK_ROWS

    @pl.loop(0, n_chunks)
    def _(c):
        r0 = pl.multiple_of(c * _CHUNK_ROWS, _CHUNK_ROWS)
        x = x_ref[pl.ds(r0, _CHUNK_ROWS), :]

        # Layer 1 (K=1 -> pure VPU broadcast) fused with layer 2 (32 -> 8):
        # only 8 accumulator planes + x + h1f live at (32,128) granularity
        # (~45 vregs), comfortably under the 64-vreg file -> no spills.
        acc = [jnp.full_like(x, b2_ref[g]) for g in range(H2)]
        for f in range(H1):
            h1f = _self_relu(x * w1_ref[f] + b1_ref[f])
            for g in range(H2):
                acc[g] = acc[g] + w2_ref[g, f] * h1f

        # Layer 3 (8 -> 1) as a VPU reduction over the 8 planes (no N=1 MXU matmul).
        out = jnp.full_like(x, b3_ref[0])
        for g in range(H2):
            out = out + w3_ref[g] * _self_relu(acc[g])

        o_ref[pl.ds(r0, _CHUNK_ROWS), :] = out      # lane-dense unmasked store


def prepare_params(params):
    """One-time prep: flatten PyTorch-layout weights so no per-call transposes/gathers."""
    return {
        "w1": params["w1"].reshape(H1),   # (32, 1) -> (32,)
        "b1": params["b1"],               # (32,)
        "w2": params["w2"],               # (8, 32)   w2[g, f]
        "b2": params["b2"],               # (8,)
        "w3": params["w3"].reshape(H2),   # (1, 8)  -> (8,)
        "b3": params["b3"],               # (1,)
    }


def simple_nn_forward(x, prep):
    """x: (B, 1) float32. prep: output of prepare_params."""
    B = x.shape[0]

    # Rows of the lane-dense (rows, 128) batch slab, rounded to whole in-kernel chunks.
    rows = pl.cdiv(B, _LANES)
    rows = pl.cdiv(rows, _CHUNK_ROWS) * _CHUNK_ROWS

    if rows <= _CHUNK_ROWS:
        # Tiny batch: single small block (megacore split would not pay off anyway).
        block_rows = rows
    else:
        # Ensure >= 2 grid steps so ("parallel",) actually uses both v7x TensorCores,
        # while capping the per-step block at (_MAX_BLOCK_ROWS, 128).
        block_rows = min(_MAX_BLOCK_ROWS,
                         pl.cdiv(pl.cdiv(rows, 2), _CHUNK_ROWS) * _CHUNK_ROWS)
    n_blocks = pl.cdiv(rows, block_rows)
    rows_total = n_blocks * block_rows
    Bp = rows_total * _LANES

    xf = x.reshape(B)
    if Bp != B:
        xf = jnp.pad(xf, (0, Bp - B))
    x2 = xf.reshape(rows_total, _LANES)               # lane-dense batch layout

    def resident_smem(shape):
        # Full-array block, constant index_map -> loaded once, resident across grid steps.
        return pl.BlockSpec(shape, lambda i: (0,) * len(shape),
                            memory_space=pltpu.MemorySpace.SMEM)

    io_spec = pl.BlockSpec((block_rows, _LANES), lambda i: (i, 0))

    flops = 2 * Bp * (H1 + H1 * H2 + H2)
    bytes_accessed = 4 * Bp * 2 + 4 * (2 * H1 + H1 * H2 + 2 * H2 + 1)

    out2 = pl.pallas_call(
        mlp_kernel,
        out_shape=jax.ShapeDtypeStruct((rows_total, _LANES), jnp.float32),
        grid=(n_blocks,),
        in_specs=[
            resident_smem((H1,)),      # w1
            resident_smem((H1,)),      # b1
            resident_smem((H2, H1)),   # w2
            resident_smem((H2,)),      # b2
            resident_smem((H2,)),      # w3
            resident_smem((1,)),       # b3
            io_spec,                   # x
        ],
        out_specs=io_spec,
        compiler_params=pltpu.CompilerParams(
            dimension_semantics=("parallel",),        # splits grid over v7x's 2 TCs
            vmem_limit_bytes=16 * 1024 * 1024,        # ~1 MiB actually used
        ),
        cost_estimate=pl.CostEstimate(flops=flops, transcendentals=0,
                                      bytes_accessed=bytes_accessed),
    )(prep["w1"], prep["b1"], prep["w2"], prep["b2"], prep["w3"], prep["b3"], x2)

    return out2.reshape(Bp)[:B].reshape(B, 1)


def init_params(key):
    """Deterministic init mirroring nn.Linear (PyTorch (out,in) layout, +-1/sqrt(fan_in))."""
    ks = jax.random.split(key, 6)

    def lin(kw, kb, fan_in, fan_out):
        bound = 1.0 / jnp.sqrt(jnp.float32(fan_in))
        w = jax.random.uniform(kw, (fan_out, fan_in), jnp.float32, -bound, bound)
        b = jax.random.uniform(kb, (fan_out,), jnp.float32, -bound, bound)
        return w, b

    w1, b1 = lin(ks[0], ks[1], 1, H1)
    w2, b2 = lin(ks[2], ks[3], H1, H2)
    w3, b3 = lin(ks[4], ks[5], H2, 1)
    return {"w1": w1, "b1": b1, "w2": w2, "b2": b2, "w3": w3, "b3": b3}


def _ref_forward(x, params):
    h = _self_relu(x @ params["w1"].T + params["b1"])
    h = _self_relu(h @ params["w2"].T + params["b2"])
    return h @ params["w3"].T + params["b3"]


if __name__ == "__main__":
    key = jax.random.PRNGKey(0)
    kx, kp = jax.random.split(key)
    params = init_params(kp)
    prep = prepare_params(params)

    # Small batch (single block, single in-kernel chunk, padded internally).
    B = 8
    x = jax.random.normal(kx, (B, 1), jnp.float32)
    out = jax.block_until_ready(simple_nn_forward(x, prep))
    ref = _ref_forward(x, params)
    assert out.shape == (B, 1)
    assert jnp.allclose(out, ref, atol=1e-4, rtol=1e-4)

    # Larger non-multiple batch: exercises the multi-step grid (2 blocks on v7x's
    # two TensorCores), the in-kernel chunk loop, and the padding/tail path.
    B2 = 10000
    x2 = jax.random.normal(jax.random.PRNGKey(1), (B2, 1), jnp.float32)
    out2 = jax.block_until_ready(simple_nn_forward(x2, prep))
    ref2 = _ref_forward(x2, params)
    assert out2.shape == (B2, 1)
    assert jnp.allclose(out2, ref2, atol=1e-4, rtol=1e-4)

    print("KERNEL_OK")
</pallas_src>

<mosaic_0001>
module attributes {stable_mosaic.version = 11 : i64} {
  func.func @mlp_kernel(%arg0: i32, %arg1: memref<32xf32, #tpu.memory_space<smem>>, %arg2: memref<32xf32, #tpu.memory_space<smem>>, %arg3: memref<8x32xf32, #tpu.memory_space<smem>>, %arg4: memref<8xf32, #tpu.memory_space<smem>>, %arg5: memref<8xf32, #tpu.memory_space<smem>>, %arg6: memref<1xf32, #tpu.memory_space<smem>>, %arg7: memref<32x128xf32, #tpu.memory_space<vmem>>, %arg8: memref<32x128xf32, #tpu.memory_space<vmem>>) attributes {dimension_semantics = [#tpu.dimension_semantics<parallel>], iteration_bounds = array<i64: 1>, scalar_prefetch = 0 : i64, scratch_operands = 0 : i64, tpu.core_type = #tpu.core_type<tc>, window_params = [{transform_indices = @transform_0, window_bounds = array<i64: 32>}, {transform_indices = @transform_1, window_bounds = array<i64: 32>}, {transform_indices = @transform_2, window_bounds = array<i64: 8, 32>}, {transform_indices = @transform_3, window_bounds = array<i64: 8>}, {transform_indices = @transform_4, window_bounds = array<i64: 8>}, {transform_indices = @transform_5, window_bounds = array<i64: 1>}, {transform_indices = @transform_6, window_bounds = array<i64: 32, 128>}, {transform_indices = @transform_7, window_bounds = array<i64: 32, 128>}]} {
    %c0_i32 = arith.constant 0 : i32
    %c1_i32 = arith.constant 1 : i32
    %0 = arith.muli %c0_i32, %c1_i32 : i32
    %c0_i32_0 = arith.constant 0 : i32
    %1 = arith.addi %c0_i32_0, %0 : i32
    %c32_i32 = arith.constant 32 : i32
    %2 = arith.muli %1, %c32_i32 : i32
    %3 = tpu.assume_multiple %2, 32 : i32
    %4 = arith.index_cast %3 : i32 to index
    %c0 = arith.constant 0 : index
    %5 = vector.load %arg7[%4, %c0] : memref<32x128xf32, #tpu.memory_space<vmem>>, vector<32x128xf32>
    %c0_1 = arith.constant 0 : index
    %6 = memref.load %arg4[%c0_1] : memref<8xf32, #tpu.memory_space<smem>>
    %7 = vector.broadcast %6 : f32 to vector<32x128xf32>
    %c1 = arith.constant 1 : index
    %8 = memref.load %arg4[%c1] : memref<8xf32, #tpu.memory_space<smem>>
    %9 = vector.broadcast %8 : f32 to vector<32x128xf32>
    %c2 = arith.constant 2 : index
    %10 = memref.load %arg4[%c2] : memref<8xf32, #tpu.memory_space<smem>>
    %11 = vector.broadcast %10 : f32 to vector<32x128xf32>
    %c3 = arith.constant 3 : index
    %12 = memref.load %arg4[%c3] : memref<8xf32, #tpu.memory_space<smem>>
    %13 = vector.broadcast %12 : f32 to vector<32x128xf32>
    %c4 = arith.constant 4 : index
    %14 = memref.load %arg4[%c4] : memref<8xf32, #tpu.memory_space<smem>>
    %15 = vector.broadcast %14 : f32 to vector<32x128xf32>
    %c5 = arith.constant 5 : index
    %16 = memref.load %arg4[%c5] : memref<8xf32, #tpu.memory_space<smem>>
    %17 = vector.broadcast %16 : f32 to vector<32x128xf32>
    %c6 = arith.constant 6 : index
    %18 = memref.load %arg4[%c6] : memref<8xf32, #tpu.memory_space<smem>>
    %19 = vector.broadcast %18 : f32 to vector<32x128xf32>
    %c7 = arith.constant 7 : index
    %20 = memref.load %arg4[%c7] : memref<8xf32, #tpu.memory_space<smem>>
    %21 = vector.broadcast %20 : f32 to vector<32x128xf32>
    %c0_2 = arith.constant 0 : index
    %22 = memref.load %arg1[%c0_2] : memref<32xf32, #tpu.memory_space<smem>>
    %23 = vector.broadcast %22 : f32 to vector<32x128xf32>
    %24 = arith.mulf %5, %23 : vector<32x128xf32>
    %c0_3 = arith.constant 0 : index
    %25 = memref.load %arg2[%c0_3] : memref<32xf32, #tpu.memory_space<smem>>
    %26 = vector.broadcast %25 : f32 to vector<32x128xf32>
    %27 = arith.addf %24, %26 : vector<32x128xf32>
    %cst = arith.constant 0.000000e+00 : f32
    %28 = vector.broadcast %cst : f32 to vector<32x128xf32>
    %29 = arith.cmpf ogt, %27, %28 : vector<32x128xf32>
    %cst_4 = arith.constant -0.00999999977 : f32
    %30 = vector.broadcast %cst_4 : f32 to vector<32x128xf32>
    %31 = arith.select %29, %27, %30 : vector<32x128xi1>, vector<32x128xf32>
    %c0_5 = arith.constant 0 : index
    %c0_6 = arith.constant 0 : index
    %32 = memref.load %arg3[%c0_5, %c0_6] : memref<8x32xf32, #tpu.memory_space<smem>>
    %33 = vector.broadcast %32 : f32 to vector<32x128xf32>
    %34 = arith.mulf %33, %31 : vector<32x128xf32>
    %35 = arith.addf %7, %34 : vector<32x128xf32>
    %c1_7 = arith.constant 1 : index
    %c0_8 = arith.constant 0 : index
    %36 = memref.load %arg3[%c1_7, %c0_8] : memref<8x32xf32, #tpu.memory_space<smem>>
    %37 = vector.broadcast %36 : f32 to vector<32x128xf32>
    %38 = arith.mulf %37, %31 : vector<32x128xf32>
    %39 = arith.addf %9, %38 : vector<32x128xf32>
    %c2_9 = arith.constant 2 : index
    %c0_10 = arith.constant 0 : index
    %40 = memref.load %arg3[%c2_9, %c0_10] : memref<8x32xf32, #tpu.memory_space<smem>>
    %41 = vector.broadcast %40 : f32 to vector<32x128xf32>
    %42 = arith.mulf %41, %31 : vector<32x128xf32>
    %43 = arith.addf %11, %42 : vector<32x128xf32>
    %c3_11 = arith.constant 3 : index
    %c0_12 = arith.constant 0 : index
    %44 = memref.load %arg3[%c3_11, %c0_12] : memref<8x32xf32, #tpu.memory_space<smem>>
    %45 = vector.broadcast %44 : f32 to vector<32x128xf32>
    %46 = arith.mulf %45, %31 : vector<32x128xf32>
    %47 = arith.addf %13, %46 : vector<32x128xf32>
    %c4_13 = arith.constant 4 : index
    %c0_14 = arith.constant 0 : index
    %48 = memref.load %arg3[%c4_13, %c0_14] : memref<8x32xf32, #tpu.memory_space<smem>>
    %49 = vector.broadcast %48 : f32 to vector<32x128xf32>
    %50 = arith.mulf %49, %31 : vector<32x128xf32>
    %51 = arith.addf %15, %50 : vector<32x128xf32>
    %c5_15 = arith.constant 5 : index
    %c0_16 = arith.constant 0 : index
    %52 = memref.load %arg3[%c5_15, %c0_16] : memref<8x32xf32, #tpu.memory_space<smem>>
    %53 = vector.broadcast %52 : f32 to vector<32x128xf32>
    %54 = arith.mulf %53, %31 : vector<32x128xf32>
    %55 = arith.addf %17, %54 : vector<32x128xf32>
    %c6_17 = arith.constant 6 : index
    %c0_18 = arith.constant 0 : index
    %56 = memref.load %arg3[%c6_17, %c0_18] : memref<8x32xf32, #tpu.memory_space<smem>>
    %57 = vector.broadcast %56 : f32 to vector<32x128xf32>
    %58 = arith.mulf %57, %31 : vector<32x128xf32>
    %59 = arith.addf %19, %58 : vector<32x128xf32>
    %c7_19 = arith.constant 7 : index
    %c0_20 = arith.constant 0 : index
    %60 = memref.load %arg3[%c7_19, %c0_20] : memref<8x32xf32, #tpu.memory_space<smem>>
    %61 = vector.broadcast %60 : f32 to vector<32x128xf32>
    %62 = arith.mulf %61, %31 : vector<32x128xf32>
    %63 = arith.addf %21, %62 : vector<32x128xf32>
    %c1_21 = arith.constant 1 : index
    %64 = memref.load %arg1[%c1_21] : memref<32xf32, #tpu.memory_space<smem>>
    %65 = vector.broadcast %64 : f32 to vector<32x128xf32>
    %66 = arith.mulf %5, %65 : vector<32x128xf32>
    %c1_22 = arith.constant 1 : index
    %67 = memref.load %arg2[%c1_22] : memref<32xf32, #tpu.memory_space<smem>>
    %68 = vector.broadcast %67 : f32 to vector<32x128xf32>
    %69 = arith.addf %66, %68 : vector<32x128xf32>
    %cst_23 = arith.constant 0.000000e+00 : f32
    %70 = vector.broadcast %cst_23 : f32 to vector<32x128xf32>
    %71 = arith.cmpf ogt, %69, %70 : vector<32x128xf32>
    %cst_24 = arith.constant -0.00999999977 : f32
    %72 = vector.broadcast %cst_24 : f32 to vector<32x128xf32>
    %73 = arith.select %71, %69, %72 : vector<32x128xi1>, vector<32x128xf32>
    %c0_25 = arith.constant 0 : index
    %c1_26 = arith.constant 1 : index
    %74 = memref.load %arg3[%c0_25, %c1_26] : memref<8x32xf32, #tpu.memory_space<smem>>
    %75 = vector.broadcast %74 : f32 to vector<32x128xf32>
    %76 = arith.mulf %75, %73 : vector<32x128xf32>
    %77 = arith.addf %35, %76 : vector<32x128xf32>
    %c1_27 = arith.constant 1 : index
    %c1_28 = arith.constant 1 : index
    %78 = memref.load %arg3[%c1_27, %c1_28] : memref<8x32xf32, #tpu.memory_space<smem>>
    %79 = vector.broadcast %78 : f32 to vector<32x128xf32>
    %80 = arith.mulf %79, %73 : vector<32x128xf32>
    %81 = arith.addf %39, %80 : vector<32x128xf32>
    %c2_29 = arith.constant 2 : index
    %c1_30 = arith.constant 1 : index
    %82 = memref.load %arg3[%c2_29, %c1_30] : memref<8x32xf32, #tpu.memory_space<smem>>
    %83 = vector.broadcast %82 : f32 to vector<32x128xf32>
    %84 = arith.mulf %83, %73 : vector<32x128xf32>
    %85 = arith.addf %43, %84 : vector<32x128xf32>
    %c3_31 = arith.constant 3 : index
    %c1_32 = arith.constant 1 : index
    %86 = memref.load %arg3[%c3_31, %c1_32] : memref<8x32xf32, #tpu.memory_space<smem>>
    %87 = vector.broadcast %86 : f32 to vector<32x128xf32>
    %88 = arith.mulf %87, %73 : vector<32x128xf32>
    %89 = arith.addf %47, %88 : vector<32x128xf32>
    %c4_33 = arith.constant 4 : index
    %c1_34 = arith.constant 1 : index
    %90 = memref.load %arg3[%c4_33, %c1_34] : memref<8x32xf32, #tpu.memory_space<smem>>
    %91 = vector.broadcast %90 : f32 to vector<32x128xf32>
    %92 = arith.mulf %91, %73 : vector<32x128xf32>
    %93 = arith.addf %51, %92 : vector<32x128xf32>
    %c5_35 = arith.constant 5 : index
    %c1_36 = arith.constant 1 : index
    %94 = memref.load %arg3[%c5_35, %c1_36] : memref<8x32xf32, #tpu.memory_space<smem>>
    %95 = vector.broadcast %94 : f32 to vector<32x128xf32>
    %96 = arith.mulf %95, %73 : vector<32x128xf32>
    %97 = arith.addf %55, %96 : vector<32x128xf32>
    %c6_37 = arith.constant 6 : index
    %c1_38 = arith.constant 1 : index
    %98 = memref.load %arg3[%c6_37, %c1_38] : memref<8x32xf32, #tpu.memory_space<smem>>
    %99 = vector.broadcast %98 : f32 to vector<32x128xf32>
    %100 = arith.mulf %99, %73 : vector<32x128xf32>
    %101 = arith.addf %59, %100 : vector<32x128xf32>
    %c7_39 = arith.constant 7 : index
    %c1_40 = arith.constant 1 : index
    %102 = memref.load %arg3[%c7_39, %c1_40] : memref<8x32xf32, #tpu.memory_space<smem>>
    %103 = vector.broadcast %102 : f32 to vector<32x128xf32>
    %104 = arith.mulf %103, %73 : vector<32x128xf32>
    %105 = arith.addf %63, %104 : vector<32x128xf32>
    %c2_41 = arith.constant 2 : index
    %106 = memref.load %arg1[%c2_41] : memref<32xf32, #tpu.memory_space<smem>>
    %107 = vector.broadcast %106 : f32 to vector<32x128xf32>
    %108 = arith.mulf %5, %107 : vector<32x128xf32>
    %c2_42 = arith.constant 2 : index
    %109 = memref.load %arg2[%c2_42] : memref<32xf32, #tpu.memory_space<smem>>
    %110 = vector.broadcast %109 : f32 to vector<32x128xf32>
    %111 = arith.addf %108, %110 : vector<32x128xf32>
    %cst_43 = arith.constant 0.000000e+00 : f32
    %112 = vector.broadcast %cst_43 : f32 to vector<32x128xf32>
    %113 = arith.cmpf ogt, %111, %112 : vector<32x128xf32>
    %cst_44 = arith.constant -0.00999999977 : f32
    %114 = vector.broadcast %cst_44 : f32 to vector<32x128xf32>
    %115 = arith.select %113, %111, %114 : vector<32x128xi1>, vector<32x128xf32>
    %c0_45 = arith.constant 0 : index
    %c2_46 = arith.constant 2 : index
    %116 = memref.load %arg3[%c0_45, %c2_46] : memref<8x32xf32, #tpu.memory_space<smem>>
    %117 = vector.broadcast %116 : f32 to vector<32x128xf32>
    %118 = arith.mulf %117, %115 : vector<32x128xf32>
    %119 = arith.addf %77, %118 : vector<32x128xf32>
    %c1_47 = arith.constant 1 : index
    %c2_48 = arith.constant 2 : index
    %120 = memref.load %arg3[%c1_47, %c2_48] : memref<8x32xf32, #tpu.memory_space<smem>>
    %121 = vector.broadcast %120 : f32 to vector<32x128xf32>
    %122 = arith.mulf %121, %115 : vector<32x128xf32>
    %123 = arith.addf %81, %122 : vector<32x128xf32>
    %c2_49 = arith.constant 2 : index
    %c2_50 = arith.constant 2 : index
    %124 = memref.load %arg3[%c2_49, %c2_50] : memref<8x32xf32, #tpu.memory_space<smem>>
    %125 = vector.broadcast %124 : f32 to vector<32x128xf32>
    %126 = arith.mulf %125, %115 : vector<32x128xf32>
    %127 = arith.addf %85, %126 : vector<32x128xf32>
    %c3_51 = arith.constant 3 : index
    %c2_52 = arith.constant 2 : index
    %128 = memref.load %arg3[%c3_51, %c2_52] : memref<8x32xf32, #tpu.memory_space<smem>>
    %129 = vector.broadcast %128 : f32 to vector<32x128xf32>
    %130 = arith.mulf %129, %115 : vector<32x128xf32>
    %131 = arith.addf %89, %130 : vector<32x128xf32>
    %c4_53 = arith.constant 4 : index
    %c2_54 = arith.constant 2 : index
    %132 = memref.load %arg3[%c4_53, %c2_54] : memref<8x32xf32, #tpu.memory_space<smem>>
    %133 = vector.broadcast %132 : f32 to vector<32x128xf32>
    %134 = arith.mulf %133, %115 : vector<32x128xf32>
    %135 = arith.addf %93, %134 : vector<32x128xf32>
    %c5_55 = arith.constant 5 : index
    %c2_56 = arith.constant 2 : index
    %136 = memref.load %arg3[%c5_55, %c2_56] : memref<8x32xf32, #tpu.memory_space<smem>>
    %137 = vector.broadcast %136 : f32 to vector<32x128xf32>
    %138 = arith.mulf %137, %115 : vector<32x128xf32>
    %139 = arith.addf %97, %138 : vector<32x128xf32>
    %c6_57 = arith.constant 6 : index
    %c2_58 = arith.constant 2 : index
    %140 = memref.load %arg3[%c6_57, %c2_58] : memref<8x32xf32, #tpu.memory_space<smem>>
    %141 = vector.broadcast %140 : f32 to vector<32x128xf32>
    %142 = arith.mulf %141, %115 : vector<32x128xf32>
    %143 = arith.addf %101, %142 : vector<32x128xf32>
    %c7_59 = arith.constant 7 : index
    %c2_60 = arith.constant 2 : index
    %144 = memref.load %arg3[%c7_59, %c2_60] : memref<8x32xf32, #tpu.memory_space<smem>>
    %145 = vector.broadcast %144 : f32 to vector<32x128xf32>
    %146 = arith.mulf %145, %115 : vector<32x128xf32>
    %147 = arith.addf %105, %146 : vector<32x128xf32>
    %c3_61 = arith.constant 3 : index
    %148 = memref.load %arg1[%c3_61] : memref<32xf32, #tpu.memory_space<smem>>
    %149 = vector.broadcast %148 : f32 to vector<32x128xf32>
    %150 = arith.mulf %5, %149 : vector<32x128xf32>
    %c3_62 = arith.constant 3 : index
    %151 = memref.load %arg2[%c3_62] : memref<32xf32, #tpu.memory_space<smem>>
    %152 = vector.broadcast %151 : f32 to vector<32x128xf32>
    %153 = arith.addf %150, %152 : vector<32x128xf32>
    %cst_63 = arith.constant 0.000000e+00 : f32
    %154 = vector.broadcast %cst_63 : f32 to vector<32x128xf32>
    %155 = arith.cmpf ogt, %153, %154 : vector<32x128xf32>
    %cst_64 = arith.constant -0.00999999977 : f32
    %156 = vector.broadcast %cst_64 : f32 to vector<32x128xf32>
    %157 = arith.select %155, %153, %156 : vector<32x128xi1>, vector<32x128xf32>
    %c0_65 = arith.constant 0 : index
    %c3_66 = arith.constant 3 : index
    %158 = memref.load %arg3[%c0_65, %c3_66] : memref<8x32xf32, #tpu.memory_space<smem>>
    %159 = vector.broadcast %158 : f32 to vector<32x128xf32>
    %160 = arith.mulf %159, %157 : vector<32x128xf32>
    %161 = arith.addf %119, %160 : vector<32x128xf32>
    %c1_67 = arith.constant 1 : index
    %c3_68 = arith.constant 3 : index
    %162 = memref.load %arg3[%c1_67, %c3_68] : memref<8x32xf32, #tpu.memory_space<smem>>
    %163 = vector.broadcast %162 : f32 to vector<32x128xf32>
    %164 = arith.mulf %163, %157 : vector<32x128xf32>
    %165 = arith.addf %123, %164 : vector<32x128xf32>
    %c2_69 = arith.constant 2 : index
    %c3_70 = arith.constant 3 : index
    %166 = memref.load %arg3[%c2_69, %c3_70] : memref<8x32xf32, #tpu.memory_space<smem>>
    %167 = vector.broadcast %166 : f32 to vector<32x128xf32>
    %168 = arith.mulf %167, %157 : vector<32x128xf32>
    %169 = arith.addf %127, %168 : vector<32x128xf32>
    %c3_71 = arith.constant 3 : index
    %c3_72 = arith.constant 3 : index
    %170 = memref.load %arg3[%c3_71, %c3_72] : memref<8x32xf32, #tpu.memory_space<smem>>
    %171 = vector.broadcast %170 : f32 to vector<32x128xf32>
    %172 = arith.mulf %171, %157 : vector<32x128xf32>
    %173 = arith.addf %131, %172 : vector<32x128xf32>
    %c4_73 = arith.constant 4 : index
    %c3_74 = arith.constant 3 : index
    %174 = memref.load %arg3[%c4_73, %c3_74] : memref<8x32xf32, #tpu.memory_space<smem>>
    %175 = vector.broadcast %174 : f32 to vector<32x128xf32>
    %176 = arith.mulf %175, %157 : vector<32x128xf32>
    %177 = arith.addf %135, %176 : vector<32x128xf32>
    %c5_75 = arith.constant 5 : index
    %c3_76 = arith.constant 3 : index
    %178 = memref.load %arg3[%c5_75, %c3_76] : memref<8x32xf32, #tpu.memory_space<smem>>
    %179 = vector.broadcast %178 : f32 to vector<32x128xf32>
    %180 = arith.mulf %179, %157 : vector<32x128xf32>
    %181 = arith.addf %139, %180 : vector<32x128xf32>
    %c6_77 = arith.constant 6 : index
    %c3_78 = arith.constant 3 : index
    %182 = memref.load %arg3[%c6_77, %c3_78] : memref<8x32xf32, #tpu.memory_space<smem>>
    %183 = vector.broadcast %182 : f32 to vector<32x128xf32>
    %184 = arith.mulf %183, %157 : vector<32x128xf32>
    %185 = arith.addf %143, %184 : vector<32x128xf32>
    %c7_79 = arith.constant 7 : index
    %c3_80 = arith.constant 3 : index
    %186 = memref.load %arg3[%c7_79, %c3_80] : memref<8x32xf32, #tpu.memory_space<smem>>
    %187 = vector.broadcast %186 : f32 to vector<32x128xf32>
    %188 = arith.mulf %187, %157 : vector<32x128xf32>
    %189 = arith.addf %147, %188 : vector<32x128xf32>
    %c4_81 = arith.constant 4 : index
    %190 = memref.load %arg1[%c4_81] : memref<32xf32, #tpu.memory_space<smem>>
    %191 = vector.broadcast %190 : f32 to vector<32x128xf32>
    %192 = arith.mulf %5, %191 : vector<32x128xf32>
    %c4_82 = arith.constant 4 : index
    %193 = memref.load %arg2[%c4_82] : memref<32xf32, #tpu.memory_space<smem>>
    %194 = vector.broadcast %193 : f32 to vector<32x128xf32>
    %195 = arith.addf %192, %194 : vector<32x128xf32>
    %cst_83 = arith.constant 0.000000e+00 : f32
    %196 = vector.broadcast %cst_83 : f32 to vector<32x128xf32>
    %197 = arith.cmpf ogt, %195, %196 : vector<32x128xf32>
    %cst_84 = arith.constant -0.00999999977 : f32
    %198 = vector.broadcast %cst_84 : f32 to vector<32x128xf32>
    %199 = arith.select %197, %195, %198 : vector<32x128xi1>, vector<32x128xf32>
    %c0_85 = arith.constant 0 : index
    %c4_86 = arith.constant 4 : index
    %200 = memref.load %arg3[%c0_85, %c4_86] : memref<8x32xf32, #tpu.memory_space<smem>>
    %201 = vector.broadcast %200 : f32 to vector<32x128xf32>
    %202 = arith.mulf %201, %199 : vector<32x128xf32>
    %203 = arith.addf %161, %202 : vector<32x128xf32>
    %c1_87 = arith.constant 1 : index
    %c4_88 = arith.constant 4 : index
    %204 = memref.load %arg3[%c1_87, %c4_88] : memref<8x32xf32, #tpu.memory_space<smem>>
    %205 = vector.broadcast %204 : f32 to vector<32x128xf32>
    %206 = arith.mulf %205, %199 : vector<32x128xf32>
    %207 = arith.addf %165, %206 : vector<32x128xf32>
    %c2_89 = arith.constant 2 : index
    %c4_90 = arith.constant 4 : index
    %208 = memref.load %arg3[%c2_89, %c4_90] : memref<8x32xf32, #tpu.memory_space<smem>>
    %209 = vector.broadcast %208 : f32 to vector<32x128xf32>
    %210 = arith.mulf %209, %199 : vector<32x128xf32>
    %211 = arith.addf %169, %210 : vector<32x128xf32>
    %c3_91 = arith.constant 3 : index
    %c4_92 = arith.constant 4 : index
    %212 = memref.load %arg3[%c3_91, %c4_92] : memref<8x32xf32, #tpu.memory_space<smem>>
    %213 = vector.broadcast %212 : f32 to vector<32x128xf32>
    %214 = arith.mulf %213, %199 : vector<32x128xf32>
    %215 = arith.addf %173, %214 : vector<32x128xf32>
    %c4_93 = arith.constant 4 : index
    %c4_94 = arith.constant 4 : index
    %216 = memref.load %arg3[%c4_93, %c4_94] : memref<8x32xf32, #tpu.memory_space<smem>>
    %217 = vector.broadcast %216 : f32 to vector<32x128xf32>
    %218 = arith.mulf %217, %199 : vector<32x128xf32>
    %219 = arith.addf %177, %218 : vector<32x128xf32>
    %c5_95 = arith.constant 5 : index
    %c4_96 = arith.constant 4 : index
    %220 = memref.load %arg3[%c5_95, %c4_96] : memref<8x32xf32, #tpu.memory_space<smem>>
    %221 = vector.broadcast %220 : f32 to vector<32x128xf32>
    %222 = arith.mulf %221, %199 : vector<32x128xf32>
    %223 = arith.addf %181, %222 : vector<32x128xf32>
    %c6_97 = arith.constant 6 : index
    %c4_98 = arith.constant 4 : index
    %224 = memref.load %arg3[%c6_97, %c4_98] : memref<8x32xf32, #tpu.memory_space<smem>>
    %225 = vector.broadcast %224 : f32 to vector<32x128xf32>
    %226 = arith.mulf %225, %199 : vector<32x128xf32>
    %227 = arith.addf %185, %226 : vector<32x128xf32>
    %c7_99 = arith.constant 7 : index
    %c4_100 = arith.constant 4 : index
    %228 = memref.load %arg3[%c7_99, %c4_100] : memref<8x32xf32, #tpu.memory_space<smem>>
    %229 = vector.broadcast %228 : f32 to vector<32x128xf32>
    %230 = arith.mulf %229, %199 : vector<32x128xf32>
    %231 = arith.addf %189, %230 : vector<32x128xf32>
    %c5_101 = arith.constant 5 : index
    %232 = memref.load %arg1[%c5_101] : memref<32xf32, #tpu.memory_space<smem>>
    %233 = vector.broadcast %232 : f32 to vector<32x128xf32>
    %234 = arith.mulf %5, %233 : vector<32x128xf32>
    %c5_102 = arith.constant 5 : index
    %235 = memref.load %arg2[%c5_102] : memref<32xf32, #tpu.memory_space<smem>>
    %236 = vector.broadcast %235 : f32 to vector<32x128xf32>
    %237 = arith.addf %234, %236 : vector<32x128xf32>
    %cst_103 = arith.constant 0.000000e+00 : f32
    %238 = vector.broadcast %cst_103 : f32 to vector<32x128xf32>
    %239 = arith.cmpf ogt, %237, %238 : vector<32x128xf32>
    %cst_104 = arith.constant -0.00999999977 : f32
    %240 = vector.broadcast %cst_104 : f32 to vector<32x128xf32>
    %241 = arith.select %239, %237, %240 : vector<32x128xi1>, vector<32x128xf32>
    %c0_105 = arith.constant 0 : index
    %c5_106 = arith.constant 5 : index
    %242 = memref.load %arg3[%c0_105, %c5_106] : memref<8x32xf32, #tpu.memory_space<smem>>
    %243 = vector.broadcast %242 : f32 to vector<32x128xf32>
    %244 = arith.mulf %243, %241 : vector<32x128xf32>
    %245 = arith.addf %203, %244 : vector<32x128xf32>
    %c1_107 = arith.constant 1 : index
    %c5_108 = arith.constant 5 : index
    %246 = memref.load %arg3[%c1_107, %c5_108] : memref<8x32xf32, #tpu.memory_space<smem>>
    %247 = vector.broadcast %246 : f32 to vector<32x128xf32>
    %248 = arith.mulf %247, %241 : vector<32x128xf32>
    %249 = arith.addf %207, %248 : vector<32x128xf32>
    %c2_109 = arith.constant 2 : index
    %c5_110 = arith.constant 5 : index
    %250 = memref.load %arg3[%c2_109, %c5_110] : memref<8x32xf32, #tpu.memory_space<smem>>
    %251 = vector.broadcast %250 : f32 to vector<32x128xf32>
    %252 = arith.mulf %251, %241 : vector<32x128xf32>
    %253 = arith.addf %211, %252 : vector<32x128xf32>
    %c3_111 = arith.constant 3 : index
    %c5_112 = arith.constant 5 : index
    %254 = memref.load %arg3[%c3_111, %c5_112] : memref<8x32xf32, #tpu.memory_space<smem>>
    %255 = vector.broadcast %254 : f32 to vector<32x128xf32>
    %256 = arith.mulf %255, %241 : vector<32x128xf32>
    %257 = arith.addf %215, %256 : vector<32x128xf32>
    %c4_113 = arith.constant 4 : index
    %c5_114 = arith.constant 5 : index
    %258 = memref.load %arg3[%c4_113, %c5_114] : memref<8x32xf32, #tpu.memory_space<smem>>
    %259 = vector.broadcast %258 : f32 to vector<32x128xf32>
    %260 = arith.mulf %259, %241 : vector<32x128xf32>
    %261 = arith.addf %219, %260 : vector<32x128xf32>
    %c5_115 = arith.constant 5 : index
    %c5_116 = arith.constant 5 : index
    %262 = memref.load %arg3[%c5_115, %c5_116] : memref<8x32xf32, #tpu.memory_space<smem>>
    %263 = vector.broadcast %262 : f32 to vector<32x128xf32>
    %264 = arith.mulf %263, %241 : vector<32x128xf32>
    %265 = arith.addf %223, %264 : vector<32x128xf32>
    %c6_117 = arith.constant 6 : index
    %c5_118 = arith.constant 5 : index
    %266 = memref.load %arg3[%c6_117, %c5_118] : memref<8x32xf32, #tpu.memory_space<smem>>
    %267 = vector.broadcast %266 : f32 to vector<32x128xf32>
    %268 = arith.mulf %267, %241 : vector<32x128xf32>
    %269 = arith.addf %227, %268 : vector<32x128xf32>
    %c7_119 = arith.constant 7 : index
    %c5_120 = arith.constant 5 : index
    %270 = memref.load %arg3[%c7_119, %c5_120] : memref<8x32xf32, #tpu.memory_space<smem>>
    %271 = vector.broadcast %270 : f32 to vector<32x128xf32>
    %272 = arith.mulf %271, %241 : vector<32x128xf32>
    %273 = arith.addf %231, %272 : vector<32x128xf32>
    %c6_121 = arith.constant 6 : index
    %274 = memref.load %arg1[%c6_121] : memref<32xf32, #tpu.memory_space<smem>>
    %275 = vector.broadcast %274 : f32 to vector<32x128xf32>
    %276 = arith.mulf %5, %275 : vector<32x128xf32>
    %c6_122 = arith.constant 6 : index
    %277 = memref.load %arg2[%c6_122] : memref<32xf32, #tpu.memory_space<smem>>
    %278 = vector.broadcast %277 : f32 to vector<32x128xf32>
    %279 = arith.addf %276, %278 : vector<32x128xf32>
    %cst_123 = arith.constant 0.000000e+00 : f32
    %280 = vector.broadcast %cst_123 : f32 to vector<32x128xf32>
    %281 = arith.cmpf ogt, %279, %280 : vector<32x128xf32>
    %cst_124 = arith.constant -0.00999999977 : f32
    %282 = vector.broadcast %cst_124 : f32 to vector<32x128xf32>
    %283 = arith.select %281, %279, %282 : vector<32x128xi1>, vector<32x128xf32>
    %c0_125 = arith.constant 0 : index
    %c6_126 = arith.constant 6 : index
    %284 = memref.load %arg3[%c0_125, %c6_126] : memref<8x32xf32, #tpu.memory_space<smem>>
    %285 = vector.broadcast %284 : f32 to vector<32x128xf32>
    %286 = arith.mulf %285, %283 : vector<32x128xf32>
    %287 = arith.addf %245, %286 : vector<32x128xf32>
    %c1_127 = arith.constant 1 : index
    %c6_128 = arith.constant 6 : index
    %288 = memref.load %arg3[%c1_127, %c6_128] : memref<8x32xf32, #tpu.memory_space<smem>>
    %289 = vector.broadcast %288 : f32 to vector<32x128xf32>
    %290 = arith.mulf %289, %283 : vector<32x128xf32>
    %291 = arith.addf %249, %290 : vector<32x128xf32>
    %c2_129 = arith.constant 2 : index
    %c6_130 = arith.constant 6 : index
    %292 = memref.load %arg3[%c2_129, %c6_130] : memref<8x32xf32, #tpu.memory_space<smem>>
    %293 = vector.broadcast %292 : f32 to vector<32x128xf32>
    %294 = arith.mulf %293, %283 : vector<32x128xf32>
    %295 = arith.addf %253, %294 : vector<32x128xf32>
    %c3_131 = arith.constant 3 : index
    %c6_132 = arith.constant 6 : index
    %296 = memref.load %arg3[%c3_131, %c6_132] : memref<8x32xf32, #tpu.memory_space<smem>>
    %297 = vector.broadcast %296 : f32 to vector<32x128xf32>
    %298 = arith.mulf %297, %283 : vector<32x128xf32>
    %299 = arith.addf %257, %298 : vector<32x128xf32>
    %c4_133 = arith.constant 4 : index
    %c6_134 = arith.constant 6 : index
    %300 = memref.load %arg3[%c4_133, %c6_134] : memref<8x32xf32, #tpu.memory_space<smem>>
    %301 = vector.broadcast %300 : f32 to vector<32x128xf32>
    %302 = arith.mulf %301, %283 : vector<32x128xf32>
    %303 = arith.addf %261, %302 : vector<32x128xf32>
    %c5_135 = arith.constant 5 : index
    %c6_136 = arith.constant 6 : index
    %304 = memref.load %arg3[%c5_135, %c6_136] : memref<8x32xf32, #tpu.memory_space<smem>>
    %305 = vector.broadcast %304 : f32 to vector<32x128xf32>
    %306 = arith.mulf %305, %283 : vector<32x128xf32>
    %307 = arith.addf %265, %306 : vector<32x128xf32>
    %c6_137 = arith.constant 6 : index
    %c6_138 = arith.constant 6 : index
    %308 = memref.load %arg3[%c6_137, %c6_138] : memref<8x32xf32, #tpu.memory_space<smem>>
    %309 = vector.broadcast %308 : f32 to vector<32x128xf32>
    %310 = arith.mulf %309, %283 : vector<32x128xf32>
    %311 = arith.addf %269, %310 : vector<32x128xf32>
    %c7_139 = arith.constant 7 : index
    %c6_140 = arith.constant 6 : index
    %312 = memref.load %arg3[%c7_139, %c6_140] : memref<8x32xf32, #tpu.memory_space<smem>>
    %313 = vector.broadcast %312 : f32 to vector<32x128xf32>
    %314 = arith.mulf %313, %283 : vector<32x128xf32>
    %315 = arith.addf %273, %314 : vector<32x128xf32>
    %c7_141 = arith.constant 7 : index
    %316 = memref.load %arg1[%c7_141] : memref<32xf32, #tpu.memory_space<smem>>
    %317 = vector.broadcast %316 : f32 to vector<32x128xf32>
    %318 = arith.mulf %5, %317 : vector<32x128xf32>
    %c7_142 = arith.constant 7 : index
    %319 = memref.load %arg2[%c7_142] : memref<32xf32, #tpu.memory_space<smem>>
    %320 = vector.broadcast %319 : f32 to vector<32x128xf32>
    %321 = arith.addf %318, %320 : vector<32x128xf32>
    %cst_143 = arith.constant 0.000000e+00 : f32
    %322 = vector.broadcast %cst_143 : f32 to vector<32x128xf32>
    %323 = arith.cmpf ogt, %321, %322 : vector<32x128xf32>
    %cst_144 = arith.constant -0.00999999977 : f32
    %324 = vector.broadcast %cst_144 : f32 to vector<32x128xf32>
    %325 = arith.select %323, %321, %324 : vector<32x128xi1>, vector<32x128xf32>
    %c0_145 = arith.constant 0 : index
    %c7_146 = arith.constant 7 : index
    %326 = memref.load %arg3[%c0_145, %c7_146] : memref<8x32xf32, #tpu.memory_space<smem>>
    %327 = vector.broadcast %326 : f32 to vector<32x128xf32>
    %328 = arith.mulf %327, %325 : vector<32x128xf32>
    %329 = arith.addf %287, %328 : vector<32x128xf32>
    %c1_147 = arith.constant 1 : index
    %c7_148 = arith.constant 7 : index
    %330 = memref.load %arg3[%c1_147, %c7_148] : memref<8x32xf32, #tpu.memory_space<smem>>
    %331 = vector.broadcast %330 : f32 to vector<32x128xf32>
    %332 = arith.mulf %331, %325 : vector<32x128xf32>
    %333 = arith.addf %291, %332 : vector<32x128xf32>
    %c2_149 = arith.constant 2 : index
    %c7_150 = arith.constant 7 : index
    %334 = memref.load %arg3[%c2_149, %c7_150] : memref<8x32xf32, #tpu.memory_space<smem>>
    %335 = vector.broadcast %334 : f32 to vector<32x128xf32>
    %336 = arith.mulf %335, %325 : vector<32x128xf32>
    %337 = arith.addf %295, %336 : vector<32x128xf32>
    %c3_151 = arith.constant 3 : index
    %c7_152 = arith.constant 7 : index
    %338 = memref.load %arg3[%c3_151, %c7_152] : memref<8x32xf32, #tpu.memory_space<smem>>
    %339 = vector.broadcast %338 : f32 to vector<32x128xf32>
    %340 = arith.mulf %339, %325 : vector<32x128xf32>
    %341 = arith.addf %299, %340 : vector<32x128xf32>
    %c4_153 = arith.constant 4 : index
    %c7_154 = arith.constant 7 : index
    %342 = memref.load %arg3[%c4_153, %c7_154] : memref<8x32xf32, #tpu.memory_space<smem>>
    %343 = vector.broadcast %342 : f32 to vector<32x128xf32>
    %344 = arith.mulf %343, %325 : vector<32x128xf32>
    %345 = arith.addf %303, %344 : vector<32x128xf32>
    %c5_155 = arith.constant 5 : index
    %c7_156 = arith.constant 7 : index
    %346 = memref.load %arg3[%c5_155, %c7_156] : memref<8x32xf32, #tpu.memory_space<smem>>
    %347 = vector.broadcast %346 : f32 to vector<32x128xf32>
    %348 = arith.mulf %347, %325 : vector<32x128xf32>
    %349 = arith.addf %307, %348 : vector<32x128xf32>
    %c6_157 = arith.constant 6 : index
    %c7_158 = arith.constant 7 : index
    %350 = memref.load %arg3[%c6_157, %c7_158] : memref<8x32xf32, #tpu.memory_space<smem>>
    %351 = vector.broadcast %350 : f32 to vector<32x128xf32>
    %352 = arith.mulf %351, %325 : vector<32x128xf32>
    %353 = arith.addf %311, %352 : vector<32x128xf32>
    %c7_159 = arith.constant 7 : index
    %c7_160 = arith.constant 7 : index
    %354 = memref.load %arg3[%c7_159, %c7_160] : memref<8x32xf32, #tpu.memory_space<smem>>
    %355 = vector.broadcast %354 : f32 to vector<32x128xf32>
    %356 = arith.mulf %355, %325 : vector<32x128xf32>
    %357 = arith.addf %315, %356 : vector<32x128xf32>
    %c8 = arith.constant 8 : index
    %358 = memref.load %arg1[%c8] : memref<32xf32, #tpu.memory_space<smem>>
    %359 = vector.broadcast %358 : f32 to vector<32x128xf32>
    %360 = arith.mulf %5, %359 : vector<32x128xf32>
    %c8_161 = arith.constant 8 : index
    %361 = memref.load %arg2[%c8_161] : memref<32xf32, #tpu.memory_space<smem>>
    %362 = vector.broadcast %361 : f32 to vector<32x128xf32>
    %363 = arith.addf %360, %362 : vector<32x128xf32>
    %cst_162 = arith.constant 0.000000e+00 : f32
    %364 = vector.broadcast %cst_162 : f32 to vector<32x128xf32>
    %365 = arith.cmpf ogt, %363, %364 : vector<32x128xf32>
    %cst_163 = arith.constant -0.00999999977 : f32
    %366 = vector.broadcast %cst_163 : f32 to vector<32x128xf32>
    %367 = arith.select %365, %363, %366 : vector<32x128xi1>, vector<32x128xf32>
    %c0_164 = arith.constant 0 : index
    %c8_165 = arith.constant 8 : index
    %368 = memref.load %arg3[%c0_164, %c8_165] : memref<8x32xf32, #tpu.memory_space<smem>>
    %369 = vector.broadcast %368 : f32 to vector<32x128xf32>
    %370 = arith.mulf %369, %367 : vector<32x128xf32>
    %371 = arith.addf %329, %370 : vector<32x128xf32>
    %c1_166 = arith.constant 1 : index
    %c8_167 = arith.constant 8 : index
    %372 = memref.load %arg3[%c1_166, %c8_167] : memref<8x32xf32, #tpu.memory_space<smem>>
    %373 = vector.broadcast %372 : f32 to vector<32x128xf32>
    %374 = arith.mulf %373, %367 : vector<32x128xf32>
    %375 = arith.addf %333, %374 : vector<32x128xf32>
    %c2_168 = arith.constant 2 : index
    %c8_169 = arith.constant 8 : index
    %376 = memref.load %arg3[%c2_168, %c8_169] : memref<8x32xf32, #tpu.memory_space<smem>>
    %377 = vector.broadcast %376 : f32 to vector<32x128xf32>
    %378 = arith.mulf %377, %367 : vector<32x128xf32>
    %379 = arith.addf %337, %378 : vector<32x128xf32>
    %c3_170 = arith.constant 3 : index
    %c8_171 = arith.constant 8 : index
    %380 = memref.load %arg3[%c3_170, %c8_171] : memref<8x32xf32, #tpu.memory_space<smem>>
    %381 = vector.broadcast %380 : f32 to vector<32x128xf32>
    %382 = arith.mulf %381, %367 : vector<32x128xf32>
    %383 = arith.addf %341, %382 : vector<32x128xf32>
    %c4_172 = arith.constant 4 : index
    %c8_173 = arith.constant 8 : index
    %384 = memref.load %arg3[%c4_172, %c8_173] : memref<8x32xf32, #tpu.memory_space<smem>>
    %385 = vector.broadcast %384 : f32 to vector<32x128xf32>
    %386 = arith.mulf %385, %367 : vector<32x128xf32>
    %387 = arith.addf %345, %386 : vector<32x128xf32>
    %c5_174 = arith.constant 5 : index
    %c8_175 = arith.constant 8 : index
    %388 = memref.load %arg3[%c5_174, %c8_175] : memref<8x32xf32, #tpu.memory_space<smem>>
    %389 = vector.broadcast %388 : f32 to vector<32x128xf32>
    %390 = arith.mulf %389, %367 : vector<32x128xf32>
    %391 = arith.addf %349, %390 : vector<32x128xf32>
    %c6_176 = arith.constant 6 : index
    %c8_177 = arith.constant 8 : index
    %392 = memref.load %arg3[%c6_176, %c8_177] : memref<8x32xf32, #tpu.memory_space<smem>>
    %393 = vector.broadcast %392 : f32 to vector<32x128xf32>
    %394 = arith.mulf %393, %367 : vector<32x128xf32>
    %395 = arith.addf %353, %394 : vector<32x128xf32>
    %c7_178 = arith.constant 7 : index
    %c8_179 = arith.constant 8 : index
    %396 = memref.load %arg3[%c7_178, %c8_179] : memref<8x32xf32, #tpu.memory_space<smem>>
    %397 = vector.broadcast %396 : f32 to vector<32x128xf32>
    %398 = arith.mulf %397, %367 : vector<32x128xf32>
    %399 = arith.addf %357, %398 : vector<32x128xf32>
    %c9 = arith.constant 9 : index
    %400 = memref.load %arg1[%c9] : memref<32xf32, #tpu.memory_space<smem>>
    %401 = vector.broadcast %400 : f32 to vector<32x128xf32>
    %402 = arith.mulf %5, %401 : vector<32x128xf32>
    %c9_180 = arith.constant 9 : index
    %403 = memref.load %arg2[%c9_180] : memref<32xf32, #tpu.memory_space<smem>>
    %404 = vector.broadcast %403 : f32 to vector<32x128xf32>
    %405 = arith.addf %402, %404 : vector<32x128xf32>
    %cst_181 = arith.constant 0.000000e+00 : f32
    %406 = vector.broadcast %cst_181 : f32 to vector<32x128xf32>
    %407 = arith.cmpf ogt, %405, %406 : vector<32x128xf32>
    %cst_182 = arith.constant -0.00999999977 : f32
    %408 = vector.broadcast %cst_182 : f32 to vector<32x128xf32>
    %409 = arith.select %407, %405, %408 : vector<32x128xi1>, vector<32x128xf32>
    %c0_183 = arith.constant 0 : index
    %c9_184 = arith.constant 9 : index
    %410 = memref.load %arg3[%c0_183, %c9_184] : memref<8x32xf32, #tpu.memory_space<smem>>
    %411 = vector.broadcast %410 : f32 to vector<32x128xf32>
    %412 = arith.mulf %411, %409 : vector<32x128xf32>
    %413 = arith.addf %371, %412 : vector<32x128xf32>
    %c1_185 = arith.constant 1 : index
    %c9_186 = arith.constant 9 : index
    %414 = memref.load %arg3[%c1_185, %c9_186] : memref<8x32xf32, #tpu.memory_space<smem>>
    %415 = vector.broadcast %414 : f32 to vector<32x128xf32>
    %416 = arith.mulf %415, %409 : vector<32x128xf32>
    %417 = arith.addf %375, %416 : vector<32x128xf32>
    %c2_187 = arith.constant 2 : index
    %c9_188 = arith.constant 9 : index
    %418 = memref.load %arg3[%c2_187, %c9_188] : memref<8x32xf32, #tpu.memory_space<smem>>
    %419 = vector.broadcast %418 : f32 to vector<32x128xf32>
    %420 = arith.mulf %419, %409 : vector<32x128xf32>
    %421 = arith.addf %379, %420 : vector<32x128xf32>
    %c3_189 = arith.constant 3 : index
    %c9_190 = arith.constant 9 : index
    %422 = memref.load %arg3[%c3_189, %c9_190] : memref<8x32xf32, #tpu.memory_space<smem>>
    %423 = vector.broadcast %422 : f32 to vector<32x128xf32>
    %424 = arith.mulf %423, %409 : vector<32x128xf32>
    %425 = arith.addf %383, %424 : vector<32x128xf32>
    %c4_191 = arith.constant 4 : index
    %c9_192 = arith.constant 9 : index
    %426 = memref.load %arg3[%c4_191, %c9_192] : memref<8x32xf32, #tpu.memory_space<smem>>
    %427 = vector.broadcast %426 : f32 to vector<32x128xf32>
    %428 = arith.mulf %427, %409 : vector<32x128xf32>
    %429 = arith.addf %387, %428 : vector<32x128xf32>
    %c5_193 = arith.constant 5 : index
    %c9_194 = arith.constant 9 : index
    %430 = memref.load %arg3[%c5_193, %c9_194] : memref<8x32xf32, #tpu.memory_space<smem>>
    %431 = vector.broadcast %430 : f32 to vector<32x128xf32>
    %432 = arith.mulf %431, %409 : vector<32x128xf32>
    %433 = arith.addf %391, %432 : vector<32x128xf32>
    %c6_195 = arith.constant 6 : index
    %c9_196 = arith.constant 9 : index
    %434 = memref.load %arg3[%c6_195, %c9_196] : memref<8x32xf32, #tpu.memory_space<smem>>
    %435 = vector.broadcast %434 : f32 to vector<32x128xf32>
    %436 = arith.mulf %435, %409 : vector<32x128xf32>
    %437 = arith.addf %395, %436 : vector<32x128xf32>
    %c7_197 = arith.constant 7 : index
    %c9_198 = arith.constant 9 : index
    %438 = memref.load %arg3[%c7_197, %c9_198] : memref<8x32xf32, #tpu.memory_space<smem>>
    %439 = vector.broadcast %438 : f32 to vector<32x128xf32>
    %440 = arith.mulf %439, %409 : vector<32x128xf32>
    %441 = arith.addf %399, %440 : vector<32x128xf32>
    %c10 = arith.constant 10 : index
    %442 = memref.load %arg1[%c10] : memref<32xf32, #tpu.memory_space<smem>>
    %443 = vector.broadcast %442 : f32 to vector<32x128xf32>
    %444 = arith.mulf %5, %443 : vector<32x128xf32>
    %c10_199 = arith.constant 10 : index
    %445 = memref.load %arg2[%c10_199] : memref<32xf32, #tpu.memory_space<smem>>
    %446 = vector.broadcast %445 : f32 to vector<32x128xf32>
    %447 = arith.addf %444, %446 : vector<32x128xf32>
    %cst_200 = arith.constant 0.000000e+00 : f32
    %448 = vector.broadcast %cst_200 : f32 to vector<32x128xf32>
    %449 = arith.cmpf ogt, %447, %448 : vector<32x128xf32>
    %cst_201 = arith.constant -0.00999999977 : f32
    %450 = vector.broadcast %cst_201 : f32 to vector<32x128xf32>
    %451 = arith.select %449, %447, %450 : vector<32x128xi1>, vector<32x128xf32>
    %c0_202 = arith.constant 0 : index
    %c10_203 = arith.constant 10 : index
    %452 = memref.load %arg3[%c0_202, %c10_203] : memref<8x32xf32, #tpu.memory_space<smem>>
    %453 = vector.broadcast %452 : f32 to vector<32x128xf32>
    %454 = arith.mulf %453, %451 : vector<32x128xf32>
    %455 = arith.addf %413, %454 : vector<32x128xf32>
    %c1_204 = arith.constant 1 : index
    %c10_205 = arith.constant 10 : index
    %456 = memref.load %arg3[%c1_204, %c10_205] : memref<8x32xf32, #tpu.memory_space<smem>>
    %457 = vector.broadcast %456 : f32 to vector<32x128xf32>
    %458 = arith.mulf %457, %451 : vector<32x128xf32>
    %459 = arith.addf %417, %458 : vector<32x128xf32>
    %c2_206 = arith.constant 2 : index
    %c10_207 = arith.constant 10 : index
    %460 = memref.load %arg3[%c2_206, %c10_207] : memref<8x32xf32, #tpu.memory_space<smem>>
    %461 = vector.broadcast %460 : f32 to vector<32x128xf32>
    %462 = arith.mulf %461, %451 : vector<32x128xf32>
    %463 = arith.addf %421, %462 : vector<32x128xf32>
    %c3_208 = arith.constant 3 : index
    %c10_209 = arith.constant 10 : index
    %464 = memref.load %arg3[%c3_208, %c10_209] : memref<8x32xf32, #tpu.memory_space<smem>>
    %465 = vector.broadcast %464 : f32 to vector<32x128xf32>
    %466 = arith.mulf %465, %451 : vector<32x128xf32>
    %467 = arith.addf %425, %466 : vector<32x128xf32>
    %c4_210 = arith.constant 4 : index
    %c10_211 = arith.constant 10 : index
    %468 = memref.load %arg3[%c4_210, %c10_211] : memref<8x32xf32, #tpu.memory_space<smem>>
    %469 = vector.broadcast %468 : f32 to vector<32x128xf32>
    %470 = arith.mulf %469, %451 : vector<32x128xf32>
    %471 = arith.addf %429, %470 : vector<32x128xf32>
    %c5_212 = arith.constant 5 : index
    %c10_213 = arith.constant 10 : index
    %472 = memref.load %arg3[%c5_212, %c10_213] : memref<8x32xf32, #tpu.memory_space<smem>>
    %473 = vector.broadcast %472 : f32 to vector<32x128xf32>
    %474 = arith.mulf %473, %451 : vector<32x128xf32>
    %475 = arith.addf %433, %474 : vector<32x128xf32>
    %c6_214 = arith.constant 6 : index
    %c10_215 = arith.constant 10 : index
    %476 = memref.load %arg3[%c6_214, %c10_215] : memref<8x32xf32, #tpu.memory_space<smem>>
    %477 = vector.broadcast %476 : f32 to vector<32x128xf32>
    %478 = arith.mulf %477, %451 : vector<32x128xf32>
    %479 = arith.addf %437, %478 : vector<32x128xf32>
    %c7_216 = arith.constant 7 : index
    %c10_217 = arith.constant 10 : index
    %480 = memref.load %arg3[%c7_216, %c10_217] : memref<8x32xf32, #tpu.memory_space<smem>>
    %481 = vector.broadcast %480 : f32 to vector<32x128xf32>
    %482 = arith.mulf %481, %451 : vector<32x128xf32>
    %483 = arith.addf %441, %482 : vector<32x128xf32>
    %c11 = arith.constant 11 : index
    %484 = memref.load %arg1[%c11] : memref<32xf32, #tpu.memory_space<smem>>
    %485 = vector.broadcast %484 : f32 to vector<32x128xf32>
    %486 = arith.mulf %5, %485 : vector<32x128xf32>
    %c11_218 = arith.constant 11 : index
    %487 = memref.load %arg2[%c11_218] : memref<32xf32, #tpu.memory_space<smem>>
    %488 = vector.broadcast %487 : f32 to vector<32x128xf32>
    %489 = arith.addf %486, %488 : vector<32x128xf32>
    %cst_219 = arith.constant 0.000000e+00 : f32
    %490 = vector.broadcast %cst_219 : f32 to vector<32x128xf32>
    %491 = arith.cmpf ogt, %489, %490 : vector<32x128xf32>
    %cst_220 = arith.constant -0.00999999977 : f32
    %492 = vector.broadcast %cst_220 : f32 to vector<32x128xf32>
    %493 = arith.select %491, %489, %492 : vector<32x128xi1>, vector<32x128xf32>
    %c0_221 = arith.constant 0 : index
    %c11_222 = arith.constant 11 : index
    %494 = memref.load %arg3[%c0_221, %c11_222] : memref<8x32xf32, #tpu.memory_space<smem>>
    %495 = vector.broadcast %494 : f32 to vector<32x128xf32>
    %496 = arith.mulf %495, %493 : vector<32x128xf32>
    %497 = arith.addf %455, %496 : vector<32x128xf32>
    %c1_223 = arith.constant 1 : index
    %c11_224 = arith.constant 11 : index
    %498 = memref.load %arg3[%c1_223, %c11_224] : memref<8x32xf32, #tpu.memory_space<smem>>
    %499 = vector.broadcast %498 : f32 to vector<32x128xf32>
    %500 = arith.mulf %499, %493 : vector<32x128xf32>
    %501 = arith.addf %459, %500 : vector<32x128xf32>
    %c2_225 = arith.constant 2 : index
    %c11_226 = arith.constant 11 : index
    %502 = memref.load %arg3[%c2_225, %c11_226] : memref<8x32xf32, #tpu.memory_space<smem>>
    %503 = vector.broadcast %502 : f32 to vector<32x128xf32>
    %504 = arith.mulf %503, %493 : vector<32x128xf32>
    %505 = arith.addf %463, %504 : vector<32x128xf32>
    %c3_227 = arith.constant 3 : index
    %c11_228 = arith.constant 11 : index
    %506 = memref.load %arg3[%c3_227, %c11_228] : memref<8x32xf32, #tpu.memory_space<smem>>
    %507 = vector.broadcast %506 : f32 to vector<32x128xf32>
    %508 = arith.mulf %507, %493 : vector<32x128xf32>
    %509 = arith.addf %467, %508 : vector<32x128xf32>
    %c4_229 = arith.constant 4 : index
    %c11_230 = arith.constant 11 : index
    %510 = memref.load %arg3[%c4_229, %c11_230] : memref<8x32xf32, #tpu.memory_space<smem>>
    %511 = vector.broadcast %510 : f32 to vector<32x128xf32>
    %512 = arith.mulf %511, %493 : vector<32x128xf32>
    %513 = arith.addf %471, %512 : vector<32x128xf32>
    %c5_231 = arith.constant 5 : index
    %c11_232 = arith.constant 11 : index
    %514 = memref.load %arg3[%c5_231, %c11_232] : memref<8x32xf32, #tpu.memory_space<smem>>
    %515 = vector.broadcast %514 : f32 to vector<32x128xf32>
    %516 = arith.mulf %515, %493 : vector<32x128xf32>
    %517 = arith.addf %475, %516 : vector<32x128xf32>
    %c6_233 = arith.constant 6 : index
    %c11_234 = arith.constant 11 : index
    %518 = memref.load %arg3[%c6_233, %c11_234] : memref<8x32xf32, #tpu.memory_space<smem>>
    %519 = vector.broadcast %518 : f32 to vector<32x128xf32>
    %520 = arith.mulf %519, %493 : vector<32x128xf32>
    %521 = arith.addf %479, %520 : vector<32x128xf32>
    %c7_235 = arith.constant 7 : index
    %c11_236 = arith.constant 11 : index
    %522 = memref.load %arg3[%c7_235, %c11_236] : memref<8x32xf32, #tpu.memory_space<smem>>
    %523 = vector.broadcast %522 : f32 to vector<32x128xf32>
    %524 = arith.mulf %523, %493 : vector<32x128xf32>
    %525 = arith.addf %483, %524 : vector<32x128xf32>
    %c12 = arith.constant 12 : index
    %526 = memref.load %arg1[%c12] : memref<32xf32, #tpu.memory_space<smem>>
    %527 = vector.broadcast %526 : f32 to vector<32x128xf32>
    %528 = arith.mulf %5, %527 : vector<32x128xf32>
    %c12_237 = arith.constant 12 : index
    %529 = memref.load %arg2[%c12_237] : memref<32xf32, #tpu.memory_space<smem>>
    %530 = vector.broadcast %529 : f32 to vector<32x128xf32>
    %531 = arith.addf %528, %530 : vector<32x128xf32>
    %cst_238 = arith.constant 0.000000e+00 : f32
    %532 = vector.broadcast %cst_238 : f32 to vector<32x128xf32>
    %533 = arith.cmpf ogt, %531, %532 : vector<32x128xf32>
    %cst_239 = arith.constant -0.00999999977 : f32
    %534 = vector.broadcast %cst_239 : f32 to vector<32x128xf32>
    %535 = arith.select %533, %531, %534 : vector<32x128xi1>, vector<32x128xf32>
    %c0_240 = arith.constant 0 : index
    %c12_241 = arith.constant 12 : index
    %536 = memref.load %arg3[%c0_240, %c12_241] : memref<8x32xf32, #tpu.memory_space<smem>>
    %537 = vector.broadcast %536 : f32 to vector<32x128xf32>
    %538 = arith.mulf %537, %535 : vector<32x128xf32>
    %539 = arith.addf %497, %538 : vector<32x128xf32>
    %c1_242 = arith.constant 1 : index
    %c12_243 = arith.constant 12 : index
    %540 = memref.load %arg3[%c1_242, %c12_243] : memref<8x32xf32, #tpu.memory_space<smem>>
    %541 = vector.broadcast %540 : f32 to vector<32x128xf32>
    %542 = arith.mulf %541, %535 : vector<32x128xf32>
    %543 = arith.addf %501, %542 : vector<32x128xf32>
    %c2_244 = arith.constant 2 : index
    %c12_245 = arith.constant 12 : index
    %544 = memref.load %arg3[%c2_244, %c12_245] : memref<8x32xf32, #tpu.memory_space<smem>>
    %545 = vector.broadcast %544 : f32 to vector<32x128xf32>
    %546 = arith.mulf %545, %535 : vector<32x128xf32>
    %547 = arith.addf %505, %546 : vector<32x128xf32>
    %c3_246 = arith.constant 3 : index
    %c12_247 = arith.constant 12 : index
    %548 = memref.load %arg3[%c3_246, %c12_247] : memref<8x32xf32, #tpu.memory_space<smem>>
    %549 = vector.broadcast %548 : f32 to vector<32x128xf32>
    %550 = arith.mulf %549, %535 : vector<32x128xf32>
    %551 = arith.addf %509, %550 : vector<32x128xf32>
    %c4_248 = arith.constant 4 : index
    %c12_249 = arith.constant 12 : index
    %552 = memref.load %arg3[%c4_248, %c12_249] : memref<8x32xf32, #tpu.memory_space<smem>>
    %553 = vector.broadcast %552 : f32 to vector<32x128xf32>
    %554 = arith.mulf %553, %535 : vector<32x128xf32>
    %555 = arith.addf %513, %554 : vector<32x128xf32>
    %c5_250 = arith.constant 5 : index
    %c12_251 = arith.constant 12 : index
    %556 = memref.load %arg3[%c5_250, %c12_251] : memref<8x32xf32, #tpu.memory_space<smem>>
    %557 = vector.broadcast %556 : f32 to vector<32x128xf32>
    %558 = arith.mulf %557, %535 : vector<32x128xf32>
    %559 = arith.addf %517, %558 : vector<32x128xf32>
    %c6_252 = arith.constant 6 : index
    %c12_253 = arith.constant 12 : index
    %560 = memref.load %arg3[%c6_252, %c12_253] : memref<8x32xf32, #tpu.memory_space<smem>>
    %561 = vector.broadcast %560 : f32 to vector<32x128xf32>
    %562 = arith.mulf %561, %535 : vector<32x128xf32>
    %563 = arith.addf %521, %562 : vector<32x128xf32>
    %c7_254 = arith.constant 7 : index
    %c12_255 = arith.constant 12 : index
    %564 = memref.load %arg3[%c7_254, %c12_255] : memref<8x32xf32, #tpu.memory_space<smem>>
    %565 = vector.broadcast %564 : f32 to vector<32x128xf32>
    %566 = arith.mulf %565, %535 : vector<32x128xf32>
    %567 = arith.addf %525, %566 : vector<32x128xf32>
    %c13 = arith.constant 13 : index
    %568 = memref.load %arg1[%c13] : memref<32xf32, #tpu.memory_space<smem>>
    %569 = vector.broadcast %568 : f32 to vector<32x128xf32>
    %570 = arith.mulf %5, %569 : vector<32x128xf32>
    %c13_256 = arith.constant 13 : index
    %571 = memref.load %arg2[%c13_256] : memref<32xf32, #tpu.memory_space<smem>>
    %572 = vector.broadcast %571 : f32 to vector<32x128xf32>
    %573 = arith.addf %570, %572 : vector<32x128xf32>
    %cst_257 = arith.constant 0.000000e+00 : f32
    %574 = vector.broadcast %cst_257 : f32 to vector<32x128xf32>
    %575 = arith.cmpf ogt, %573, %574 : vector<32x128xf32>
    %cst_258 = arith.constant -0.00999999977 : f32
    %576 = vector.broadcast %cst_258 : f32 to vector<32x128xf32>
    %577 = arith.select %575, %573, %576 : vector<32x128xi1>, vector<32x128xf32>
    %c0_259 = arith.constant 0 : index
    %c13_260 = arith.constant 13 : index
    %578 = memref.load %arg3[%c0_259, %c13_260] : memref<8x32xf32, #tpu.memory_space<smem>>
    %579 = vector.broadcast %578 : f32 to vector<32x128xf32>
    %580 = arith.mulf %579, %577 : vector<32x128xf32>
    %581 = arith.addf %539, %580 : vector<32x128xf32>
    %c1_261 = arith.constant 1 : index
    %c13_262 = arith.constant 13 : index
    %582 = memref.load %arg3[%c1_261, %c13_262] : memref<8x32xf32, #tpu.memory_space<smem>>
    %583 = vector.broadcast %582 : f32 to vector<32x128xf32>
    %584 = arith.mulf %583, %577 : vector<32x128xf32>
    %585 = arith.addf %543, %584 : vector<32x128xf32>
    %c2_263 = arith.constant 2 : index
    %c13_264 = arith.constant 13 : index
    %586 = memref.load %arg3[%c2_263, %c13_264] : memref<8x32xf32, #tpu.memory_space<smem>>
    %587 = vector.broadcast %586 : f32 to vector<32x128xf32>
    %588 = arith.mulf %587, %577 : vector<32x128xf32>
    %589 = arith.addf %547, %588 : vector<32x128xf32>
    %c3_265 = arith.constant 3 : index
    %c13_266 = arith.constant 13 : index
    %590 = memref.load %arg3[%c3_265, %c13_266] : memref<8x32xf32, #tpu.memory_space<smem>>
    %591 = vector.broadcast %590 : f32 to vector<32x128xf32>
    %592 = arith.mulf %591, %577 : vector<32x128xf32>
    %593 = arith.addf %551, %592 : vector<32x128xf32>
    %c4_267 = arith.constant 4 : index
    %c13_268 = arith.constant 13 : index
    %594 = memref.load %arg3[%c4_267, %c13_268] : memref<8x32xf32, #tpu.memory_space<smem>>
    %595 = vector.broadcast %594 : f32 to vector<32x128xf32>
    %596 = arith.mulf %595, %577 : vector<32x128xf32>
    %597 = arith.addf %555, %596 : vector<32x128xf32>
    %c5_269 = arith.constant 5 : index
    %c13_270 = arith.constant 13 : index
    %598 = memref.load %arg3[%c5_269, %c13_270] : memref<8x32xf32, #tpu.memory_space<smem>>
    %599 = vector.broadcast %598 : f32 to vector<32x128xf32>
    %600 = arith.mulf %599, %577 : vector<32x128xf32>
    %601 = arith.addf %559, %600 : vector<32x128xf32>
    %c6_271 = arith.constant 6 : index
    %c13_272 = arith.constant 13 : index
    %602 = memref.load %arg3[%c6_271, %c13_272] : memref<8x32xf32, #tpu.memory_space<smem>>
    %603 = vector.broadcast %602 : f32 to vector<32x128xf32>
    %604 = arith.mulf %603, %577 : vector<32x128xf32>
    %605 = arith.addf %563, %604 : vector<32x128xf32>
    %c7_273 = arith.constant 7 : index
    %c13_274 = arith.constant 13 : index
    %606 = memref.load %arg3[%c7_273, %c13_274] : memref<8x32xf32, #tpu.memory_space<smem>>
    %607 = vector.broadcast %606 : f32 to vector<32x128xf32>
    %608 = arith.mulf %607, %577 : vector<32x128xf32>
    %609 = arith.addf %567, %608 : vector<32x128xf32>
    %c14 = arith.constant 14 : index
    %610 = memref.load %arg1[%c14] : memref<32xf32, #tpu.memory_space<smem>>
    %611 = vector.broadcast %610 : f32 to vector<32x128xf32>
    %612 = arith.mulf %5, %611 : vector<32x128xf32>
    %c14_275 = arith.constant 14 : index
    %613 = memref.load %arg2[%c14_275] : memref<32xf32, #tpu.memory_space<smem>>
    %614 = vector.broadcast %613 : f32 to vector<32x128xf32>
    %615 = arith.addf %612, %614 : vector<32x128xf32>
    %cst_276 = arith.constant 0.000000e+00 : f32
    %616 = vector.broadcast %cst_276 : f32 to vector<32x128xf32>
    %617 = arith.cmpf ogt, %615, %616 : vector<32x128xf32>
    %cst_277 = arith.constant -0.00999999977 : f32
    %618 = vector.broadcast %cst_277 : f32 to vector<32x128xf32>
    %619 = arith.select %617, %615, %618 : vector<32x128xi1>, vector<32x128xf32>
    %c0_278 = arith.constant 0 : index
    %c14_279 = arith.constant 14 : index
    %620 = memref.load %arg3[%c0_278, %c14_279] : memref<8x32xf32, #tpu.memory_space<smem>>
    %621 = vector.broadcast %620 : f32 to vector<32x128xf32>
    %622 = arith.mulf %621, %619 : vector<32x128xf32>
    %623 = arith.addf %581, %622 : vector<32x128xf32>
    %c1_280 = arith.constant 1 : index
    %c14_281 = arith.constant 14 : index
    %624 = memref.load %arg3[%c1_280, %c14_281] : memref<8x32xf32, #tpu.memory_space<smem>>
    %625 = vector.broadcast %624 : f32 to vector<32x128xf32>
    %626 = arith.mulf %625, %619 : vector<32x128xf32>
    %627 = arith.addf %585, %626 : vector<32x128xf32>
    %c2_282 = arith.constant 2 : index
    %c14_283 = arith.constant 14 : index
    %628 = memref.load %arg3[%c2_282, %c14_283] : memref<8x32xf32, #tpu.memory_space<smem>>
    %629 = vector.broadcast %628 : f32 to vector<32x128xf32>
    %630 = arith.mulf %629, %619 : vector<32x128xf32>
    %631 = arith.addf %589, %630 : vector<32x128xf32>
    %c3_284 = arith.constant 3 : index
    %c14_285 = arith.constant 14 : index
    %632 = memref.load %arg3[%c3_284, %c14_285] : memref<8x32xf32, #tpu.memory_space<smem>>
    %633 = vector.broadcast %632 : f32 to vector<32x128xf32>
    %634 = arith.mulf %633, %619 : vector<32x128xf32>
    %635 = arith.addf %593, %634 : vector<32x128xf32>
    %c4_286 = arith.constant 4 : index
    %c14_287 = arith.constant 14 : index
    %636 = memref.load %arg3[%c4_286, %c14_287] : memref<8x32xf32, #tpu.memory_space<smem>>
    %637 = vector.broadcast %636 : f32 to vector<32x128xf32>
    %638 = arith.mulf %637, %619 : vector<32x128xf32>
    %639 = arith.addf %597, %638 : vector<32x128xf32>
    %c5_288 = arith.constant 5 : index
    %c14_289 = arith.constant 14 : index
    %640 = memref.load %arg3[%c5_288, %c14_289] : memref<8x32xf32, #tpu.memory_space<smem>>
    %641 = vector.broadcast %640 : f32 to vector<32x128xf32>
    %642 = arith.mulf %641, %619 : vector<32x128xf32>
    %643 = arith.addf %601, %642 : vector<32x128xf32>
    %c6_290 = arith.constant 6 : index
    %c14_291 = arith.constant 14 : index
    %644 = memref.load %arg3[%c6_290, %c14_291] : memref<8x32xf32, #tpu.memory_space<smem>>
    %645 = vector.broadcast %644 : f32 to vector<32x128xf32>
    %646 = arith.mulf %645, %619 : vector<32x128xf32>
    %647 = arith.addf %605, %646 : vector<32x128xf32>
    %c7_292 = arith.constant 7 : index
    %c14_293 = arith.constant 14 : index
    %648 = memref.load %arg3[%c7_292, %c14_293] : memref<8x32xf32, #tpu.memory_space<smem>>
    %649 = vector.broadcast %648 : f32 to vector<32x128xf32>
    %650 = arith.mulf %649, %619 : vector<32x128xf32>
    %651 = arith.addf %609, %650 : vector<32x128xf32>
    %c15 = arith.constant 15 : index
    %652 = memref.load %arg1[%c15] : memref<32xf32, #tpu.memory_space<smem>>
    %653 = vector.broadcast %652 : f32 to vector<32x128xf32>
    %654 = arith.mulf %5, %653 : vector<32x128xf32>
    %c15_294 = arith.constant 15 : index
    %655 = memref.load %arg2[%c15_294] : memref<32xf32, #tpu.memory_space<smem>>
    %656 = vector.broadcast %655 : f32 to vector<32x128xf32>
    %657 = arith.addf %654, %656 : vector<32x128xf32>
    %cst_295 = arith.constant 0.000000e+00 : f32
    %658 = vector.broadcast %cst_295 : f32 to vector<32x128xf32>
    %659 = arith.cmpf ogt, %657, %658 : vector<32x128xf32>
    %cst_296 = arith.constant -0.00999999977 : f32
    %660 = vector.broadcast %cst_296 : f32 to vector<32x128xf32>
    %661 = arith.select %659, %657, %660 : vector<32x128xi1>, vector<32x128xf32>
    %c0_297 = arith.constant 0 : index
    %c15_298 = arith.constant 15 : index
    %662 = memref.load %arg3[%c0_297, %c15_298] : memref<8x32xf32, #tpu.memory_space<smem>>
    %663 = vector.broadcast %662 : f32 to vector<32x128xf32>
    %664 = arith.mulf %663, %661 : vector<32x128xf32>
    %665 = arith.addf %623, %664 : vector<32x128xf32>
    %c1_299 = arith.constant 1 : index
    %c15_300 = arith.constant 15 : index
    %666 = memref.load %arg3[%c1_299, %c15_300] : memref<8x32xf32, #tpu.memory_space<smem>>
    %667 = vector.broadcast %666 : f32 to vector<32x128xf32>
    %668 = arith.mulf %667, %661 : vector<32x128xf32>
    %669 = arith.addf %627, %668 : vector<32x128xf32>
    %c2_301 = arith.constant 2 : index
    %c15_302 = arith.constant 15 : index
    %670 = memref.load %arg3[%c2_301, %c15_302] : memref<8x32xf32, #tpu.memory_space<smem>>
    %671 = vector.broadcast %670 : f32 to vector<32x128xf32>
    %672 = arith.mulf %671, %661 : vector<32x128xf32>
    %673 = arith.addf %631, %672 : vector<32x128xf32>
    %c3_303 = arith.constant 3 : index
    %c15_304 = arith.constant 15 : index
    %674 = memref.load %arg3[%c3_303, %c15_304] : memref<8x32xf32, #tpu.memory_space<smem>>
    %675 = vector.broadcast %674 : f32 to vector<32x128xf32>
    %676 = arith.mulf %675, %661 : vector<32x128xf32>
    %677 = arith.addf %635, %676 : vector<32x128xf32>
    %c4_305 = arith.constant 4 : index
    %c15_306 = arith.constant 15 : index
    %678 = memref.load %arg3[%c4_305, %c15_306] : memref<8x32xf32, #tpu.memory_space<smem>>
    %679 = vector.broadcast %678 : f32 to vector<32x128xf32>
    %680 = arith.mulf %679, %661 : vector<32x128xf32>
    %681 = arith.addf %639, %680 : vector<32x128xf32>
    %c5_307 = arith.constant 5 : index
    %c15_308 = arith.constant 15 : index
    %682 = memref.load %arg3[%c5_307, %c15_308] : memref<8x32xf32, #tpu.memory_space<smem>>
    %683 = vector.broadcast %682 : f32 to vector<32x128xf32>
    %684 = arith.mulf %683, %661 : vector<32x128xf32>
    %685 = arith.addf %643, %684 : vector<32x128xf32>
    %c6_309 = arith.constant 6 : index
    %c15_310 = arith.constant 15 : index
    %686 = memref.load %arg3[%c6_309, %c15_310] : memref<8x32xf32, #tpu.memory_space<smem>>
    %687 = vector.broadcast %686 : f32 to vector<32x128xf32>
    %688 = arith.mulf %687, %661 : vector<32x128xf32>
    %689 = arith.addf %647, %688 : vector<32x128xf32>
    %c7_311 = arith.constant 7 : index
    %c15_312 = arith.constant 15 : index
    %690 = memref.load %arg3[%c7_311, %c15_312] : memref<8x32xf32, #tpu.memory_space<smem>>
    %691 = vector.broadcast %690 : f32 to vector<32x128xf32>
    %692 = arith.mulf %691, %661 : vector<32x128xf32>
    %693 = arith.addf %651, %692 : vector<32x128xf32>
    %c16 = arith.constant 16 : index
    %694 = memref.load %arg1[%c16] : memref<32xf32, #tpu.memory_space<smem>>
    %695 = vector.broadcast %694 : f32 to vector<32x128xf32>
    %696 = arith.mulf %5, %695 : vector<32x128xf32>
    %c16_313 = arith.constant 16 : index
    %697 = memref.load %arg2[%c16_313] : memref<32xf32, #tpu.memory_space<smem>>
    %698 = vector.broadcast %697 : f32 to vector<32x128xf32>
    %699 = arith.addf %696, %698 : vector<32x128xf32>
    %cst_314 = arith.constant 0.000000e+00 : f32
    %700 = vector.broadcast %cst_314 : f32 to vector<32x128xf32>
    %701 = arith.cmpf ogt, %699, %700 : vector<32x128xf32>
    %cst_315 = arith.constant -0.00999999977 : f32
    %702 = vector.broadcast %cst_315 : f32 to vector<32x128xf32>
    %703 = arith.select %701, %699, %702 : vector<32x128xi1>, vector<32x128xf32>
    %c0_316 = arith.constant 0 : index
    %c16_317 = arith.constant 16 : index
    %704 = memref.load %arg3[%c0_316, %c16_317] : memref<8x32xf32, #tpu.memory_space<smem>>
    %705 = vector.broadcast %704 : f32 to vector<32x128xf32>
    %706 = arith.mulf %705, %703 : vector<32x128xf32>
    %707 = arith.addf %665, %706 : vector<32x128xf32>
    %c1_318 = arith.constant 1 : index
    %c16_319 = arith.constant 16 : index
    %708 = memref.load %arg3[%c1_318, %c16_319] : memref<8x32xf32, #tpu.memory_space<smem>>
    %709 = vector.broadcast %708 : f32 to vector<32x128xf32>
    %710 = arith.mulf %709, %703 : vector<32x128xf32>
    %711 = arith.addf %669, %710 : vector<32x128xf32>
    %c2_320 = arith.constant 2 : index
    %c16_321 = arith.constant 16 : index
    %712 = memref.load %arg3[%c2_320, %c16_321] : memref<8x32xf32, #tpu.memory_space<smem>>
    %713 = vector.broadcast %712 : f32 to vector<32x128xf32>
    %714 = arith.mulf %713, %703 : vector<32x128xf32>
    %715 = arith.addf %673, %714 : vector<32x128xf32>
    %c3_322 = arith.constant 3 : index
    %c16_323 = arith.constant 16 : index
    %716 = memref.load %arg3[%c3_322, %c16_323] : memref<8x32xf32, #tpu.memory_space<smem>>
    %717 = vector.broadcast %716 : f32 to vector<32x128xf32>
    %718 = arith.mulf %717, %703 : vector<32x128xf32>
    %719 = arith.addf %677, %718 : vector<32x128xf32>
    %c4_324 = arith.constant 4 : index
    %c16_325 = arith.constant 16 : index
    %720 = memref.load %arg3[%c4_324, %c16_325] : memref<8x32xf32, #tpu.memory_space<smem>>
    %721 = vector.broadcast %720 : f32 to vector<32x128xf32>
    %722 = arith.mulf %721, %703 : vector<32x128xf32>
    %723 = arith.addf %681, %722 : vector<32x128xf32>
    %c5_326 = arith.constant 5 : index
    %c16_327 = arith.constant 16 : index
    %724 = memref.load %arg3[%c5_326, %c16_327] : memref<8x32xf32, #tpu.memory_space<smem>>
    %725 = vector.broadcast %724 : f32 to vector<32x128xf32>
    %726 = arith.mulf %725, %703 : vector<32x128xf32>
    %727 = arith.addf %685, %726 : vector<32x128xf32>
    %c6_328 = arith.constant 6 : index
    %c16_329 = arith.constant 16 : index
    %728 = memref.load %arg3[%c6_328, %c16_329] : memref<8x32xf32, #tpu.memory_space<smem>>
    %729 = vector.broadcast %728 : f32 to vector<32x128xf32>
    %730 = arith.mulf %729, %703 : vector<32x128xf32>
    %731 = arith.addf %689, %730 : vector<32x128xf32>
    %c7_330 = arith.constant 7 : index
    %c16_331 = arith.constant 16 : index
    %732 = memref.load %arg3[%c7_330, %c16_331] : memref<8x32xf32, #tpu.memory_space<smem>>
    %733 = vector.broadcast %732 : f32 to vector<32x128xf32>
    %734 = arith.mulf %733, %703 : vector<32x128xf32>
    %735 = arith.addf %693, %734 : vector<32x128xf32>
    %c17 = arith.constant 17 : index
    %736 = memref.load %arg1[%c17] : memref<32xf32, #tpu.memory_space<smem>>
    %737 = vector.broadcast %736 : f32 to vector<32x128xf32>
    %738 = arith.mulf %5, %737 : vector<32x128xf32>
    %c17_332 = arith.constant 17 : index
    %739 = memref.load %arg2[%c17_332] : memref<32xf32, #tpu.memory_space<smem>>
    %740 = vector.broadcast %739 : f32 to vector<32x128xf32>
    %741 = arith.addf %738, %740 : vector<32x128xf32>
    %cst_333 = arith.constant 0.000000e+00 : f32
    %742 = vector.broadcast %cst_333 : f32 to vector<32x128xf32>
    %743 = arith.cmpf ogt, %741, %742 : vector<32x128xf32>
    %cst_334 = arith.constant -0.00999999977 : f32
    %744 = vector.broadcast %cst_334 : f32 to vector<32x128xf32>
    %745 = arith.select %743, %741, %744 : vector<32x128xi1>, vector<32x128xf32>
    %c0_335 = arith.constant 0 : index
    %c17_336 = arith.constant 17 : index
    %746 = memref.load %arg3[%c0_335, %c17_336] : memref<8x32xf32, #tpu.memory_space<smem>>
    %747 = vector.broadcast %746 : f32 to vector<32x128xf32>
    %748 = arith.mulf %747, %745 : vector<32x128xf32>
    %749 = arith.addf %707, %748 : vector<32x128xf32>
    %c1_337 = arith.constant 1 : index
    %c17_338 = arith.constant 17 : index
    %750 = memref.load %arg3[%c1_337, %c17_338] : memref<8x32xf32, #tpu.memory_space<smem>>
    %751 = vector.broadcast %750 : f32 to vector<32x128xf32>
    %752 = arith.mulf %751, %745 : vector<32x128xf32>
    %753 = arith.addf %711, %752 : vector<32x128xf32>
    %c2_339 = arith.constant 2 : index
    %c17_340 = arith.constant 17 : index
    %754 = memref.load %arg3[%c2_339, %c17_340] : memref<8x32xf32, #tpu.memory_space<smem>>
    %755 = vector.broadcast %754 : f32 to vector<32x128xf32>
    %756 = arith.mulf %755, %745 : vector<32x128xf32>
    %757 = arith.addf %715, %756 : vector<32x128xf32>
    %c3_341 = arith.constant 3 : index
    %c17_342 = arith.constant 17 : index
    %758 = memref.load %arg3[%c3_341, %c17_342] : memref<8x32xf32, #tpu.memory_space<smem>>
    %759 = vector.broadcast %758 : f32 to vector<32x128xf32>
    %760 = arith.mulf %759, %745 : vector<32x128xf32>
    %761 = arith.addf %719, %760 : vector<32x128xf32>
    %c4_343 = arith.constant 4 : index
    %c17_344 = arith.constant 17 : index
    %762 = memref.load %arg3[%c4_343, %c17_344] : memref<8x32xf32, #tpu.memory_space<smem>>
    %763 = vector.broadcast %762 : f32 to vector<32x128xf32>
    %764 = arith.mulf %763, %745 : vector<32x128xf32>
    %765 = arith.addf %723, %764 : vector<32x128xf32>
    %c5_345 = arith.constant 5 : index
    %c17_346 = arith.constant 17 : index
    %766 = memref.load %arg3[%c5_345, %c17_346] : memref<8x32xf32, #tpu.memory_space<smem>>
    %767 = vector.broadcast %766 : f32 to vector<32x128xf32>
    %768 = arith.mulf %767, %745 : vector<32x128xf32>
    %769 = arith.addf %727, %768 : vector<32x128xf32>
    %c6_347 = arith.constant 6 : index
    %c17_348 = arith.constant 17 : index
    %770 = memref.load %arg3[%c6_347, %c17_348] : memref<8x32xf32, #tpu.memory_space<smem>>
    %771 = vector.broadcast %770 : f32 to vector<32x128xf32>
    %772 = arith.mulf %771, %745 : vector<32x128xf32>
    %773 = arith.addf %731, %772 : vector<32x128xf32>
    %c7_349 = arith.constant 7 : index
    %c17_350 = arith.constant 17 : index
    %774 = memref.load %arg3[%c7_349, %c17_350] : memref<8x32xf32, #tpu.memory_space<smem>>
    %775 = vector.broadcast %774 : f32 to vector<32x128xf32>
    %776 = arith.mulf %775, %745 : vector<32x128xf32>
    %777 = arith.addf %735, %776 : vector<32x128xf32>
    %c18 = arith.constant 18 : index
    %778 = memref.load %arg1[%c18] : memref<32xf32, #tpu.memory_space<smem>>
    %779 = vector.broadcast %778 : f32 to vector<32x128xf32>
    %780 = arith.mulf %5, %779 : vector<32x128xf32>
    %c18_351 = arith.constant 18 : index
    %781 = memref.load %arg2[%c18_351] : memref<32xf32, #tpu.memory_space<smem>>
    %782 = vector.broadcast %781 : f32 to vector<32x128xf32>
    %783 = arith.addf %780, %782 : vector<32x128xf32>
    %cst_352 = arith.constant 0.000000e+00 : f32
    %784 = vector.broadcast %cst_352 : f32 to vector<32x128xf32>
    %785 = arith.cmpf ogt, %783, %784 : vector<32x128xf32>
    %cst_353 = arith.constant -0.00999999977 : f32
    %786 = vector.broadcast %cst_353 : f32 to vector<32x128xf32>
    %787 = arith.select %785, %783, %786 : vector<32x128xi1>, vector<32x128xf32>
    %c0_354 = arith.constant 0 : index
    %c18_355 = arith.constant 18 : index
    %788 = memref.load %arg3[%c0_354, %c18_355] : memref<8x32xf32, #tpu.memory_space<smem>>
    %789 = vector.broadcast %788 : f32 to vector<32x128xf32>
    %790 = arith.mulf %789, %787 : vector<32x128xf32>
    %791 = arith.addf %749, %790 : vector<32x128xf32>
    %c1_356 = arith.constant 1 : index
    %c18_357 = arith.constant 18 : index
    %792 = memref.load %arg3[%c1_356, %c18_357] : memref<8x32xf32, #tpu.memory_space<smem>>
    %793 = vector.broadcast %792 : f32 to vector<32x128xf32>
    %794 = arith.mulf %793, %787 : vector<32x128xf32>
    %795 = arith.addf %753, %794 : vector<32x128xf32>
    %c2_358 = arith.constant 2 : index
    %c18_359 = arith.constant 18 : index
    %796 = memref.load %arg3[%c2_358, %c18_359] : memref<8x32xf32, #tpu.memory_space<smem>>
    %797 = vector.broadcast %796 : f32 to vector<32x128xf32>
    %798 = arith.mulf %797, %787 : vector<32x128xf32>
    %799 = arith.addf %757, %798 : vector<32x128xf32>
    %c3_360 = arith.constant 3 : index
    %c18_361 = arith.constant 18 : index
    %800 = memref.load %arg3[%c3_360, %c18_361] : memref<8x32xf32, #tpu.memory_space<smem>>
    %801 = vector.broadcast %800 : f32 to vector<32x128xf32>
    %802 = arith.mulf %801, %787 : vector<32x128xf32>
    %803 = arith.addf %761, %802 : vector<32x128xf32>
    %c4_362 = arith.constant 4 : index
    %c18_363 = arith.constant 18 : index
    %804 = memref.load %arg3[%c4_362, %c18_363] : memref<8x32xf32, #tpu.memory_space<smem>>
    %805 = vector.broadcast %804 : f32 to vector<32x128xf32>
    %806 = arith.mulf %805, %787 : vector<32x128xf32>
    %807 = arith.addf %765, %806 : vector<32x128xf32>
    %c5_364 = arith.constant 5 : index
    %c18_365 = arith.constant 18 : index
    %808 = memref.load %arg3[%c5_364, %c18_365] : memref<8x32xf32, #tpu.memory_space<smem>>
    %809 = vector.broadcast %808 : f32 to vector<32x128xf32>
    %810 = arith.mulf %809, %787 : vector<32x128xf32>
    %811 = arith.addf %769, %810 : vector<32x128xf32>
    %c6_366 = arith.constant 6 : index
    %c18_367 = arith.constant 18 : index
    %812 = memref.load %arg3[%c6_366, %c18_367] : memref<8x32xf32, #tpu.memory_space<smem>>
    %813 = vector.broadcast %812 : f32 to vector<32x128xf32>
    %814 = arith.mulf %813, %787 : vector<32x128xf32>
    %815 = arith.addf %773, %814 : vector<32x128xf32>
    %c7_368 = arith.constant 7 : index
    %c18_369 = arith.constant 18 : index
    %816 = memref.load %arg3[%c7_368, %c18_369] : memref<8x32xf32, #tpu.memory_space<smem>>
    %817 = vector.broadcast %816 : f32 to vector<32x128xf32>
    %818 = arith.mulf %817, %787 : vector<32x128xf32>
    %819 = arith.addf %777, %818 : vector<32x128xf32>
    %c19 = arith.constant 19 : index
    %820 = memref.load %arg1[%c19] : memref<32xf32, #tpu.memory_space<smem>>
    %821 = vector.broadcast %820 : f32 to vector<32x128xf32>
    %822 = arith.mulf %5, %821 : vector<32x128xf32>
    %c19_370 = arith.constant 19 : index
    %823 = memref.load %arg2[%c19_370] : memref<32xf32, #tpu.memory_space<smem>>
    %824 = vector.broadcast %823 : f32 to vector<32x128xf32>
    %825 = arith.addf %822, %824 : vector<32x128xf32>
    %cst_371 = arith.constant 0.000000e+00 : f32
    %826 = vector.broadcast %cst_371 : f32 to vector<32x128xf32>
    %827 = arith.cmpf ogt, %825, %826 : vector<32x128xf32>
    %cst_372 = arith.constant -0.00999999977 : f32
    %828 = vector.broadcast %cst_372 : f32 to vector<32x128xf32>
    %829 = arith.select %827, %825, %828 : vector<32x128xi1>, vector<32x128xf32>
    %c0_373 = arith.constant 0 : index
    %c19_374 = arith.constant 19 : index
    %830 = memref.load %arg3[%c0_373, %c19_374] : memref<8x32xf32, #tpu.memory_space<smem>>
    %831 = vector.broadcast %830 : f32 to vector<32x128xf32>
    %832 = arith.mulf %831, %829 : vector<32x128xf32>
    %833 = arith.addf %791, %832 : vector<32x128xf32>
    %c1_375 = arith.constant 1 : index
    %c19_376 = arith.constant 19 : index
    %834 = memref.load %arg3[%c1_375, %c19_376] : memref<8x32xf32, #tpu.memory_space<smem>>
    %835 = vector.broadcast %834 : f32 to vector<32x128xf32>
    %836 = arith.mulf %835, %829 : vector<32x128xf32>
    %837 = arith.addf %795, %836 : vector<32x128xf32>
    %c2_377 = arith.constant 2 : index
    %c19_378 = arith.constant 19 : index
    %838 = memref.load %arg3[%c2_377, %c19_378] : memref<8x32xf32, #tpu.memory_space<smem>>
    %839 = vector.broadcast %838 : f32 to vector<32x128xf32>
    %840 = arith.mulf %839, %829 : vector<32x128xf32>
    %841 = arith.addf %799, %840 : vector<32x128xf32>
    %c3_379 = arith.constant 3 : index
    %c19_380 = arith.constant 19 : index
    %842 = memref.load %arg3[%c3_379, %c19_380] : memref<8x32xf32, #tpu.memory_space<smem>>
    %843 = vector.broadcast %842 : f32 to vector<32x128xf32>
    %844 = arith.mulf %843, %829 : vector<32x128xf32>
    %845 = arith.addf %803, %844 : vector<32x128xf32>
    %c4_381 = arith.constant 4 : index
    %c19_382 = arith.constant 19 : index
    %846 = memref.load %arg3[%c4_381, %c19_382] : memref<8x32xf32, #tpu.memory_space<smem>>
    %847 = vector.broadcast %846 : f32 to vector<32x128xf32>
    %848 = arith.mulf %847, %829 : vector<32x128xf32>
    %849 = arith.addf %807, %848 : vector<32x128xf32>
    %c5_383 = arith.constant 5 : index
    %c19_384 = arith.constant 19 : index
    %850 = memref.load %arg3[%c5_383, %c19_384] : memref<8x32xf32, #tpu.memory_space<smem>>
    %851 = vector.broadcast %850 : f32 to vector<32x128xf32>
    %852 = arith.mulf %851, %829 : vector<32x128xf32>
    %853 = arith.addf %811, %852 : vector<32x128xf32>
    %c6_385 = arith.constant 6 : index
    %c19_386 = arith.constant 19 : index
    %854 = memref.load %arg3[%c6_385, %c19_386] : memref<8x32xf32, #tpu.memory_space<smem>>
    %855 = vector.broadcast %854 : f32 to vector<32x128xf32>
    %856 = arith.mulf %855, %829 : vector<32x128xf32>
    %857 = arith.addf %815, %856 : vector<32x128xf32>
    %c7_387 = arith.constant 7 : index
    %c19_388 = arith.constant 19 : index
    %858 = memref.load %arg3[%c7_387, %c19_388] : memref<8x32xf32, #tpu.memory_space<smem>>
    %859 = vector.broadcast %858 : f32 to vector<32x128xf32>
    %860 = arith.mulf %859, %829 : vector<32x128xf32>
    %861 = arith.addf %819, %860 : vector<32x128xf32>
    %c20 = arith.constant 20 : index
    %862 = memref.load %arg1[%c20] : memref<32xf32, #tpu.memory_space<smem>>
    %863 = vector.broadcast %862 : f32 to vector<32x128xf32>
    %864 = arith.mulf %5, %863 : vector<32x128xf32>
    %c20_389 = arith.constant 20 : index
    %865 = memref.load %arg2[%c20_389] : memref<32xf32, #tpu.memory_space<smem>>
    %866 = vector.broadcast %865 : f32 to vector<32x128xf32>
    %867 = arith.addf %864, %866 : vector<32x128xf32>
    %cst_390 = arith.constant 0.000000e+00 : f32
    %868 = vector.broadcast %cst_390 : f32 to vector<32x128xf32>
    %869 = arith.cmpf ogt, %867, %868 : vector<32x128xf32>
    %cst_391 = arith.constant -0.00999999977 : f32
    %870 = vector.broadcast %cst_391 : f32 to vector<32x128xf32>
    %871 = arith.select %869, %867, %870 : vector<32x128xi1>, vector<32x128xf32>
    %c0_392 = arith.constant 0 : index
    %c20_393 = arith.constant 20 : index
    %872 = memref.load %arg3[%c0_392, %c20_393] : memref<8x32xf32, #tpu.memory_space<smem>>
    %873 = vector.broadcast %872 : f32 to vector<32x128xf32>
    %874 = arith.mulf %873, %871 : vector<32x128xf32>
    %875 = arith.addf %833, %874 : vector<32x128xf32>
    %c1_394 = arith.constant 1 : index
    %c20_395 = arith.constant 20 : index
    %876 = memref.load %arg3[%c1_394, %c20_395] : memref<8x32xf32, #tpu.memory_space<smem>>
    %877 = vector.broadcast %876 : f32 to vector<32x128xf32>
    %878 = arith.mulf %877, %871 : vector<32x128xf32>
    %879 = arith.addf %837, %878 : vector<32x128xf32>
    %c2_396 = arith.constant 2 : index
    %c20_397 = arith.constant 20 : index
    %880 = memref.load %arg3[%c2_396, %c20_397] : memref<8x32xf32, #tpu.memory_space<smem>>
    %881 = vector.broadcast %880 : f32 to vector<32x128xf32>
    %882 = arith.mulf %881, %871 : vector<32x128xf32>
    %883 = arith.addf %841, %882 : vector<32x128xf32>
    %c3_398 = arith.constant 3 : index
    %c20_399 = arith.constant 20 : index
    %884 = memref.load %arg3[%c3_398, %c20_399] : memref<8x32xf32, #tpu.memory_space<smem>>
    %885 = vector.broadcast %884 : f32 to vector<32x128xf32>
    %886 = arith.mulf %885, %871 : vector<32x128xf32>
    %887 = arith.addf %845, %886 : vector<32x128xf32>
    %c4_400 = arith.constant 4 : index
    %c20_401 = arith.constant 20 : index
    %888 = memref.load %arg3[%c4_400, %c20_401] : memref<8x32xf32, #tpu.memory_space<smem>>
    %889 = vector.broadcast %888 : f32 to vector<32x128xf32>
    %890 = arith.mulf %889, %871 : vector<32x128xf32>
    %891 = arith.addf %849, %890 : vector<32x128xf32>
    %c5_402 = arith.constant 5 : index
    %c20_403 = arith.constant 20 : index
    %892 = memref.load %arg3[%c5_402, %c20_403] : memref<8x32xf32, #tpu.memory_space<smem>>
    %893 = vector.broadcast %892 : f32 to vector<32x128xf32>
    %894 = arith.mulf %893, %871 : vector<32x128xf32>
    %895 = arith.addf %853, %894 : vector<32x128xf32>
    %c6_404 = arith.constant 6 : index
    %c20_405 = arith.constant 20 : index
    %896 = memref.load %arg3[%c6_404, %c20_405] : memref<8x32xf32, #tpu.memory_space<smem>>
    %897 = vector.broadcast %896 : f32 to vector<32x128xf32>
    %898 = arith.mulf %897, %871 : vector<32x128xf32>
    %899 = arith.addf %857, %898 : vector<32x128xf32>
    %c7_406 = arith.constant 7 : index
    %c20_407 = arith.constant 20 : index
    %900 = memref.load %arg3[%c7_406, %c20_407] : memref<8x32xf32, #tpu.memory_space<smem>>
    %901 = vector.broadcast %900 : f32 to vector<32x128xf32>
    %902 = arith.mulf %901, %871 : vector<32x128xf32>
    %903 = arith.addf %861, %902 : vector<32x128xf32>
    %c21 = arith.constant 21 : index
    %904 = memref.load %arg1[%c21] : memref<32xf32, #tpu.memory_space<smem>>
    %905 = vector.broadcast %904 : f32 to vector<32x128xf32>
    %906 = arith.mulf %5, %905 : vector<32x128xf32>
    %c21_408 = arith.constant 21 : index
    %907 = memref.load %arg2[%c21_408] : memref<32xf32, #tpu.memory_space<smem>>
    %908 = vector.broadcast %907 : f32 to vector<32x128xf32>
    %909 = arith.addf %906, %908 : vector<32x128xf32>
    %cst_409 = arith.constant 0.000000e+00 : f32
    %910 = vector.broadcast %cst_409 : f32 to vector<32x128xf32>
    %911 = arith.cmpf ogt, %909, %910 : vector<32x128xf32>
    %cst_410 = arith.constant -0.00999999977 : f32
    %912 = vector.broadcast %cst_410 : f32 to vector<32x128xf32>
    %913 = arith.select %911, %909, %912 : vector<32x128xi1>, vector<32x128xf32>
    %c0_411 = arith.constant 0 : index
    %c21_412 = arith.constant 21 : index
    %914 = memref.load %arg3[%c0_411, %c21_412] : memref<8x32xf32, #tpu.memory_space<smem>>
    %915 = vector.broadcast %914 : f32 to vector<32x128xf32>
    %916 = arith.mulf %915, %913 : vector<32x128xf32>
    %917 = arith.addf %875, %916 : vector<32x128xf32>
    %c1_413 = arith.constant 1 : index
    %c21_414 = arith.constant 21 : index
    %918 = memref.load %arg3[%c1_413, %c21_414] : memref<8x32xf32, #tpu.memory_space<smem>>
    %919 = vector.broadcast %918 : f32 to vector<32x128xf32>
    %920 = arith.mulf %919, %913 : vector<32x128xf32>
    %921 = arith.addf %879, %920 : vector<32x128xf32>
    %c2_415 = arith.constant 2 : index
    %c21_416 = arith.constant 21 : index
    %922 = memref.load %arg3[%c2_415, %c21_416] : memref<8x32xf32, #tpu.memory_space<smem>>
    %923 = vector.broadcast %922 : f32 to vector<32x128xf32>
    %924 = arith.mulf %923, %913 : vector<32x128xf32>
    %925 = arith.addf %883, %924 : vector<32x128xf32>
    %c3_417 = arith.constant 3 : index
    %c21_418 = arith.constant 21 : index
    %926 = memref.load %arg3[%c3_417, %c21_418] : memref<8x32xf32, #tpu.memory_space<smem>>
    %927 = vector.broadcast %926 : f32 to vector<32x128xf32>
    %928 = arith.mulf %927, %913 : vector<32x128xf32>
    %929 = arith.addf %887, %928 : vector<32x128xf32>
    %c4_419 = arith.constant 4 : index
    %c21_420 = arith.constant 21 : index
    %930 = memref.load %arg3[%c4_419, %c21_420] : memref<8x32xf32, #tpu.memory_space<smem>>
    %931 = vector.broadcast %930 : f32 to vector<32x128xf32>
    %932 = arith.mulf %931, %913 : vector<32x128xf32>
    %933 = arith.addf %891, %932 : vector<32x128xf32>
    %c5_421 = arith.constant 5 : index
    %c21_422 = arith.constant 21 : index
    %934 = memref.load %arg3[%c5_421, %c21_422] : memref<8x32xf32, #tpu.memory_space<smem>>
    %935 = vector.broadcast %934 : f32 to vector<32x128xf32>
    %936 = arith.mulf %935, %913 : vector<32x128xf32>
    %937 = arith.addf %895, %936 : vector<32x128xf32>
    %c6_423 = arith.constant 6 : index
    %c21_424 = arith.constant 21 : index
    %938 = memref.load %arg3[%c6_423, %c21_424] : memref<8x32xf32, #tpu.memory_space<smem>>
    %939 = vector.broadcast %938 : f32 to vector<32x128xf32>
    %940 = arith.mulf %939, %913 : vector<32x128xf32>
    %941 = arith.addf %899, %940 : vector<32x128xf32>
    %c7_425 = arith.constant 7 : index
    %c21_426 = arith.constant 21 : index
    %942 = memref.load %arg3[%c7_425, %c21_426] : memref<8x32xf32, #tpu.memory_space<smem>>
    %943 = vector.broadcast %942 : f32 to vector<32x128xf32>
    %944 = arith.mulf %943, %913 : vector<32x128xf32>
    %945 = arith.addf %903, %944 : vector<32x128xf32>
    %c22 = arith.constant 22 : index
    %946 = memref.load %arg1[%c22] : memref<32xf32, #tpu.memory_space<smem>>
    %947 = vector.broadcast %946 : f32 to vector<32x128xf32>
    %948 = arith.mulf %5, %947 : vector<32x128xf32>
    %c22_427 = arith.constant 22 : index
    %949 = memref.load %arg2[%c22_427] : memref<32xf32, #tpu.memory_space<smem>>
    %950 = vector.broadcast %949 : f32 to vector<32x128xf32>
    %951 = arith.addf %948, %950 : vector<32x128xf32>
    %cst_428 = arith.constant 0.000000e+00 : f32
    %952 = vector.broadcast %cst_428 : f32 to vector<32x128xf32>
    %953 = arith.cmpf ogt, %951, %952 : vector<32x128xf32>
    %cst_429 = arith.constant -0.00999999977 : f32
    %954 = vector.broadcast %cst_429 : f32 to vector<32x128xf32>
    %955 = arith.select %953, %951, %954 : vector<32x128xi1>, vector<32x128xf32>
    %c0_430 = arith.constant 0 : index
    %c22_431 = arith.constant 22 : index
    %956 = memref.load %arg3[%c0_430, %c22_431] : memref<8x32xf32, #tpu.memory_space<smem>>
    %957 = vector.broadcast %956 : f32 to vector<32x128xf32>
    %958 = arith.mulf %957, %955 : vector<32x128xf32>
    %959 = arith.addf %917, %958 : vector<32x128xf32>
    %c1_432 = arith.constant 1 : index
    %c22_433 = arith.constant 22 : index
    %960 = memref.load %arg3[%c1_432, %c22_433] : memref<8x32xf32, #tpu.memory_space<smem>>
    %961 = vector.broadcast %960 : f32 to vector<32x128xf32>
    %962 = arith.mulf %961, %955 : vector<32x128xf32>
    %963 = arith.addf %921, %962 : vector<32x128xf32>
    %c2_434 = arith.constant 2 : index
    %c22_435 = arith.constant 22 : index
    %964 = memref.load %arg3[%c2_434, %c22_435] : memref<8x32xf32, #tpu.memory_space<smem>>
    %965 = vector.broadcast %964 : f32 to vector<32x128xf32>
    %966 = arith.mulf %965, %955 : vector<32x128xf32>
    %967 = arith.addf %925, %966 : vector<32x128xf32>
    %c3_436 = arith.constant 3 : index
    %c22_437 = arith.constant 22 : index
    %968 = memref.load %arg3[%c3_436, %c22_437] : memref<8x32xf32, #tpu.memory_space<smem>>
    %969 = vector.broadcast %968 : f32 to vector<32x128xf32>
    %970 = arith.mulf %969, %955 : vector<32x128xf32>
    %971 = arith.addf %929, %970 : vector<32x128xf32>
    %c4_438 = arith.constant 4 : index
    %c22_439 = arith.constant 22 : index
    %972 = memref.load %arg3[%c4_438, %c22_439] : memref<8x32xf32, #tpu.memory_space<smem>>
    %973 = vector.broadcast %972 : f32 to vector<32x128xf32>
    %974 = arith.mulf %973, %955 : vector<32x128xf32>
    %975 = arith.addf %933, %974 : vector<32x128xf32>
    %c5_440 = arith.constant 5 : index
    %c22_441 = arith.constant 22 : index
    %976 = memref.load %arg3[%c5_440, %c22_441] : memref<8x32xf32, #tpu.memory_space<smem>>
    %977 = vector.broadcast %976 : f32 to vector<32x128xf32>
    %978 = arith.mulf %977, %955 : vector<32x128xf32>
    %979 = arith.addf %937, %978 : vector<32x128xf32>
    %c6_442 = arith.constant 6 : index
    %c22_443 = arith.constant 22 : index
    %980 = memref.load %arg3[%c6_442, %c22_443] : memref<8x32xf32, #tpu.memory_space<smem>>
    %981 = vector.broadcast %980 : f32 to vector<32x128xf32>
    %982 = arith.mulf %981, %955 : vector<32x128xf32>
    %983 = arith.addf %941, %982 : vector<32x128xf32>
    %c7_444 = arith.constant 7 : index
    %c22_445 = arith.constant 22 : index
    %984 = memref.load %arg3[%c7_444, %c22_445] : memref<8x32xf32, #tpu.memory_space<smem>>
    %985 = vector.broadcast %984 : f32 to vector<32x128xf32>
    %986 = arith.mulf %985, %955 : vector<32x128xf32>
    %987 = arith.addf %945, %986 : vector<32x128xf32>
    %c23 = arith.constant 23 : index
    %988 = memref.load %arg1[%c23] : memref<32xf32, #tpu.memory_space<smem>>
    %989 = vector.broadcast %988 : f32 to vector<32x128xf32>
    %990 = arith.mulf %5, %989 : vector<32x128xf32>
    %c23_446 = arith.constant 23 : index
    %991 = memref.load %arg2[%c23_446] : memref<32xf32, #tpu.memory_space<smem>>
    %992 = vector.broadcast %991 : f32 to vector<32x128xf32>
    %993 = arith.addf %990, %992 : vector<32x128xf32>
    %cst_447 = arith.constant 0.000000e+00 : f32
    %994 = vector.broadcast %cst_447 : f32 to vector<32x128xf32>
    %995 = arith.cmpf ogt, %993, %994 : vector<32x128xf32>
    %cst_448 = arith.constant -0.00999999977 : f32
    %996 = vector.broadcast %cst_448 : f32 to vector<32x128xf32>
    %997 = arith.select %995, %993, %996 : vector<32x128xi1>, vector<32x128xf32>
    %c0_449 = arith.constant 0 : index
    %c23_450 = arith.constant 23 : index
    %998 = memref.load %arg3[%c0_449, %c23_450] : memref<8x32xf32, #tpu.memory_space<smem>>
    %999 = vector.broadcast %998 : f32 to vector<32x128xf32>
    %1000 = arith.mulf %999, %997 : vector<32x128xf32>
    %1001 = arith.addf %959, %1000 : vector<32x128xf32>
    %c1_451 = arith.constant 1 : index
    %c23_452 = arith.constant 23 : index
    %1002 = memref.load %arg3[%c1_451, %c23_452] : memref<8x32xf32, #tpu.memory_space<smem>>
    %1003 = vector.broadcast %1002 : f32 to vector<32x128xf32>
    %1004 = arith.mulf %1003, %997 : vector<32x128xf32>
    %1005 = arith.addf %963, %1004 : vector<32x128xf32>
    %c2_453 = arith.constant 2 : index
    %c23_454 = arith.constant 23 : index
    %1006 = memref.load %arg3[%c2_453, %c23_454] : memref<8x32xf32, #tpu.memory_space<smem>>
    %1007 = vector.broadcast %1006 : f32 to vector<32x128xf32>
    %1008 = arith.mulf %1007, %997 : vector<32x128xf32>
    %1009 = arith.addf %967, %1008 : vector<32x128xf32>
    %c3_455 = arith.constant 3 : index
    %c23_456 = arith.constant 23 : index
    %1010 = memref.load %arg3[%c3_455, %c23_456] : memref<8x32xf32, #tpu.memory_space<smem>>
    %1011 = vector.broadcast %1010 : f32 to vector<32x128xf32>
    %1012 = arith.mulf %1011, %997 : vector<32x128xf32>
    %1013 = arith.addf %971, %1012 : vector<32x128xf32>
    %c4_457 = arith.constant 4 : index
    %c23_458 = arith.constant 23 : index
    %1014 = memref.load %arg3[%c4_457, %c23_458] : memref<8x32xf32, #tpu.memory_space<smem>>
    %1015 = vector.broadcast %1014 : f32 to vector<32x128xf32>
    %1016 = arith.mulf %1015, %997 : vector<32x128xf32>
    %1017 = arith.addf %975, %1016 : vector<32x128xf32>
    %c5_459 = arith.constant 5 : index
    %c23_460 = arith.constant 23 : index
    %1018 = memref.load %arg3[%c5_459, %c23_460] : memref<8x32xf32, #tpu.memory_space<smem>>
    %1019 = vector.broadcast %1018 : f32 to vector<32x128xf32>
    %1020 = arith.mulf %1019, %997 : vector<32x128xf32>
    %1021 = arith.addf %979, %1020 : vector<32x128xf32>
    %c6_461 = arith.constant 6 : index
    %c23_462 = arith.constant 23 : index
    %1022 = memref.load %arg3[%c6_461, %c23_462] : memref<8x32xf32, #tpu.memory_space<smem>>
    %1023 = vector.broadcast %1022 : f32 to vector<32x128xf32>
    %1024 = arith.mulf %1023, %997 : vector<32x128xf32>
    %1025 = arith.addf %983, %1024 : vector<32x128xf32>
    %c7_463 = arith.constant 7 : index
    %c23_464 = arith.constant 23 : index
    %1026 = memref.load %arg3[%c7_463, %c23_464] : memref<8x32xf32, #tpu.memory_space<smem>>
    %1027 = vector.broadcast %1026 : f32 to vector<32x128xf32>
    %1028 = arith.mulf %1027, %997 : vector<32x128xf32>
    %1029 = arith.addf %987, %1028 : vector<32x128xf32>
    %c24 = arith.constant 24 : index
    %1030 = memref.load %arg1[%c24] : memref<32xf32, #tpu.memory_space<smem>>
    %1031 = vector.broadcast %1030 : f32 to vector<32x128xf32>
    %1032 = arith.mulf %5, %1031 : vector<32x128xf32>
    %c24_465 = arith.constant 24 : index
    %1033 = memref.load %arg2[%c24_465] : memref<32xf32, #tpu.memory_space<smem>>
    %1034 = vector.broadcast %1033 : f32 to vector<32x128xf32>
    %1035 = arith.addf %1032, %1034 : vector<32x128xf32>
    %cst_466 = arith.constant 0.000000e+00 : f32
    %1036 = vector.broadcast %cst_466 : f32 to vector<32x128xf32>
    %1037 = arith.cmpf ogt, %1035, %1036 : vector<32x128xf32>
    %cst_467 = arith.constant -0.00999999977 : f32
    %1038 = vector.broadcast %cst_467 : f32 to vector<32x128xf32>
    %1039 = arith.select %1037, %1035, %1038 : vector<32x128xi1>, vector<32x128xf32>
    %c0_468 = arith.constant 0 : index
    %c24_469 = arith.constant 24 : index
    %1040 = memref.load %arg3[%c0_468, %c24_469] : memref<8x32xf32, #tpu.memory_space<smem>>
    %1041 = vector.broadcast %1040 : f32 to vector<32x128xf32>
    %1042 = arith.mulf %1041, %1039 : vector<32x128xf32>
    %1043 = arith.addf %1001, %1042 : vector<32x128xf32>
    %c1_470 = arith.constant 1 : index
    %c24_471 = arith.constant 24 : index
    %1044 = memref.load %arg3[%c1_470, %c24_471] : memref<8x32xf32, #tpu.memory_space<smem>>
    %1045 = vector.broadcast %1044 : f32 to vector<32x128xf32>
    %1046 = arith.mulf %1045, %1039 : vector<32x128xf32>
    %1047 = arith.addf %1005, %1046 : vector<32x128xf32>
    %c2_472 = arith.constant 2 : index
    %c24_473 = arith.constant 24 : index
    %1048 = memref.load %arg3[%c2_472, %c24_473] : memref<8x32xf32, #tpu.memory_space<smem>>
    %1049 = vector.broadcast %1048 : f32 to vector<32x128xf32>
    %1050 = arith.mulf %1049, %1039 : vector<32x128xf32>
    %1051 = arith.addf %1009, %1050 : vector<32x128xf32>
    %c3_474 = arith.constant 3 : index
    %c24_475 = arith.constant 24 : index
    %1052 = memref.load %arg3[%c3_474, %c24_475] : memref<8x32xf32, #tpu.memory_space<smem>>
    %1053 = vector.broadcast %1052 : f32 to vector<32x128xf32>
    %1054 = arith.mulf %1053, %1039 : vector<32x128xf32>
    %1055 = arith.addf %1013, %1054 : vector<32x128xf32>
    %c4_476 = arith.constant 4 : index
    %c24_477 = arith.constant 24 : index
    %1056 = memref.load %arg3[%c4_476, %c24_477] : memref<8x32xf32, #tpu.memory_space<smem>>
    %1057 = vector.broadcast %1056 : f32 to vector<32x128xf32>
    %1058 = arith.mulf %1057, %1039 : vector<32x128xf32>
    %1059 = arith.addf %1017, %1058 : vector<32x128xf32>
    %c5_478 = arith.constant 5 : index
    %c24_479 = arith.constant 24 : index
    %1060 = memref.load %arg3[%c5_478, %c24_479] : memref<8x32xf32, #tpu.memory_space<smem>>
    %1061 = vector.broadcast %1060 : f32 to vector<32x128xf32>
    %1062 = arith.mulf %1061, %1039 : vector<32x128xf32>
    %1063 = arith.addf %1021, %1062 : vector<32x128xf32>
    %c6_480 = arith.constant 6 : index
    %c24_481 = arith.constant 24 : index
    %1064 = memref.load %arg3[%c6_480, %c24_481] : memref<8x32xf32, #tpu.memory_space<smem>>
    %1065 = vector.broadcast %1064 : f32 to vector<32x128xf32>
    %1066 = arith.mulf %1065, %1039 : vector<32x128xf32>
    %1067 = arith.addf %1025, %1066 : vector<32x128xf32>
    %c7_482 = arith.constant 7 : index
    %c24_483 = arith.constant 24 : index
    %1068 = memref.load %arg3[%c7_482, %c24_483] : memref<8x32xf32, #tpu.memory_space<smem>>
    %1069 = vector.broadcast %1068 : f32 to vector<32x128xf32>
    %1070 = arith.mulf %1069, %1039 : vector<32x128xf32>
    %1071 = arith.addf %1029, %1070 : vector<32x128xf32>
    %c25 = arith.constant 25 : index
    %1072 = memref.load %arg1[%c25] : memref<32xf32, #tpu.memory_space<smem>>
    %1073 = vector.broadcast %1072 : f32 to vector<32x128xf32>
    %1074 = arith.mulf %5, %1073 : vector<32x128xf32>
    %c25_484 = arith.constant 25 : index
    %1075 = memref.load %arg2[%c25_484] : memref<32xf32, #tpu.memory_space<smem>>
    %1076 = vector.broadcast %1075 : f32 to vector<32x128xf32>
    %1077 = arith.addf %1074, %1076 : vector<32x128xf32>
    %cst_485 = arith.constant 0.000000e+00 : f32
    %1078 = vector.broadcast %cst_485 : f32 to vector<32x128xf32>
    %1079 = arith.cmpf ogt, %1077, %1078 : vector<32x128xf32>
    %cst_486 = arith.constant -0.00999999977 : f32
    %1080 = vector.broadcast %cst_486 : f32 to vector<32x128xf32>
    %1081 = arith.select %1079, %1077, %1080 : vector<32x128xi1>, vector<32x128xf32>
    %c0_487 = arith.constant 0 : index
    %c25_488 = arith.constant 25 : index
    %1082 = memref.load %arg3[%c0_487, %c25_488] : memref<8x32xf32, #tpu.memory_space<smem>>
    %1083 = vector.broadcast %1082 : f32 to vector<32x128xf32>
    %1084 = arith.mulf %1083, %1081 : vector<32x128xf32>
    %1085 = arith.addf %1043, %1084 : vector<32x128xf32>
    %c1_489 = arith.constant 1 : index
    %c25_490 = arith.constant 25 : index
    %1086 = memref.load %arg3[%c1_489, %c25_490] : memref<8x32xf32, #tpu.memory_space<smem>>
    %1087 = vector.broadcast %1086 : f32 to vector<32x128xf32>
    %1088 = arith.mulf %1087, %1081 : vector<32x128xf32>
    %1089 = arith.addf %1047, %1088 : vector<32x128xf32>
    %c2_491 = arith.constant 2 : index
    %c25_492 = arith.constant 25 : index
    %1090 = memref.load %arg3[%c2_491, %c25_492] : memref<8x32xf32, #tpu.memory_space<smem>>
    %1091 = vector.broadcast %1090 : f32 to vector<32x128xf32>
    %1092 = arith.mulf %1091, %1081 : vector<32x128xf32>
    %1093 = arith.addf %1051, %1092 : vector<32x128xf32>
    %c3_493 = arith.constant 3 : index
    %c25_494 = arith.constant 25 : index
    %1094 = memref.load %arg3[%c3_493, %c25_494] : memref<8x32xf32, #tpu.memory_space<smem>>
    %1095 = vector.broadcast %1094 : f32 to vector<32x128xf32>
    %1096 = arith.mulf %1095, %1081 : vector<32x128xf32>
    %1097 = arith.addf %1055, %1096 : vector<32x128xf32>
    %c4_495 = arith.constant 4 : index
    %c25_496 = arith.constant 25 : index
    %1098 = memref.load %arg3[%c4_495, %c25_496] : memref<8x32xf32, #tpu.memory_space<smem>>
    %1099 = vector.broadcast %1098 : f32 to vector<32x128xf32>
    %1100 = arith.mulf %1099, %1081 : vector<32x128xf32>
    %1101 = arith.addf %1059, %1100 : vector<32x128xf32>
    %c5_497 = arith.constant 5 : index
    %c25_498 = arith.constant 25 : index
    %1102 = memref.load %arg3[%c5_497, %c25_498] : memref<8x32xf32, #tpu.memory_space<smem>>
    %1103 = vector.broadcast %1102 : f32 to vector<32x128xf32>
    %1104 = arith.mulf %1103, %1081 : vector<32x128xf32>
    %1105 = arith.addf %1063, %1104 : vector<32x128xf32>
    %c6_499 = arith.constant 6 : index
    %c25_500 = arith.constant 25 : index
    %1106 = memref.load %arg3[%c6_499, %c25_500] : memref<8x32xf32, #tpu.memory_space<smem>>
    %1107 = vector.broadcast %1106 : f32 to vector<32x128xf32>
    %1108 = arith.mulf %1107, %1081 : vector<32x128xf32>
    %1109 = arith.addf %1067, %1108 : vector<32x128xf32>
    %c7_501 = arith.constant 7 : index
    %c25_502 = arith.constant 25 : index
    %1110 = memref.load %arg3[%c7_501, %c25_502] : memref<8x32xf32, #tpu.memory_space<smem>>
    %1111 = vector.broadcast %1110 : f32 to vector<32x128xf32>
    %1112 = arith.mulf %1111, %1081 : vector<32x128xf32>
    %1113 = arith.addf %1071, %1112 : vector<32x128xf32>
    %c26 = arith.constant 26 : index
    %1114 = memref.load %arg1[%c26] : memref<32xf32, #tpu.memory_space<smem>>
    %1115 = vector.broadcast %1114 : f32 to vector<32x128xf32>
    %1116 = arith.mulf %5, %1115 : vector<32x128xf32>
    %c26_503 = arith.constant 26 : index
    %1117 = memref.load %arg2[%c26_503] : memref<32xf32, #tpu.memory_space<smem>>
    %1118 = vector.broadcast %1117 : f32 to vector<32x128xf32>
    %1119 = arith.addf %1116, %1118 : vector<32x128xf32>
    %cst_504 = arith.constant 0.000000e+00 : f32
    %1120 = vector.broadcast %cst_504 : f32 to vector<32x128xf32>
    %1121 = arith.cmpf ogt, %1119, %1120 : vector<32x128xf32>
    %cst_505 = arith.constant -0.00999999977 : f32
    %1122 = vector.broadcast %cst_505 : f32 to vector<32x128xf32>
    %1123 = arith.select %1121, %1119, %1122 : vector<32x128xi1>, vector<32x128xf32>
    %c0_506 = arith.constant 0 : index
    %c26_507 = arith.constant 26 : index
    %1124 = memref.load %arg3[%c0_506, %c26_507] : memref<8x32xf32, #tpu.memory_space<smem>>
    %1125 = vector.broadcast %1124 : f32 to vector<32x128xf32>
    %1126 = arith.mulf %1125, %1123 : vector<32x128xf32>
    %1127 = arith.addf %1085, %1126 : vector<32x128xf32>
    %c1_508 = arith.constant 1 : index
    %c26_509 = arith.constant 26 : index
    %1128 = memref.load %arg3[%c1_508, %c26_509] : memref<8x32xf32, #tpu.memory_space<smem>>
    %1129 = vector.broadcast %1128 : f32 to vector<32x128xf32>
    %1130 = arith.mulf %1129, %1123 : vector<32x128xf32>
    %1131 = arith.addf %1089, %1130 : vector<32x128xf32>
    %c2_510 = arith.constant 2 : index
    %c26_511 = arith.constant 26 : index
    %1132 = memref.load %arg3[%c2_510, %c26_511] : memref<8x32xf32, #tpu.memory_space<smem>>
    %1133 = vector.broadcast %1132 : f32 to vector<32x128xf32>
    %1134 = arith.mulf %1133, %1123 : vector<32x128xf32>
    %1135 = arith.addf %1093, %1134 : vector<32x128xf32>
    %c3_512 = arith.constant 3 : index
    %c26_513 = arith.constant 26 : index
    %1136 = memref.load %arg3[%c3_512, %c26_513] : memref<8x32xf32, #tpu.memory_space<smem>>
    %1137 = vector.broadcast %1136 : f32 to vector<32x128xf32>
    %1138 = arith.mulf %1137, %1123 : vector<32x128xf32>
    %1139 = arith.addf %1097, %1138 : vector<32x128xf32>
    %c4_514 = arith.constant 4 : index
    %c26_515 = arith.constant 26 : index
    %1140 = memref.load %arg3[%c4_514, %c26_515] : memref<8x32xf32, #tpu.memory_space<smem>>
    %1141 = vector.broadcast %1140 : f32 to vector<32x128xf32>
    %1142 = arith.mulf %1141, %1123 : vector<32x128xf32>
    %1143 = arith.addf %1101, %1142 : vector<32x128xf32>
    %c5_516 = arith.constant 5 : index
    %c26_517 = arith.constant 26 : index
    %1144 = memref.load %arg3[%c5_516, %c26_517] : memref<8x32xf32, #tpu.memory_space<smem>>
    %1145 = vector.broadcast %1144 : f32 to vector<32x128xf32>
    %1146 = arith.mulf %1145, %1123 : vector<32x128xf32>
    %1147 = arith.addf %1105, %1146 : vector<32x128xf32>
    %c6_518 = arith.constant 6 : index
    %c26_519 = arith.constant 26 : index
    %1148 = memref.load %arg3[%c6_518, %c26_519] : memref<8x32xf32, #tpu.memory_space<smem>>
    %1149 = vector.broadcast %1148 : f32 to vector<32x128xf32>
    %1150 = arith.mulf %1149, %1123 : vector<32x128xf32>
    %1151 = arith.addf %1109, %1150 : vector<32x128xf32>
    %c7_520 = arith.constant 7 : index
    %c26_521 = arith.constant 26 : index
    %1152 = memref.load %arg3[%c7_520, %c26_521] : memref<8x32xf32, #tpu.memory_space<smem>>
    %1153 = vector.broadcast %1152 : f32 to vector<32x128xf32>
    %1154 = arith.mulf %1153, %1123 : vector<32x128xf32>
    %1155 = arith.addf %1113, %1154 : vector<32x128xf32>
    %c27 = arith.constant 27 : index
    %1156 = memref.load %arg1[%c27] : memref<32xf32, #tpu.memory_space<smem>>
    %1157 = vector.broadcast %1156 : f32 to vector<32x128xf32>
    %1158 = arith.mulf %5, %1157 : vector<32x128xf32>
    %c27_522 = arith.constant 27 : index
    %1159 = memref.load %arg2[%c27_522] : memref<32xf32, #tpu.memory_space<smem>>
    %1160 = vector.broadcast %1159 : f32 to vector<32x128xf32>
    %1161 = arith.addf %1158, %1160 : vector<32x128xf32>
    %cst_523 = arith.constant 0.000000e+00 : f32
    %1162 = vector.broadcast %cst_523 : f32 to vector<32x128xf32>
    %1163 = arith.cmpf ogt, %1161, %1162 : vector<32x128xf32>
    %cst_524 = arith.constant -0.00999999977 : f32
    %1164 = vector.broadcast %cst_524 : f32 to vector<32x128xf32>
    %1165 = arith.select %1163, %1161, %1164 : vector<32x128xi1>, vector<32x128xf32>
    %c0_525 = arith.constant 0 : index
    %c27_526 = arith.constant 27 : index
    %1166 = memref.load %arg3[%c0_525, %c27_526] : memref<8x32xf32, #tpu.memory_space<smem>>
    %1167 = vector.broadcast %1166 : f32 to vector<32x128xf32>
    %1168 = arith.mulf %1167, %1165 : vector<32x128xf32>
    %1169 = arith.addf %1127, %1168 : vector<32x128xf32>
    %c1_527 = arith.constant 1 : index
    %c27_528 = arith.constant 27 : index
    %1170 = memref.load %arg3[%c1_527, %c27_528] : memref<8x32xf32, #tpu.memory_space<smem>>
    %1171 = vector.broadcast %1170 : f32 to vector<32x128xf32>
    %1172 = arith.mulf %1171, %1165 : vector<32x128xf32>
    %1173 = arith.addf %1131, %1172 : vector<32x128xf32>
    %c2_529 = arith.constant 2 : index
    %c27_530 = arith.constant 27 : index
    %1174 = memref.load %arg3[%c2_529, %c27_530] : memref<8x32xf32, #tpu.memory_space<smem>>
    %1175 = vector.broadcast %1174 : f32 to vector<32x128xf32>
    %1176 = arith.mulf %1175, %1165 : vector<32x128xf32>
    %1177 = arith.addf %1135, %1176 : vector<32x128xf32>
    %c3_531 = arith.constant 3 : index
    %c27_532 = arith.constant 27 : index
    %1178 = memref.load %arg3[%c3_531, %c27_532] : memref<8x32xf32, #tpu.memory_space<smem>>
    %1179 = vector.broadcast %1178 : f32 to vector<32x128xf32>
    %1180 = arith.mulf %1179, %1165 : vector<32x128xf32>
    %1181 = arith.addf %1139, %1180 : vector<32x128xf32>
    %c4_533 = arith.constant 4 : index
    %c27_534 = arith.constant 27 : index
    %1182 = memref.load %arg3[%c4_533, %c27_534] : memref<8x32xf32, #tpu.memory_space<smem>>
    %1183 = vector.broadcast %1182 : f32 to vector<32x128xf32>
    %1184 = arith.mulf %1183, %1165 : vector<32x128xf32>
    %1185 = arith.addf %1143, %1184 : vector<32x128xf32>
    %c5_535 = arith.constant 5 : index
    %c27_536 = arith.constant 27 : index
    %1186 = memref.load %arg3[%c5_535, %c27_536] : memref<8x32xf32, #tpu.memory_space<smem>>
    %1187 = vector.broadcast %1186 : f32 to vector<32x128xf32>
    %1188 = arith.mulf %1187, %1165 : vector<32x128xf32>
    %1189 = arith.addf %1147, %1188 : vector<32x128xf32>
    %c6_537 = arith.constant 6 : index
    %c27_538 = arith.constant 27 : index
    %1190 = memref.load %arg3[%c6_537, %c27_538] : memref<8x32xf32, #tpu.memory_space<smem>>
    %1191 = vector.broadcast %1190 : f32 to vector<32x128xf32>
    %1192 = arith.mulf %1191, %1165 : vector<32x128xf32>
    %1193 = arith.addf %1151, %1192 : vector<32x128xf32>
    %c7_539 = arith.constant 7 : index
    %c27_540 = arith.constant 27 : index
    %1194 = memref.load %arg3[%c7_539, %c27_540] : memref<8x32xf32, #tpu.memory_space<smem>>
    %1195 = vector.broadcast %1194 : f32 to vector<32x128xf32>
    %1196 = arith.mulf %1195, %1165 : vector<32x128xf32>
    %1197 = arith.addf %1155, %1196 : vector<32x128xf32>
    %c28 = arith.constant 28 : index
    %1198 = memref.load %arg1[%c28] : memref<32xf32, #tpu.memory_space<smem>>
    %1199 = vector.broadcast %1198 : f32 to vector<32x128xf32>
    %1200 = arith.mulf %5, %1199 : vector<32x128xf32>
    %c28_541 = arith.constant 28 : index
    %1201 = memref.load %arg2[%c28_541] : memref<32xf32, #tpu.memory_space<smem>>
    %1202 = vector.broadcast %1201 : f32 to vector<32x128xf32>
    %1203 = arith.addf %1200, %1202 : vector<32x128xf32>
    %cst_542 = arith.constant 0.000000e+00 : f32
    %1204 = vector.broadcast %cst_542 : f32 to vector<32x128xf32>
    %1205 = arith.cmpf ogt, %1203, %1204 : vector<32x128xf32>
    %cst_543 = arith.constant -0.00999999977 : f32
    %1206 = vector.broadcast %cst_543 : f32 to vector<32x128xf32>
    %1207 = arith.select %1205, %1203, %1206 : vector<32x128xi1>, vector<32x128xf32>
    %c0_544 = arith.constant 0 : index
    %c28_545 = arith.constant 28 : index
    %1208 = memref.load %arg3[%c0_544, %c28_545] : memref<8x32xf32, #tpu.memory_space<smem>>
    %1209 = vector.broadcast %1208 : f32 to vector<32x128xf32>
    %1210 = arith.mulf %1209, %1207 : vector<32x128xf32>
    %1211 = arith.addf %1169, %1210 : vector<32x128xf32>
    %c1_546 = arith.constant 1 : index
    %c28_547 = arith.constant 28 : index
    %1212 = memref.load %arg3[%c1_546, %c28_547] : memref<8x32xf32, #tpu.memory_space<smem>>
    %1213 = vector.broadcast %1212 : f32 to vector<32x128xf32>
    %1214 = arith.mulf %1213, %1207 : vector<32x128xf32>
    %1215 = arith.addf %1173, %1214 : vector<32x128xf32>
    %c2_548 = arith.constant 2 : index
    %c28_549 = arith.constant 28 : index
    %1216 = memref.load %arg3[%c2_548, %c28_549] : memref<8x32xf32, #tpu.memory_space<smem>>
    %1217 = vector.broadcast %1216 : f32 to vector<32x128xf32>
    %1218 = arith.mulf %1217, %1207 : vector<32x128xf32>
    %1219 = arith.addf %1177, %1218 : vector<32x128xf32>
    %c3_550 = arith.constant 3 : index
    %c28_551 = arith.constant 28 : index
    %1220 = memref.load %arg3[%c3_550, %c28_551] : memref<8x32xf32, #tpu.memory_space<smem>>
    %1221 = vector.broadcast %1220 : f32 to vector<32x128xf32>
    %1222 = arith.mulf %1221, %1207 : vector<32x128xf32>
    %1223 = arith.addf %1181, %1222 : vector<32x128xf32>
    %c4_552 = arith.constant 4 : index
    %c28_553 = arith.constant 28 : index
    %1224 = memref.load %arg3[%c4_552, %c28_553] : memref<8x32xf32, #tpu.memory_space<smem>>
    %1225 = vector.broadcast %1224 : f32 to vector<32x128xf32>
    %1226 = arith.mulf %1225, %1207 : vector<32x128xf32>
    %1227 = arith.addf %1185, %1226 : vector<32x128xf32>
    %c5_554 = arith.constant 5 : index
    %c28_555 = arith.constant 28 : index
    %1228 = memref.load %arg3[%c5_554, %c28_555] : memref<8x32xf32, #tpu.memory_space<smem>>
    %1229 = vector.broadcast %1228 : f32 to vector<32x128xf32>
    %1230 = arith.mulf %1229, %1207 : vector<32x128xf32>
    %1231 = arith.addf %1189, %1230 : vector<32x128xf32>
    %c6_556 = arith.constant 6 : index
    %c28_557 = arith.constant 28 : index
    %1232 = memref.load %arg3[%c6_556, %c28_557] : memref<8x32xf32, #tpu.memory_space<smem>>
    %1233 = vector.broadcast %1232 : f32 to vector<32x128xf32>
    %1234 = arith.mulf %1233, %1207 : vector<32x128xf32>
    %1235 = arith.addf %1193, %1234 : vector<32x128xf32>
    %c7_558 = arith.constant 7 : index
    %c28_559 = arith.constant 28 : index
    %1236 = memref.load %arg3[%c7_558, %c28_559] : memref<8x32xf32, #tpu.memory_space<smem>>
    %1237 = vector.broadcast %1236 : f32 to vector<32x128xf32>
    %1238 = arith.mulf %1237, %1207 : vector<32x128xf32>
    %1239 = arith.addf %1197, %1238 : vector<32x128xf32>
    %c29 = arith.constant 29 : index
    %1240 = memref.load %arg1[%c29] : memref<32xf32, #tpu.memory_space<smem>>
    %1241 = vector.broadcast %1240 : f32 to vector<32x128xf32>
    %1242 = arith.mulf %5, %1241 : vector<32x128xf32>
    %c29_560 = arith.constant 29 : index
    %1243 = memref.load %arg2[%c29_560] : memref<32xf32, #tpu.memory_space<smem>>
    %1244 = vector.broadcast %1243 : f32 to vector<32x128xf32>
    %1245 = arith.addf %1242, %1244 : vector<32x128xf32>
    %cst_561 = arith.constant 0.000000e+00 : f32
    %1246 = vector.broadcast %cst_561 : f32 to vector<32x128xf32>
    %1247 = arith.cmpf ogt, %1245, %1246 : vector<32x128xf32>
    %cst_562 = arith.constant -0.00999999977 : f32
    %1248 = vector.broadcast %cst_562 : f32 to vector<32x128xf32>
    %1249 = arith.select %1247, %1245, %1248 : vector<32x128xi1>, vector<32x128xf32>
    %c0_563 = arith.constant 0 : index
    %c29_564 = arith.constant 29 : index
    %1250 = memref.load %arg3[%c0_563, %c29_564] : memref<8x32xf32, #tpu.memory_space<smem>>
    %1251 = vector.broadcast %1250 : f32 to vector<32x128xf32>
    %1252 = arith.mulf %1251, %1249 : vector<32x128xf32>
    %1253 = arith.addf %1211, %1252 : vector<32x128xf32>
    %c1_565 = arith.constant 1 : index
    %c29_566 = arith.constant 29 : index
    %1254 = memref.load %arg3[%c1_565, %c29_566] : memref<8x32xf32, #tpu.memory_space<smem>>
    %1255 = vector.broadcast %1254 : f32 to vector<32x128xf32>
    %1256 = arith.mulf %1255, %1249 : vector<32x128xf32>
    %1257 = arith.addf %1215, %1256 : vector<32x128xf32>
    %c2_567 = arith.constant 2 : index
    %c29_568 = arith.constant 29 : index
    %1258 = memref.load %arg3[%c2_567, %c29_568] : memref<8x32xf32, #tpu.memory_space<smem>>
    %1259 = vector.broadcast %1258 : f32 to vector<32x128xf32>
    %1260 = arith.mulf %1259, %1249 : vector<32x128xf32>
    %1261 = arith.addf %1219, %1260 : vector<32x128xf32>
    %c3_569 = arith.constant 3 : index
    %c29_570 = arith.constant 29 : index
    %1262 = memref.load %arg3[%c3_569, %c29_570] : memref<8x32xf32, #tpu.memory_space<smem>>
    %1263 = vector.broadcast %1262 : f32 to vector<32x128xf32>
    %1264 = arith.mulf %1263, %1249 : vector<32x128xf32>
    %1265 = arith.addf %1223, %1264 : vector<32x128xf32>
    %c4_571 = arith.constant 4 : index
    %c29_572 = arith.constant 29 : index
    %1266 = memref.load %arg3[%c4_571, %c29_572] : memref<8x32xf32, #tpu.memory_space<smem>>
    %1267 = vector.broadcast %1266 : f32 to vector<32x128xf32>
    %1268 = arith.mulf %1267, %1249 : vector<32x128xf32>
    %1269 = arith.addf %1227, %1268 : vector<32x128xf32>
    %c5_573 = arith.constant 5 : index
    %c29_574 = arith.constant 29 : index
    %1270 = memref.load %arg3[%c5_573, %c29_574] : memref<8x32xf32, #tpu.memory_space<smem>>
    %1271 = vector.broadcast %1270 : f32 to vector<32x128xf32>
    %1272 = arith.mulf %1271, %1249 : vector<32x128xf32>
    %1273 = arith.addf %1231, %1272 : vector<32x128xf32>
    %c6_575 = arith.constant 6 : index
    %c29_576 = arith.constant 29 : index
    %1274 = memref.load %arg3[%c6_575, %c29_576] : memref<8x32xf32, #tpu.memory_space<smem>>
    %1275 = vector.broadcast %1274 : f32 to vector<32x128xf32>
    %1276 = arith.mulf %1275, %1249 : vector<32x128xf32>
    %1277 = arith.addf %1235, %1276 : vector<32x128xf32>
    %c7_577 = arith.constant 7 : index
    %c29_578 = arith.constant 29 : index
    %1278 = memref.load %arg3[%c7_577, %c29_578] : memref<8x32xf32, #tpu.memory_space<smem>>
    %1279 = vector.broadcast %1278 : f32 to vector<32x128xf32>
    %1280 = arith.mulf %1279, %1249 : vector<32x128xf32>
    %1281 = arith.addf %1239, %1280 : vector<32x128xf32>
    %c30 = arith.constant 30 : index
    %1282 = memref.load %arg1[%c30] : memref<32xf32, #tpu.memory_space<smem>>
    %1283 = vector.broadcast %1282 : f32 to vector<32x128xf32>
    %1284 = arith.mulf %5, %1283 : vector<32x128xf32>
    %c30_579 = arith.constant 30 : index
    %1285 = memref.load %arg2[%c30_579] : memref<32xf32, #tpu.memory_space<smem>>
    %1286 = vector.broadcast %1285 : f32 to vector<32x128xf32>
    %1287 = arith.addf %1284, %1286 : vector<32x128xf32>
    %cst_580 = arith.constant 0.000000e+00 : f32
    %1288 = vector.broadcast %cst_580 : f32 to vector<32x128xf32>
    %1289 = arith.cmpf ogt, %1287, %1288 : vector<32x128xf32>
    %cst_581 = arith.constant -0.00999999977 : f32
    %1290 = vector.broadcast %cst_581 : f32 to vector<32x128xf32>
    %1291 = arith.select %1289, %1287, %1290 : vector<32x128xi1>, vector<32x128xf32>
    %c0_582 = arith.constant 0 : index
    %c30_583 = arith.constant 30 : index
    %1292 = memref.load %arg3[%c0_582, %c30_583] : memref<8x32xf32, #tpu.memory_space<smem>>
    %1293 = vector.broadcast %1292 : f32 to vector<32x128xf32>
    %1294 = arith.mulf %1293, %1291 : vector<32x128xf32>
    %1295 = arith.addf %1253, %1294 : vector<32x128xf32>
    %c1_584 = arith.constant 1 : index
    %c30_585 = arith.constant 30 : index
    %1296 = memref.load %arg3[%c1_584, %c30_585] : memref<8x32xf32, #tpu.memory_space<smem>>
    %1297 = vector.broadcast %1296 : f32 to vector<32x128xf32>
    %1298 = arith.mulf %1297, %1291 : vector<32x128xf32>
    %1299 = arith.addf %1257, %1298 : vector<32x128xf32>
    %c2_586 = arith.constant 2 : index
    %c30_587 = arith.constant 30 : index
    %1300 = memref.load %arg3[%c2_586, %c30_587] : memref<8x32xf32, #tpu.memory_space<smem>>
    %1301 = vector.broadcast %1300 : f32 to vector<32x128xf32>
    %1302 = arith.mulf %1301, %1291 : vector<32x128xf32>
    %1303 = arith.addf %1261, %1302 : vector<32x128xf32>
    %c3_588 = arith.constant 3 : index
    %c30_589 = arith.constant 30 : index
    %1304 = memref.load %arg3[%c3_588, %c30_589] : memref<8x32xf32, #tpu.memory_space<smem>>
    %1305 = vector.broadcast %1304 : f32 to vector<32x128xf32>
    %1306 = arith.mulf %1305, %1291 : vector<32x128xf32>
    %1307 = arith.addf %1265, %1306 : vector<32x128xf32>
    %c4_590 = arith.constant 4 : index
    %c30_591 = arith.constant 30 : index
    %1308 = memref.load %arg3[%c4_590, %c30_591] : memref<8x32xf32, #tpu.memory_space<smem>>
    %1309 = vector.broadcast %1308 : f32 to vector<32x128xf32>
    %1310 = arith.mulf %1309, %1291 : vector<32x128xf32>
    %1311 = arith.addf %1269, %1310 : vector<32x128xf32>
    %c5_592 = arith.constant 5 : index
    %c30_593 = arith.constant 30 : index
    %1312 = memref.load %arg3[%c5_592, %c30_593] : memref<8x32xf32, #tpu.memory_space<smem>>
    %1313 = vector.broadcast %1312 : f32 to vector<32x128xf32>
    %1314 = arith.mulf %1313, %1291 : vector<32x128xf32>
    %1315 = arith.addf %1273, %1314 : vector<32x128xf32>
    %c6_594 = arith.constant 6 : index
    %c30_595 = arith.constant 30 : index
    %1316 = memref.load %arg3[%c6_594, %c30_595] : memref<8x32xf32, #tpu.memory_space<smem>>
    %1317 = vector.broadcast %1316 : f32 to vector<32x128xf32>
    %1318 = arith.mulf %1317, %1291 : vector<32x128xf32>
    %1319 = arith.addf %1277, %1318 : vector<32x128xf32>
    %c7_596 = arith.constant 7 : index
    %c30_597 = arith.constant 30 : index
    %1320 = memref.load %arg3[%c7_596, %c30_597] : memref<8x32xf32, #tpu.memory_space<smem>>
    %1321 = vector.broadcast %1320 : f32 to vector<32x128xf32>
    %1322 = arith.mulf %1321, %1291 : vector<32x128xf32>
    %1323 = arith.addf %1281, %1322 : vector<32x128xf32>
    %c31 = arith.constant 31 : index
    %1324 = memref.load %arg1[%c31] : memref<32xf32, #tpu.memory_space<smem>>
    %1325 = vector.broadcast %1324 : f32 to vector<32x128xf32>
    %1326 = arith.mulf %5, %1325 : vector<32x128xf32>
    %c31_598 = arith.constant 31 : index
    %1327 = memref.load %arg2[%c31_598] : memref<32xf32, #tpu.memory_space<smem>>
    %1328 = vector.broadcast %1327 : f32 to vector<32x128xf32>
    %1329 = arith.addf %1326, %1328 : vector<32x128xf32>
    %cst_599 = arith.constant 0.000000e+00 : f32
    %1330 = vector.broadcast %cst_599 : f32 to vector<32x128xf32>
    %1331 = arith.cmpf ogt, %1329, %1330 : vector<32x128xf32>
    %cst_600 = arith.constant -0.00999999977 : f32
    %1332 = vector.broadcast %cst_600 : f32 to vector<32x128xf32>
    %1333 = arith.select %1331, %1329, %1332 : vector<32x128xi1>, vector<32x128xf32>
    %c0_601 = arith.constant 0 : index
    %c31_602 = arith.constant 31 : index
    %1334 = memref.load %arg3[%c0_601, %c31_602] : memref<8x32xf32, #tpu.memory_space<smem>>
    %1335 = vector.broadcast %1334 : f32 to vector<32x128xf32>
    %1336 = arith.mulf %1335, %1333 : vector<32x128xf32>
    %1337 = arith.addf %1295, %1336 : vector<32x128xf32>
    %c1_603 = arith.constant 1 : index
    %c31_604 = arith.constant 31 : index
    %1338 = memref.load %arg3[%c1_603, %c31_604] : memref<8x32xf32, #tpu.memory_space<smem>>
    %1339 = vector.broadcast %1338 : f32 to vector<32x128xf32>
    %1340 = arith.mulf %1339, %1333 : vector<32x128xf32>
    %1341 = arith.addf %1299, %1340 : vector<32x128xf32>
    %c2_605 = arith.constant 2 : index
    %c31_606 = arith.constant 31 : index
    %1342 = memref.load %arg3[%c2_605, %c31_606] : memref<8x32xf32, #tpu.memory_space<smem>>
    %1343 = vector.broadcast %1342 : f32 to vector<32x128xf32>
    %1344 = arith.mulf %1343, %1333 : vector<32x128xf32>
    %1345 = arith.addf %1303, %1344 : vector<32x128xf32>
    %c3_607 = arith.constant 3 : index
    %c31_608 = arith.constant 31 : index
    %1346 = memref.load %arg3[%c3_607, %c31_608] : memref<8x32xf32, #tpu.memory_space<smem>>
    %1347 = vector.broadcast %1346 : f32 to vector<32x128xf32>
    %1348 = arith.mulf %1347, %1333 : vector<32x128xf32>
    %1349 = arith.addf %1307, %1348 : vector<32x128xf32>
    %c4_609 = arith.constant 4 : index
    %c31_610 = arith.constant 31 : index
    %1350 = memref.load %arg3[%c4_609, %c31_610] : memref<8x32xf32, #tpu.memory_space<smem>>
    %1351 = vector.broadcast %1350 : f32 to vector<32x128xf32>
    %1352 = arith.mulf %1351, %1333 : vector<32x128xf32>
    %1353 = arith.addf %1311, %1352 : vector<32x128xf32>
    %c5_611 = arith.constant 5 : index
    %c31_612 = arith.constant 31 : index
    %1354 = memref.load %arg3[%c5_611, %c31_612] : memref<8x32xf32, #tpu.memory_space<smem>>
    %1355 = vector.broadcast %1354 : f32 to vector<32x128xf32>
    %1356 = arith.mulf %1355, %1333 : vector<32x128xf32>
    %1357 = arith.addf %1315, %1356 : vector<32x128xf32>
    %c6_613 = arith.constant 6 : index
    %c31_614 = arith.constant 31 : index
    %1358 = memref.load %arg3[%c6_613, %c31_614] : memref<8x32xf32, #tpu.memory_space<smem>>
    %1359 = vector.broadcast %1358 : f32 to vector<32x128xf32>
    %1360 = arith.mulf %1359, %1333 : vector<32x128xf32>
    %1361 = arith.addf %1319, %1360 : vector<32x128xf32>
    %c7_615 = arith.constant 7 : index
    %c31_616 = arith.constant 31 : index
    %1362 = memref.load %arg3[%c7_615, %c31_616] : memref<8x32xf32, #tpu.memory_space<smem>>
    %1363 = vector.broadcast %1362 : f32 to vector<32x128xf32>
    %1364 = arith.mulf %1363, %1333 : vector<32x128xf32>
    %1365 = arith.addf %1323, %1364 : vector<32x128xf32>
    %c0_617 = arith.constant 0 : index
    %1366 = memref.load %arg6[%c0_617] : memref<1xf32, #tpu.memory_space<smem>>
    %1367 = vector.broadcast %1366 : f32 to vector<32x128xf32>
    %c0_618 = arith.constant 0 : index
    %1368 = memref.load %arg5[%c0_618] : memref<8xf32, #tpu.memory_space<smem>>
    %cst_619 = arith.constant 0.000000e+00 : f32
    %1369 = vector.broadcast %cst_619 : f32 to vector<32x128xf32>
    %1370 = arith.cmpf ogt, %1337, %1369 : vector<32x128xf32>
    %cst_620 = arith.constant -0.00999999977 : f32
    %1371 = vector.broadcast %cst_620 : f32 to vector<32x128xf32>
    %1372 = arith.select %1370, %1337, %1371 : vector<32x128xi1>, vector<32x128xf32>
    %1373 = vector.broadcast %1368 : f32 to vector<32x128xf32>
    %1374 = arith.mulf %1373, %1372 : vector<32x128xf32>
    %1375 = arith.addf %1367, %1374 : vector<32x128xf32>
    %c1_621 = arith.constant 1 : index
    %1376 = memref.load %arg5[%c1_621] : memref<8xf32, #tpu.memory_space<smem>>
    %cst_622 = arith.constant 0.000000e+00 : f32
    %1377 = vector.broadcast %cst_622 : f32 to vector<32x128xf32>
    %1378 = arith.cmpf ogt, %1341, %1377 : vector<32x128xf32>
    %cst_623 = arith.constant -0.00999999977 : f32
    %1379 = vector.broadcast %cst_623 : f32 to vector<32x128xf32>
    %1380 = arith.select %1378, %1341, %1379 : vector<32x128xi1>, vector<32x128xf32>
    %1381 = vector.broadcast %1376 : f32 to vector<32x128xf32>
    %1382 = arith.mulf %1381, %1380 : vector<32x128xf32>
    %1383 = arith.addf %1375, %1382 : vector<32x128xf32>
    %c2_624 = arith.constant 2 : index
    %1384 = memref.load %arg5[%c2_624] : memref<8xf32, #tpu.memory_space<smem>>
    %cst_625 = arith.constant 0.000000e+00 : f32
    %1385 = vector.broadcast %cst_625 : f32 to vector<32x128xf32>
    %1386 = arith.cmpf ogt, %1345, %1385 : vector<32x128xf32>
    %cst_626 = arith.constant -0.00999999977 : f32
    %1387 = vector.broadcast %cst_626 : f32 to vector<32x128xf32>
    %1388 = arith.select %1386, %1345, %1387 : vector<32x128xi1>, vector<32x128xf32>
    %1389 = vector.broadcast %1384 : f32 to vector<32x128xf32>
    %1390 = arith.mulf %1389, %1388 : vector<32x128xf32>
    %1391 = arith.addf %1383, %1390 : vector<32x128xf32>
    %c3_627 = arith.constant 3 : index
    %1392 = memref.load %arg5[%c3_627] : memref<8xf32, #tpu.memory_space<smem>>
    %cst_628 = arith.constant 0.000000e+00 : f32
    %1393 = vector.broadcast %cst_628 : f32 to vector<32x128xf32>
    %1394 = arith.cmpf ogt, %1349, %1393 : vector<32x128xf32>
    %cst_629 = arith.constant -0.00999999977 : f32
    %1395 = vector.broadcast %cst_629 : f32 to vector<32x128xf32>
    %1396 = arith.select %1394, %1349, %1395 : vector<32x128xi1>, vector<32x128xf32>
    %1397 = vector.broadcast %1392 : f32 to vector<32x128xf32>
    %1398 = arith.mulf %1397, %1396 : vector<32x128xf32>
    %1399 = arith.addf %1391, %1398 : vector<32x128xf32>
    %c4_630 = arith.constant 4 : index
    %1400 = memref.load %arg5[%c4_630] : memref<8xf32, #tpu.memory_space<smem>>
    %cst_631 = arith.constant 0.000000e+00 : f32
    %1401 = vector.broadcast %cst_631 : f32 to vector<32x128xf32>
    %1402 = arith.cmpf ogt, %1353, %1401 : vector<32x128xf32>
    %cst_632 = arith.constant -0.00999999977 : f32
    %1403 = vector.broadcast %cst_632 : f32 to vector<32x128xf32>
    %1404 = arith.select %1402, %1353, %1403 : vector<32x128xi1>, vector<32x128xf32>
    %1405 = vector.broadcast %1400 : f32 to vector<32x128xf32>
    %1406 = arith.mulf %1405, %1404 : vector<32x128xf32>
    %1407 = arith.addf %1399, %1406 : vector<32x128xf32>
    %c5_633 = arith.constant 5 : index
    %1408 = memref.load %arg5[%c5_633] : memref<8xf32, #tpu.memory_space<smem>>
    %cst_634 = arith.constant 0.000000e+00 : f32
    %1409 = vector.broadcast %cst_634 : f32 to vector<32x128xf32>
    %1410 = arith.cmpf ogt, %1357, %1409 : vector<32x128xf32>
    %cst_635 = arith.constant -0.00999999977 : f32
    %1411 = vector.broadcast %cst_635 : f32 to vector<32x128xf32>
    %1412 = arith.select %1410, %1357, %1411 : vector<32x128xi1>, vector<32x128xf32>
    %1413 = vector.broadcast %1408 : f32 to vector<32x128xf32>
    %1414 = arith.mulf %1413, %1412 : vector<32x128xf32>
    %1415 = arith.addf %1407, %1414 : vector<32x128xf32>
    %c6_636 = arith.constant 6 : index
    %1416 = memref.load %arg5[%c6_636] : memref<8xf32, #tpu.memory_space<smem>>
    %cst_637 = arith.constant 0.000000e+00 : f32
    %1417 = vector.broadcast %cst_637 : f32 to vector<32x128xf32>
    %1418 = arith.cmpf ogt, %1361, %1417 : vector<32x128xf32>
    %cst_638 = arith.constant -0.00999999977 : f32
    %1419 = vector.broadcast %cst_638 : f32 to vector<32x128xf32>
    %1420 = arith.select %1418, %1361, %1419 : vector<32x128xi1>, vector<32x128xf32>
    %1421 = vector.broadcast %1416 : f32 to vector<32x128xf32>
    %1422 = arith.mulf %1421, %1420 : vector<32x128xf32>
    %1423 = arith.addf %1415, %1422 : vector<32x128xf32>
    %c7_639 = arith.constant 7 : index
    %1424 = memref.load %arg5[%c7_639] : memref<8xf32, #tpu.memory_space<smem>>
    %cst_640 = arith.constant 0.000000e+00 : f32
    %1425 = vector.broadcast %cst_640 : f32 to vector<32x128xf32>
    %1426 = arith.cmpf ogt, %1365, %1425 : vector<32x128xf32>
    %cst_641 = arith.constant -0.00999999977 : f32
    %1427 = vector.broadcast %cst_641 : f32 to vector<32x128xf32>
    %1428 = arith.select %1426, %1365, %1427 : vector<32x128xi1>, vector<32x128xf32>
    %1429 = vector.broadcast %1424 : f32 to vector<32x128xf32>
    %1430 = arith.mulf %1429, %1428 : vector<32x128xf32>
    %1431 = arith.addf %1423, %1430 : vector<32x128xf32>
    %1432 = arith.index_cast %3 : i32 to index
    %c0_642 = arith.constant 0 : index
    %1433 = vector.load %arg8[%1432, %c0_642] : memref<32x128xf32, #tpu.memory_space<vmem>>, vector<32x128xf32>
    tpu.vector_store %arg8[%1432, %c0_642], %1431 {strides = array<i32>} : memref<32x128xf32, #tpu.memory_space<vmem>>, vector<32x128xf32>,
    %c1_i32_643 = arith.constant 1 : i32
    return
  }
  func.func @transform_0(%arg0: i32) -> i32 {
    %c0_i32 = arith.constant 0 : i32
    %c0_i32_0 = arith.constant 0 : i32
    return %c0_i32 : i32
  }
  func.func @transform_1(%arg0: i32) -> i32 {
    %c0_i32 = arith.constant 0 : i32
    %c0_i32_0 = arith.constant 0 : i32
    return %c0_i32 : i32
  }
  func.func @transform_2(%arg0: i32) -> (i32, i32) {
    %c0_i32 = arith.constant 0 : i32
    %c0_i32_0 = arith.constant 0 : i32
    %c0_i32_1 = arith.constant 0 : i32
    return %c0_i32, %c0_i32_0 : i32, i32
  }
  func.func @transform_3(%arg0: i32) -> i32 {
    %c0_i32 = arith.constant 0 : i32
    %c0_i32_0 = arith.constant 0 : i32
    return %c0_i32 : i32
  }
  func.func @transform_4(%arg0: i32) -> i32 {
    %c0_i32 = arith.constant 0 : i32
    %c0_i32_0 = arith.constant 0 : i32
    return %c0_i32 : i32
  }
  func.func @transform_5(%arg0: i32) -> i32 {
    %c0_i32 = arith.constant 0 : i32
    %c0_i32_0 = arith.constant 0 : i32
    return %c0_i32 : i32
  }
  func.func @transform_6(%arg0: i32) -> (i32, i32) {
    %c0_i32 = arith.constant 0 : i32
    %c0_i32_0 = arith.constant 0 : i32
    return %arg0, %c0_i32 : i32, i32
  }
  func.func @transform_7(%arg0: i32) -> (i32, i32) {
    %c0_i32 = arith.constant 0 : i32
    %c0_i32_0 = arith.constant 0 : i32
    return %arg0, %c0_i32 : i32, i32
  }
}

</mosaic_0001>

<llo_original>
// kernel: tpu_custom_call.1
$region0: #{tpu_custom_call.1}
  #allocation0 [shape = 'u32[]', space=smem, size = 0x4, offset = 0x4, fixed_abs, tag = 'smem constant byte address 0x4 - core index']
  #allocation1 [shape = 'u32[144,128]{1,0:T(1,128)}', space=vmem, size = 0x12000, scoped, tag = 'internal scratch']
  #allocation2 [shape = 'f32[1]{0:T(128)S(6)}', space=smem, size = 0x200, scoped, tag = 'scoped memory for tpu_custom_call.1']
  %s0 = inlined_call_operand.vmem [shape: f32[32], index: 0, kind: input, shape index: {}]
  %s1 = inlined_call_operand.vmem [shape: f32[32], index: 1, kind: input, shape index: {}]
  %s2 = inlined_call_operand.hbm [shape: f32[8,32], index: 2, kind: input, shape index: {}]
  %s3 = inlined_call_operand.vmem [shape: f32[8], index: 3, kind: input, shape index: {}]
  %s4 = inlined_call_operand.vmem [shape: f32[8], index: 4, kind: input, shape index: {}]
  %s5 = inlined_call_operand.<no memory space> [shape: f32[1], index: 5, kind: input, shape index: {}]
  %s6 = inlined_call_operand.hbm [shape: f32[32,128], index: 6, kind: input, shape index: {}]
  %s7 = inlined_call_operand.hbm [shape: f32[32,128], index: 7, kind: output, shape index: {}]
  %s8 = sld [smem:[#allocation0]]
  $region62: #{tpu_custom_call.1} parent=0
    _
  %s10 = ssub.s32 1, %s8
  %s11 = scalar_select 0, %s10, %s8
  %12 = sst [smem:[#allocation2]] %s5
  $region1: #{tpu_custom_call.1} parent=0
    #allocation3 [shape = 'u8[512]{0}', space=smem, size = 0x200, scoped, tag = 'input window, operand 0, single buffered']
    #allocation4 [shape = 's32[1]{0}', space=sflag, size = 0x4, scoped, tag = 'scoped memory for tpu_custom_call.1']
    #allocation5 [shape = 's32[1]{0}', space=sflag, size = 0x4, scoped, tag = 'scoped memory for tpu_custom_call.1']
    #allocation6 [shape = 's32[1]{0}', space=sflag, size = 0x4, scoped, tag = 'scoped memory for tpu_custom_call.1']
    #allocation7 [shape = 's32[1]{0}', space=sflag, size = 0x4, scoped, tag = 'scoped memory for tpu_custom_call.1']
    #allocation8 [shape = 'u8[512]{0}', space=smem, size = 0x200, scoped, tag = 'input window, operand 1, single buffered']
    #allocation9 [shape = 's32[1]{0}', space=sflag, size = 0x4, scoped, tag = 'scoped memory for tpu_custom_call.1']
    #allocation10 [shape = 'u8[4096]{0}', space=smem, size = 0x1000, scoped, tag = 'input window, operand 2, single buffered']
    #allocation11 [shape = 'u8[512]{0}', space=smem, size = 0x200, scoped, tag = 'input window, operand 3, single buffered']
    #allocation12 [shape = 'u8[512]{0}', space=smem, size = 0x200, scoped, tag = 'input window, operand 4, single buffered']
    #allocation13 [shape = 's32[1]{0}', space=sflag, size = 0x4, scoped, tag = 'scoped memory for tpu_custom_call.1']
    #allocation14 [shape = 'u8[16384]{0}', space=vmem, size = 0x4000, scoped, tag = 'input window, operand 6, single buffered']
    #allocation15 [shape = 'u8[16384]{0}', space=vmem, size = 0x4000, scoped, tag = 'output window, operand 0, single buffered']
    %13 = vsyncpa [#allocation7], 0
    %14 = vsyncpa [#allocation9], 0
    %15 = vsyncpa [#allocation6], 0
    %16 = vsyncpa [#allocation13], 0
    %17 = vsyncpa [#allocation4], 0
    %18 = vsyncpa [#allocation5], 0
    // Predicated region
    $region2: #{tpu_custom_call.1} parent=1 // pred_check
      _
    $region3: #{tpu_custom_call.1} parent=1 // pred_check_branch
      %20 = sbr.rel (0) target = $region5
    $region4: #{tpu_custom_call.1} parent=1 // pred_region
      %s22 = ssub.s32 16, 16
      %23 = vsyncadd [#allocation7], %s22
      %s25 = sshll.u32 %s0, 4
      %s26 = int_to_ptr.vmem [resolvable:$true] %s25
      %28 = dma.vmem_to_smem %s26, 16, [#allocation3], [#allocation7]
    $region5: #{tpu_custom_call.1} parent=1 // pred_fallthru
      _
    // Predicated region
    $region6: #{tpu_custom_call.1} parent=1 // pred_check
      _
    $region7: #{tpu_custom_call.1} parent=1 // pred_check_branch
      %30 = sbr.rel (0) target = $region9
    $region8: #{tpu_custom_call.1} parent=1 // pred_region
      %s32 = ssub.s32 16, 16
      %33 = vsyncadd [#allocation9], %s32
      %s35 = sshll.u32 %s1, 4
      %s36 = int_to_ptr.vmem [resolvable:$true] %s35
      %38 = dma.vmem_to_smem %s36, 16, [#allocation8], [#allocation9]
    $region9: #{tpu_custom_call.1} parent=1 // pred_fallthru
      _
    // Predicated region
    $region10: #{tpu_custom_call.1} parent=1 // pred_check
      _
    $region11: #{tpu_custom_call.1} parent=1 // pred_check_branch
      %40 = sbr.rel (0) target = $region13
    $region12: #{tpu_custom_call.1} parent=1 // pred_region
      %s42 = ssub.s32 128, 128
      %43 = vsyncadd [#allocation6], %s42
      %46 = dma.hbm_to_smem %s2, 128, [#allocation10], [#allocation6]
    $region13: #{tpu_custom_call.1} parent=1 // pred_fallthru
      _
    // Predicated region
    $region14: #{tpu_custom_call.1} parent=1 // pred_check
      _
    $region15: #{tpu_custom_call.1} parent=1 // pred_check_branch
      %48 = sbr.rel (0) target = $region17
    $region16: #{tpu_custom_call.1} parent=1 // pred_region
      %s50 = ssub.s32 16, 16
      %51 = vsyncadd [#allocation9], %s50
      %s53 = sshll.u32 %s3, 4
      %s54 = int_to_ptr.vmem [resolvable:$true] %s53
      %56 = dma.vmem_to_smem %s54, 16, [#allocation11], [#allocation9]
    $region17: #{tpu_custom_call.1} parent=1 // pred_fallthru
      _
    // Predicated region
    $region18: #{tpu_custom_call.1} parent=1 // pred_check
      _
    $region19: #{tpu_custom_call.1} parent=1 // pred_check_branch
      %58 = sbr.rel (0) target = $region21
    $region20: #{tpu_custom_call.1} parent=1 // pred_region
      %s60 = ssub.s32 16, 16
      %61 = vsyncadd [#allocation13], %s60
      %s63 = sshll.u32 %s4, 4
      %s64 = int_to_ptr.vmem [resolvable:$true] %s63
      %66 = dma.vmem_to_smem %s64, 16, [#allocation12], [#allocation13]
    $region21: #{tpu_custom_call.1} parent=1 // pred_fallthru
      _
    // Predicated region
    $region22: #{tpu_custom_call.1} parent=1 // pred_check
      _
    $region23: #{tpu_custom_call.1} parent=1 // pred_check_branch
      %68 = sbr.rel (0) target = $region25
    $region24: #{tpu_custom_call.1} parent=1 // pred_region
      _
    $region25: #{tpu_custom_call.1} parent=1 // pred_fallthru
      _
    // Predicated region
    $region26: #{tpu_custom_call.1} parent=1 // pred_check
      _
    $region27: #{tpu_custom_call.1} parent=1 // pred_check_branch
      %70 = sbr.rel (0) target = $region29
    $region28: #{tpu_custom_call.1} parent=1 // pred_region
      %s72 = ssub.s32 512, 512
      %73 = vsyncadd [#allocation4], %s72
      %s74 = sshll.u32 [#allocation14], 4
      %s75 = int_to_ptr.vmem [resolvable:$true] %s74
      %80 = dma.hbm_to_vmem [thread:$0]  %s6, 512, %s75, [#allocation4], 128, 128, 8
    $region29: #{tpu_custom_call.1} parent=1 // pred_fallthru
      _
    // Predicated region
    $region30: #{tpu_custom_call.1} parent=1 // pred_check
      _
    $region31: #{tpu_custom_call.1} parent=1 // pred_check_branch
      %82 = sbr.rel (0) target = $region33
    $region32: #{tpu_custom_call.1} parent=1 // pred_region
      %83 = dma.done [#allocation7], 16
    $region33: #{tpu_custom_call.1} parent=1 // pred_fallthru
      _
    // Predicated region
    $region34: #{tpu_custom_call.1} parent=1 // pred_check
      _
    $region35: #{tpu_custom_call.1} parent=1 // pred_check_branch
      %85 = sbr.rel (0) target = $region37
    $region36: #{tpu_custom_call.1} parent=1 // pred_region
      %86 = dma.done [#allocation9], 16
    $region37: #{tpu_custom_call.1} parent=1 // pred_fallthru
      _
    // Predicated region
    $region38: #{tpu_custom_call.1} parent=1 // pred_check
      _
    $region39: #{tpu_custom_call.1} parent=1 // pred_check_branch
      %88 = sbr.rel (0) target = $region41
    $region40: #{tpu_custom_call.1} parent=1 // pred_region
      %89 = dma.done [#allocation6], 128
    $region41: #{tpu_custom_call.1} parent=1 // pred_fallthru
      _
    // Predicated region
    $region42: #{tpu_custom_call.1} parent=1 // pred_check
      _
    $region43: #{tpu_custom_call.1} parent=1 // pred_check_branch
      %91 = sbr.rel (0) target = $region45
    $region44: #{tpu_custom_call.1} parent=1 // pred_region
      %92 = dma.done [#allocation9], 16
    $region45: #{tpu_custom_call.1} parent=1 // pred_fallthru
      _
    // Predicated region
    $region46: #{tpu_custom_call.1} parent=1 // pred_check
      _
    $region47: #{tpu_custom_call.1} parent=1 // pred_check_branch
      %94 = sbr.rel (0) target = $region49
    $region48: #{tpu_custom_call.1} parent=1 // pred_region
      %95 = dma.done [#allocation13], 16
    $region49: #{tpu_custom_call.1} parent=1 // pred_fallthru
      _
    // Predicated region
    $region50: #{tpu_custom_call.1} parent=1 // pred_check
      _
    $region51: #{tpu_custom_call.1} parent=1 // pred_check_branch
      %97 = sbr.rel (0) target = $region53
    $region52: #{tpu_custom_call.1} parent=1 // pred_region
      %98 = dma.done [#allocation4], 512
    $region53: #{tpu_custom_call.1} parent=1 // pred_fallthru
      _
    %99 = sfence
    %v100 = vld [vmem:[#allocation14] sm:$0xff]
    %v101 = vld [vmem:[#allocation14 + $0x8] sm:$0xff]
    %v102 = vld [vmem:[#allocation14 + $0x10] sm:$0xff]
    %v103 = vld [vmem:[#allocation14 + $0x18] sm:$0xff]
    %s104 = sld [smem:[#allocation11]]
    %v105 = vstv %s104
    %s106 = sld [smem:[#allocation11 + $0x1]]
    %v107 = vstv %s106
    %s108 = sld [smem:[#allocation11 + $0x2]]
    %v109 = vstv %s108
    %s110 = sld [smem:[#allocation11 + $0x3]]
    %v111 = vstv %s110
    %s112 = sld [smem:[#allocation11 + $0x4]]
    %v113 = vstv %s112
    %s114 = sld [smem:[#allocation11 + $0x5]]
    %v115 = vstv %s114
    %s116 = sld [smem:[#allocation11 + $0x6]]
    %v117 = vstv %s116
    %s118 = sld [smem:[#allocation11 + $0x7]]
    %v119 = vstv %s118
    %s120 = sld [smem:[#allocation3]]
    %v121 = vstv %s120
    %v122 = vmul.f32 %v100, %v121
    %v123 = vmul.f32 %v101, %v121
    %v124 = vmul.f32 %v102, %v121
    %v125 = vmul.f32 %v103, %v121
    %s126 = sld [smem:[#allocation8]]
    %v127 = vstv %s126
    %v128 = vadd.f32 %v122, %v127
    %v129 = vadd.f32 %v123, %v127
    %v130 = vadd.f32 %v124, %v127
    %v131 = vadd.f32 %v125, %v127
    %vm132 = vcmp.gt.f32.partialorder %v128, 0.0
    %vm133 = vcmp.gt.f32.partialorder %v129, 0.0
    %vm134 = vcmp.gt.f32.partialorder %v130, 0.0
    %vm135 = vcmp.gt.f32.partialorder %v131, 0.0
    %v136 = vsel %vm132, %v128, -0.01
    %v137 = vsel %vm133, %v129, -0.01
    %v138 = vsel %vm134, %v130, -0.01
    %v139 = vsel %vm135, %v131, -0.01
    %s140 = sld [smem:[#allocation10]]
    %v141 = vstv %s140
    %v142 = vmul.f32 %v141, %v136
    %v143 = vmul.f32 %v141, %v137
    %v144 = vmul.f32 %v141, %v138
    %v145 = vmul.f32 %v141, %v139
    %v146 = vadd.f32 %v105, %v142
    %v147 = vadd.f32 %v105, %v143
    %v148 = vadd.f32 %v105, %v144
    %v149 = vadd.f32 %v105, %v145
    %s150 = sld [smem:[#allocation10 + $0x80]]
    %v151 = vstv %s150
    %v152 = vmul.f32 %v151, %v136
    %v153 = vmul.f32 %v151, %v137
    %v154 = vmul.f32 %v151, %v138
    %v155 = vmul.f32 %v151, %v139
    %v156 = vadd.f32 %v107, %v152
    %v157 = vadd.f32 %v107, %v153
    %v158 = vadd.f32 %v107, %v154
    %v159 = vadd.f32 %v107, %v155
    %s160 = sld [smem:[#allocation10 + $0x100]]
    %v161 = vstv %s160
    %v162 = vmul.f32 %v161, %v136
    %v163 = vmul.f32 %v161, %v137
    %v164 = vmul.f32 %v161, %v138
    %v165 = vmul.f32 %v161, %v139
    %v166 = vadd.f32 %v109, %v162
    %v167 = vadd.f32 %v109, %v163
    %v168 = vadd.f32 %v109, %v164
    %v169 = vadd.f32 %v109, %v165
    %s170 = sld [smem:[#allocation10 + $0x180]]
    %v171 = vstv %s170
    %v172 = vmul.f32 %v171, %v136
    %v173 = vmul.f32 %v171, %v137
    %v174 = vmul.f32 %v171, %v138
    %v175 = vmul.f32 %v171, %v139
    %v176 = vadd.f32 %v111, %v172
    %v177 = vadd.f32 %v111, %v173
    %v178 = vadd.f32 %v111, %v174
    %v179 = vadd.f32 %v111, %v175
    %s180 = sld [smem:[#allocation10 + $0x200]]
    %v181 = vstv %s180
    %v182 = vmul.f32 %v181, %v136
    %v183 = vmul.f32 %v181, %v137
    %v184 = vmul.f32 %v181, %v138
    %v185 = vmul.f32 %v181, %v139
    %v186 = vadd.f32 %v113, %v182
    %v187 = vadd.f32 %v113, %v183
    %v188 = vadd.f32 %v113, %v184
    %v189 = vadd.f32 %v113, %v185
    %s190 = sld [smem:[#allocation10 + $0x280]]
    %v191 = vstv %s190
    %v192 = vmul.f32 %v191, %v136
    %v193 = vmul.f32 %v191, %v137
    %v194 = vmul.f32 %v191, %v138
    %v195 = vmul.f32 %v191, %v139
    %v196 = vadd.f32 %v115, %v192
    %v197 = vadd.f32 %v115, %v193
    %v198 = vadd.f32 %v115, %v194
    %v199 = vadd.f32 %v115, %v195
    %s200 = sld [smem:[#allocation10 + $0x300]]
    %v201 = vstv %s200
    %v202 = vmul.f32 %v201, %v136
    %v203 = vmul.f32 %v201, %v137
    %v204 = vmul.f32 %v201, %v138
    %v205 = vmul.f32 %v201, %v139
    %v206 = vadd.f32 %v117, %v202
    %v207 = vadd.f32 %v117, %v203
    %v208 = vadd.f32 %v117, %v204
    %v209 = vadd.f32 %v117, %v205
    %s210 = sld [smem:[#allocation10 + $0x380]]
    %v211 = vstv %s210
    %v212 = vmul.f32 %v211, %v136
    %v213 = vmul.f32 %v211, %v137
    %v214 = vmul.f32 %v211, %v138
    %v215 = vmul.f32 %v211, %v139
    %v216 = vadd.f32 %v119, %v212
    %v217 = vadd.f32 %v119, %v213
    %v218 = vadd.f32 %v119, %v214
    %v219 = vadd.f32 %v119, %v215
    %s220 = sld [smem:[#allocation3 + $0x1]]
    %v221 = vstv %s220
    %v222 = vmul.f32 %v100, %v221
    %v223 = vmul.f32 %v101, %v221
    %v224 = vmul.f32 %v102, %v221
    %v225 = vmul.f32 %v103, %v221
    %s226 = sld [smem:[#allocation8 + $0x1]]
    %v227 = vstv %s226
    %v228 = vadd.f32 %v222, %v227
    %v229 = vadd.f32 %v223, %v227
    %v230 = vadd.f32 %v224, %v227
    %v231 = vadd.f32 %v225, %v227
    %vm232 = vcmp.gt.f32.partialorder %v228, 0.0
    %vm233 = vcmp.gt.f32.partialorder %v229, 0.0
    %vm234 = vcmp.gt.f32.partialorder %v230, 0.0
    %vm235 = vcmp.gt.f32.partialorder %v231, 0.0
    %v236 = vsel %vm232, %v228, -0.01
    %v237 = vsel %vm233, %v229, -0.01
    %v238 = vsel %vm234, %v230, -0.01
    %v239 = vsel %vm235, %v231, -0.01
    %s240 = sld [smem:[#allocation10 + $0x1]]
    %v241 = vstv %s240
    %v242 = vmul.f32 %v241, %v236
    %v243 = vmul.f32 %v241, %v237
    %v244 = vmul.f32 %v241, %v238
    %v245 = vmul.f32 %v241, %v239
    %v246 = vadd.f32 %v146, %v242
    %v247 = vadd.f32 %v147, %v243
    %v248 = vadd.f32 %v148, %v244
    %v249 = vadd.f32 %v149, %v245
    %s250 = sld [smem:[#allocation10 + $0x81]]
    %v251 = vstv %s250
    %v252 = vmul.f32 %v251, %v236
    %v253 = vmul.f32 %v251, %v237
    %v254 = vmul.f32 %v251, %v238
    %v255 = vmul.f32 %v251, %v239
    %v256 = vadd.f32 %v156, %v252
    %v257 = vadd.f32 %v157, %v253
    %v258 = vadd.f32 %v158, %v254
    %v259 = vadd.f32 %v159, %v255
    %s260 = sld [smem:[#allocation10 + $0x101]]
    %v261 = vstv %s260
    %v262 = vmul.f32 %v261, %v236
    %v263 = vmul.f32 %v261, %v237
    %v264 = vmul.f32 %v261, %v238
    %v265 = vmul.f32 %v261, %v239
    %v266 = vadd.f32 %v166, %v262
    %v267 = vadd.f32 %v167, %v263
    %v268 = vadd.f32 %v168, %v264
    %v269 = vadd.f32 %v169, %v265
    %s270 = sld [smem:[#allocation10 + $0x181]]
    %v271 = vstv %s270
    %v272 = vmul.f32 %v271, %v236
    %v273 = vmul.f32 %v271, %v237
    %v274 = vmul.f32 %v271, %v238
    %v275 = vmul.f32 %v271, %v239
    %v276 = vadd.f32 %v176, %v272
    %v277 = vadd.f32 %v177, %v273
    %v278 = vadd.f32 %v178, %v274
    %v279 = vadd.f32 %v179, %v275
    %s280 = sld [smem:[#allocation10 + $0x201]]
    %v281 = vstv %s280
    %v282 = vmul.f32 %v281, %v236
    %v283 = vmul.f32 %v281, %v237
    %v284 = vmul.f32 %v281, %v238
    %v285 = vmul.f32 %v281, %v239
    %v286 = vadd.f32 %v186, %v282
    %v287 = vadd.f32 %v187, %v283
    %v288 = vadd.f32 %v188, %v284
    %v289 = vadd.f32 %v189, %v285
    %s290 = sld [smem:[#allocation10 + $0x281]]
    %v291 = vstv %s290
    %v292 = vmul.f32 %v291, %v236
    %v293 = vmul.f32 %v291, %v237
    %v294 = vmul.f32 %v291, %v238
    %v295 = vmul.f32 %v291, %v239
    %v296 = vadd.f32 %v196, %v292
    %v297 = vadd.f32 %v197, %v293
    %v298 = vadd.f32 %v198, %v294
    %v299 = vadd.f32 %v199, %v295
    %s300 = sld [smem:[#allocation10 + $0x301]]
    %v301 = vstv %s300
    %v302 = vmul.f32 %v301, %v236
    %v303 = vmul.f32 %v301, %v237
    %v304 = vmul.f32 %v301, %v238
    %v305 = vmul.f32 %v301, %v239
    %v306 = vadd.f32 %v206, %v302
    %v307 = vadd.f32 %v207, %v303
    %v308 = vadd.f32 %v208, %v304
    %v309 = vadd.f32 %v209, %v305
    %s310 = sld [smem:[#allocation10 + $0x381]]
    %v311 = vstv %s310
    %v312 = vmul.f32 %v311, %v236
    %v313 = vmul.f32 %v311, %v237
    %v314 = vmul.f32 %v311, %v238
    %v315 = vmul.f32 %v311, %v239
    %v316 = vadd.f32 %v216, %v312
    %v317 = vadd.f32 %v217, %v313
    %v318 = vadd.f32 %v218, %v314
    %v319 = vadd.f32 %v219, %v315
    %s320 = sld [smem:[#allocation3 + $0x2]]
    %v321 = vstv %s320
    %v322 = vmul.f32 %v100, %v321
    %v323 = vmul.f32 %v101, %v321
    %v324 = vmul.f32 %v102, %v321
    %v325 = vmul.f32 %v103, %v321
    %s326 = sld [smem:[#allocation8 + $0x2]]
    %v327 = vstv %s326
    %v328 = vadd.f32 %v322, %v327
    %v329 = vadd.f32 %v323, %v327
    %v330 = vadd.f32 %v324, %v327
    %v331 = vadd.f32 %v325, %v327
    %vm332 = vcmp.gt.f32.partialorder %v328, 0.0
    %vm333 = vcmp.gt.f32.partialorder %v329, 0.0
    %vm334 = vcmp.gt.f32.partialorder %v330, 0.0
    %vm335 = vcmp.gt.f32.partialorder %v331, 0.0
    %v336 = vsel %vm332, %v328, -0.01
    %v337 = vsel %vm333, %v329, -0.01
    %v338 = vsel %vm334, %v330, -0.01
    %v339 = vsel %vm335, %v331, -0.01
    %s340 = sld [smem:[#allocation10 + $0x2]]
    %v341 = vstv %s340
    %v342 = vmul.f32 %v341, %v336
    %v343 = vmul.f32 %v341, %v337
    %v344 = vmul.f32 %v341, %v338
    %v345 = vmul.f32 %v341, %v339
    %v346 = vadd.f32 %v246, %v342
    %v347 = vadd.f32 %v247, %v343
    %v348 = vadd.f32 %v248, %v344
    %v349 = vadd.f32 %v249, %v345
    %s350 = sld [smem:[#allocation10 + $0x82]]
    %v351 = vstv %s350
    %v352 = vmul.f32 %v351, %v336
    %v353 = vmul.f32 %v351, %v337
    %v354 = vmul.f32 %v351, %v338
    %v355 = vmul.f32 %v351, %v339
    %v356 = vadd.f32 %v256, %v352
    %v357 = vadd.f32 %v257, %v353
    %v358 = vadd.f32 %v258, %v354
    %v359 = vadd.f32 %v259, %v355
    %s360 = sld [smem:[#allocation10 + $0x102]]
    %v361 = vstv %s360
    %v362 = vmul.f32 %v361, %v336
    %v363 = vmul.f32 %v361, %v337
    %v364 = vmul.f32 %v361, %v338
    %v365 = vmul.f32 %v361, %v339
    %v366 = vadd.f32 %v266, %v362
    %v367 = vadd.f32 %v267, %v363
    %v368 = vadd.f32 %v268, %v364
    %v369 = vadd.f32 %v269, %v365
    %s370 = sld [smem:[#allocation10 + $0x182]]
    %v371 = vstv %s370
    %v372 = vmul.f32 %v371, %v336
    %v373 = vmul.f32 %v371, %v337
    %v374 = vmul.f32 %v371, %v338
    %v375 = vmul.f32 %v371, %v339
    %v376 = vadd.f32 %v276, %v372
    %v377 = vadd.f32 %v277, %v373
    %v378 = vadd.f32 %v278, %v374
    %v379 = vadd.f32 %v279, %v375
    %s380 = sld [smem:[#allocation10 + $0x202]]
    %v381 = vstv %s380
    %v382 = vmul.f32 %v381, %v336
    %v383 = vmul.f32 %v381, %v337
    %v384 = vmul.f32 %v381, %v338
    %v385 = vmul.f32 %v381, %v339
    %v386 = vadd.f32 %v286, %v382
    %v387 = vadd.f32 %v287, %v383
    %v388 = vadd.f32 %v288, %v384
    %v389 = vadd.f32 %v289, %v385
    %s390 = sld [smem:[#allocation10 + $0x282]]
    %v391 = vstv %s390
    %v392 = vmul.f32 %v391, %v336
    %v393 = vmul.f32 %v391, %v337
    %v394 = vmul.f32 %v391, %v338
    %v395 = vmul.f32 %v391, %v339
    %v396 = vadd.f32 %v296, %v392
    %v397 = vadd.f32 %v297, %v393
    %v398 = vadd.f32 %v298, %v394
    %v399 = vadd.f32 %v299, %v395
    %s400 = sld [smem:[#allocation10 + $0x302]]
    %v401 = vstv %s400
    %v402 = vmul.f32 %v401, %v336
    %v403 = vmul.f32 %v401, %v337
    %v404 = vmul.f32 %v401, %v338
    %v405 = vmul.f32 %v401, %v339
    %v406 = vadd.f32 %v306, %v402
    %v407 = vadd.f32 %v307, %v403
    %v408 = vadd.f32 %v308, %v404
    %v409 = vadd.f32 %v309, %v405
    %s410 = sld [smem:[#allocation10 + $0x382]]
    %v411 = vstv %s410
    %v412 = vmul.f32 %v411, %v336
    %v413 = vmul.f32 %v411, %v337
    %v414 = vmul.f32 %v411, %v338
    %v415 = vmul.f32 %v411, %v339
    %v416 = vadd.f32 %v316, %v412
    %v417 = vadd.f32 %v317, %v413
    %v418 = vadd.f32 %v318, %v414
    %v419 = vadd.f32 %v319, %v415
    %s420 = sld [smem:[#allocation3 + $0x3]]
    %v421 = vstv %s420
    %v422 = vmul.f32 %v100, %v421
    %v423 = vmul.f32 %v101, %v421
    %v424 = vmul.f32 %v102, %v421
    %v425 = vmul.f32 %v103, %v421
    %s426 = sld [smem:[#allocation8 + $0x3]]
    %v427 = vstv %s426
    %v428 = vadd.f32 %v422, %v427
    %v429 = vadd.f32 %v423, %v427
    %v430 = vadd.f32 %v424, %v427
    %v431 = vadd.f32 %v425, %v427
    %vm432 = vcmp.gt.f32.partialorder %v428, 0.0
    %vm433 = vcmp.gt.f32.partialorder %v429, 0.0
    %vm434 = vcmp.gt.f32.partialorder %v430, 0.0
    %vm435 = vcmp.gt.f32.partialorder %v431, 0.0
    %v436 = vsel %vm432, %v428, -0.01
    %v437 = vsel %vm433, %v429, -0.01
    %v438 = vsel %vm434, %v430, -0.01
    %v439 = vsel %vm435, %v431, -0.01
    %s440 = sld [smem:[#allocation10 + $0x3]]
    %v441 = vstv %s440
    %v442 = vmul.f32 %v441, %v436
    %v443 = vmul.f32 %v441, %v437
    %v444 = vmul.f32 %v441, %v438
    %v445 = vmul.f32 %v441, %v439
    %v446 = vadd.f32 %v346, %v442
    %v447 = vadd.f32 %v347, %v443
    %v448 = vadd.f32 %v348, %v444
    %v449 = vadd.f32 %v349, %v445
    %s450 = sld [smem:[#allocation10 + $0x83]]
    %v451 = vstv %s450
    %v452 = vmul.f32 %v451, %v436
    %v453 = vmul.f32 %v451, %v437
    %v454 = vmul.f32 %v451, %v438
    %v455 = vmul.f32 %v451, %v439
    %v456 = vadd.f32 %v356, %v452
    %v457 = vadd.f32 %v357, %v453
    %v458 = vadd.f32 %v358, %v454
    %v459 = vadd.f32 %v359, %v455
    %s460 = sld [smem:[#allocation10 + $0x103]]
    %v461 = vstv %s460
    %v462 = vmul.f32 %v461, %v436
    %v463 = vmul.f32 %v461, %v437
    %v464 = vmul.f32 %v461, %v438
    %v465 = vmul.f32 %v461, %v439
    %v466 = vadd.f32 %v366, %v462
    %v467 = vadd.f32 %v367, %v463
    %v468 = vadd.f32 %v368, %v464
    %v469 = vadd.f32 %v369, %v465
    %s470 = sld [smem:[#allocation10 + $0x183]]
    %v471 = vstv %s470
    %v472 = vmul.f32 %v471, %v436
    %v473 = vmul.f32 %v471, %v437
    %v474 = vmul.f32 %v471, %v438
    %v475 = vmul.f32 %v471, %v439
    %v476 = vadd.f32 %v376, %v472
    %v477 = vadd.f32 %v377, %v473
    %v478 = vadd.f32 %v378, %v474
    %v479 = vadd.f32 %v379, %v475
    %s480 = sld [smem:[#allocation10 + $0x203]]
    %v481 = vstv %s480
    %v482 = vmul.f32 %v481, %v436
    %v483 = vmul.f32 %v481, %v437
    %v484 = vmul.f32 %v481, %v438
    %v485 = vmul.f32 %v481, %v439
    %v486 = vadd.f32 %v386, %v482
    %v487 = vadd.f32 %v387, %v483
    %v488 = vadd.f32 %v388, %v484
    %v489 = vadd.f32 %v389, %v485
    %s490 = sld [smem:[#allocation10 + $0x283]]
    %v491 = vstv %s490
    %v492 = vmul.f32 %v491, %v436
    %v493 = vmul.f32 %v491, %v437
    %v494 = vmul.f32 %v491, %v438
    %v495 = vmul.f32 %v491, %v439
    %v496 = vadd.f32 %v396, %v492
    %v497 = vadd.f32 %v397, %v493
    %v498 = vadd.f32 %v398, %v494
    %v499 = vadd.f32 %v399, %v495
    %s500 = sld [smem:[#allocation10 + $0x303]]
    %v501 = vstv %s500
    %v502 = vmul.f32 %v501, %v436
    %v503 = vmul.f32 %v501, %v437
    %v504 = vmul.f32 %v501, %v438
    %v505 = vmul.f32 %v501, %v439
    %v506 = vadd.f32 %v406, %v502
    %v507 = vadd.f32 %v407, %v503
    %v508 = vadd.f32 %v408, %v504
    %v509 = vadd.f32 %v409, %v505
    %s510 = sld [smem:[#allocation10 + $0x383]]
    %v511 = vstv %s510
    %v512 = vmul.f32 %v511, %v436
    %v513 = vmul.f32 %v511, %v437
    %v514 = vmul.f32 %v511, %v438
    %v515 = vmul.f32 %v511, %v439
    %v516 = vadd.f32 %v416, %v512
    %v517 = vadd.f32 %v417, %v513
    %v518 = vadd.f32 %v418, %v514
    %v519 = vadd.f32 %v419, %v515
    %s520 = sld [smem:[#allocation3 + $0x4]]
    %v521 = vstv %s520
    %v522 = vmul.f32 %v100, %v521
    %v523 = vmul.f32 %v101, %v521
    %v524 = vmul.f32 %v102, %v521
    %v525 = vmul.f32 %v103, %v521
    %s526 = sld [smem:[#allocation8 + $0x4]]
    %v527 = vstv %s526
    %v528 = vadd.f32 %v522, %v527
    %v529 = vadd.f32 %v523, %v527
    %v530 = vadd.f32 %v524, %v527
    %v531 = vadd.f32 %v525, %v527
    %vm532 = vcmp.gt.f32.partialorder %v528, 0.0
    %vm533 = vcmp.gt.f32.partialorder %v529, 0.0
    %vm534 = vcmp.gt.f32.partialorder %v530, 0.0
    %vm535 = vcmp.gt.f32.partialorder %v531, 0.0
    %v536 = vsel %vm532, %v528, -0.01
    %v537 = vsel %vm533, %v529, -0.01
    %v538 = vsel %vm534, %v530, -0.01
    %v539 = vsel %vm535, %v531, -0.01
    %s540 = sld [smem:[#allocation10 + $0x4]]
    %v541 = vstv %s540
    %v542 = vmul.f32 %v541, %v536
    %v543 = vmul.f32 %v541, %v537
    %v544 = vmul.f32 %v541, %v538
    %v545 = vmul.f32 %v541, %v539
    %v546 = vadd.f32 %v446, %v542
    %v547 = vadd.f32 %v447, %v543
    %v548 = vadd.f32 %v448, %v544
    %v549 = vadd.f32 %v449, %v545
    %s550 = sld [smem:[#allocation10 + $0x84]]
    %v551 = vstv %s550
    %v552 = vmul.f32 %v551, %v536
    %v553 = vmul.f32 %v551, %v537
    %v554 = vmul.f32 %v551, %v538
    %v555 = vmul.f32 %v551, %v539
    %v556 = vadd.f32 %v456, %v552
    %v557 = vadd.f32 %v457, %v553
    %v558 = vadd.f32 %v458, %v554
    %v559 = vadd.f32 %v459, %v555
    %s560 = sld [smem:[#allocation10 + $0x104]]
    %v561 = vstv %s560
    %v562 = vmul.f32 %v561, %v536
    %v563 = vmul.f32 %v561, %v537
    %v564 = vmul.f32 %v561, %v538
    %v565 = vmul.f32 %v561, %v539
    %v566 = vadd.f32 %v466, %v562
    %v567 = vadd.f32 %v467, %v563
    %v568 = vadd.f32 %v468, %v564
    %v569 = vadd.f32 %v469, %v565
    %s570 = sld [smem:[#allocation10 + $0x184]]
    %v571 = vstv %s570
    %v572 = vmul.f32 %v571, %v536
    %v573 = vmul.f32 %v571, %v537
    %v574 = vmul.f32 %v571, %v538
    %v575 = vmul.f32 %v571, %v539
    %v576 = vadd.f32 %v476, %v572
    %v577 = vadd.f32 %v477, %v573
    %v578 = vadd.f32 %v478, %v574
    %v579 = vadd.f32 %v479, %v575
    %s580 = sld [smem:[#allocation10 + $0x204]]
    %v581 = vstv %s580
    %v582 = vmul.f32 %v581, %v536
    %v583 = vmul.f32 %v581, %v537
    %v584 = vmul.f32 %v581, %v538
    %v585 = vmul.f32 %v581, %v539
    %v586 = vadd.f32 %v486, %v582
    %v587 = vadd.f32 %v487, %v583
    %v588 = vadd.f32 %v488, %v584
    %v589 = vadd.f32 %v489, %v585
    %s590 = sld [smem:[#allocation10 + $0x284]]
    %v591 = vstv %s590
    %v592 = vmul.f32 %v591, %v536
    %v593 = vmul.f32 %v591, %v537
    %v594 = vmul.f32 %v591, %v538
    %v595 = vmul.f32 %v591, %v539
    %v596 = vadd.f32 %v496, %v592
    %v597 = vadd.f32 %v497, %v593
    %v598 = vadd.f32 %v498, %v594
    %v599 = vadd.f32 %v499, %v595
    %s600 = sld [smem:[#allocation10 + $0x304]]
    %v601 = vstv %s600
    %v602 = vmul.f32 %v601, %v536
    %v603 = vmul.f32 %v601, %v537
    %v604 = vmul.f32 %v601, %v538
    %v605 = vmul.f32 %v601, %v539
    %v606 = vadd.f32 %v506, %v602
    %v607 = vadd.f32 %v507, %v603
    %v608 = vadd.f32 %v508, %v604
    %v609 = vadd.f32 %v509, %v605
    %s610 = sld [smem:[#allocation10 + $0x384]]
    %v611 = vstv %s610
    %v612 = vmul.f32 %v611, %v536
    %v613 = vmul.f32 %v611, %v537
    %v614 = vmul.f32 %v611, %v538
    %v615 = vmul.f32 %v611, %v539
    %v616 = vadd.f32 %v516, %v612
    %v617 = vadd.f32 %v517, %v613
    %v618 = vadd.f32 %v518, %v614
    %v619 = vadd.f32 %v519, %v615
    %s620 = sld [smem:[#allocation3 + $0x5]]
    %v621 = vstv %s620
    %v622 = vmul.f32 %v100, %v621
    %v623 = vmul.f32 %v101, %v621
    %v624 = vmul.f32 %v102, %v621
    %v625 = vmul.f32 %v103, %v621
    %s626 = sld [smem:[#allocation8 + $0x5]]
    %v627 = vstv %s626
    %v628 = vadd.f32 %v622, %v627
    %v629 = vadd.f32 %v623, %v627
    %v630 = vadd.f32 %v624, %v627
    %v631 = vadd.f32 %v625, %v627
    %vm632 = vcmp.gt.f32.partialorder %v628, 0.0
    %vm633 = vcmp.gt.f32.partialorder %v629, 0.0
    %vm634 = vcmp.gt.f32.partialorder %v630, 0.0
    %vm635 = vcmp.gt.f32.partialorder %v631, 0.0
    %v636 = vsel %vm632, %v628, -0.01
    %v637 = vsel %vm633, %v629, -0.01
    %v638 = vsel %vm634, %v630, -0.01
    %v639 = vsel %vm635, %v631, -0.01
    %s640 = sld [smem:[#allocation10 + $0x5]]
    %v641 = vstv %s640
    %v642 = vmul.f32 %v641, %v636
    %v643 = vmul.f32 %v641, %v637
    %v644 = vmul.f32 %v641, %v638
    %v645 = vmul.f32 %v641, %v639
    %v646 = vadd.f32 %v546, %v642
    %v647 = vadd.f32 %v547, %v643
    %v648 = vadd.f32 %v548, %v644
    %v649 = vadd.f32 %v549, %v645
    %s650 = sld [smem:[#allocation10 + $0x85]]
    %v651 = vstv %s650
    %v652 = vmul.f32 %v651, %v636
    %v653 = vmul.f32 %v651, %v637
    %v654 = vmul.f32 %v651, %v638
    %v655 = vmul.f32 %v651, %v639
    %v656 = vadd.f32 %v556, %v652
    %v657 = vadd.f32 %v557, %v653
    %v658 = vadd.f32 %v558, %v654
    %v659 = vadd.f32 %v559, %v655
    %s660 = sld [smem:[#allocation10 + $0x105]]
    %v661 = vstv %s660
    %v662 = vmul.f32 %v661, %v636
    %v663 = vmul.f32 %v661, %v637
    %v664 = vmul.f32 %v661, %v638
    %v665 = vmul.f32 %v661, %v639
    %v666 = vadd.f32 %v566, %v662
    %v667 = vadd.f32 %v567, %v663
    %v668 = vadd.f32 %v568, %v664
    %v669 = vadd.f32 %v569, %v665
    %s670 = sld [smem:[#allocation10 + $0x185]]
    %v671 = vstv %s670
    %v672 = vmul.f32 %v671, %v636
    %v673 = vmul.f32 %v671, %v637
    %v674 = vmul.f32 %v671, %v638
    %v675 = vmul.f32 %v671, %v639
    %v676 = vadd.f32 %v576, %v672
    %v677 = vadd.f32 %v577, %v673
    %v678 = vadd.f32 %v578, %v674
    %v679 = vadd.f32 %v579, %v675
    %s680 = sld [smem:[#allocation10 + $0x205]]
    %v681 = vstv %s680
    %v682 = vmul.f32 %v681, %v636
    %v683 = vmul.f32 %v681, %v637
    %v684 = vmul.f32 %v681, %v638
    %v685 = vmul.f32 %v681, %v639
    %v686 = vadd.f32 %v586, %v682
    %v687 = vadd.f32 %v587, %v683
    %v688 = vadd.f32 %v588, %v684
    %v689 = vadd.f32 %v589, %v685
    %s690 = sld [smem:[#allocation10 + $0x285]]
    %v691 = vstv %s690
    %v692 = vmul.f32 %v691, %v636
    %v693 = vmul.f32 %v691, %v637
    %v694 = vmul.f32 %v691, %v638
    %v695 = vmul.f32 %v691, %v639
    %v696 = vadd.f32 %v596, %v692
    %v697 = vadd.f32 %v597, %v693
    %v698 = vadd.f32 %v598, %v694
    %v699 = vadd.f32 %v599, %v695
    %s700 = sld [smem:[#allocation10 + $0x305]]
    %v701 = vstv %s700
    %v702 = vmul.f32 %v701, %v636
    %v703 = vmul.f32 %v701, %v637
    %v704 = vmul.f32 %v701, %v638
    %v705 = vmul.f32 %v701, %v639
    %v706 = vadd.f32 %v606, %v702
    %v707 = vadd.f32 %v607, %v703
    %v708 = vadd.f32 %v608, %v704
    %v709 = vadd.f32 %v609, %v705
    %s710 = sld [smem:[#allocation10 + $0x385]]
    %v711 = vstv %s710
    %v712 = vmul.f32 %v711, %v636
    %v713 = vmul.f32 %v711, %v637
    %v714 = vmul.f32 %v711, %v638
    %v715 = vmul.f32 %v711, %v639
    %v716 = vadd.f32 %v616, %v712
    %v717 = vadd.f32 %v617, %v713
    %v718 = vadd.f32 %v618, %v714
    %v719 = vadd.f32 %v619, %v715
    %s720 = sld [smem:[#allocation3 + $0x6]]
    %v721 = vstv %s720
    %v722 = vmul.f32 %v100, %v721
    %v723 = vmul.f32 %v101, %v721
    %v724 = vmul.f32 %v102, %v721
    %v725 = vmul.f32 %v103, %v721
    %s726 = sld [smem:[#allocation8 + $0x6]]
    %v727 = vstv %s726
    %v728 = vadd.f32 %v722, %v727
    %v729 = vadd.f32 %v723, %v727
    %v730 = vadd.f32 %v724, %v727
    %v731 = vadd.f32 %v725, %v727
    %vm732 = vcmp.gt.f32.partialorder %v728, 0.0
    %vm733 = vcmp.gt.f32.partialorder %v729, 0.0
    %vm734 = vcmp.gt.f32.partialorder %v730, 0.0
    %vm735 = vcmp.gt.f32.partialorder %v731, 0.0
    %v736 = vsel %vm732, %v728, -0.01
    %v737 = vsel %vm733, %v729, -0.01
    %v738 = vsel %vm734, %v730, -0.01
    %v739 = vsel %vm735, %v731, -0.01
    %s740 = sld [smem:[#allocation10 + $0x6]]
    %v741 = vstv %s740
    %v742 = vmul.f32 %v741, %v736
    %v743 = vmul.f32 %v741, %v737
    %v744 = vmul.f32 %v741, %v738
    %v745 = vmul.f32 %v741, %v739
    %v746 = vadd.f32 %v646, %v742
    %v747 = vadd.f32 %v647, %v743
    %v748 = vadd.f32 %v648, %v744
    %v749 = vadd.f32 %v649, %v745
    %s750 = sld [smem:[#allocation10 + $0x86]]
    %v751 = vstv %s750
    %v752 = vmul.f32 %v751, %v736
    %v753 = vmul.f32 %v751, %v737
    %v754 = vmul.f32 %v751, %v738
    %v755 = vmul.f32 %v751, %v739
    %v756 = vadd.f32 %v656, %v752
    %v757 = vadd.f32 %v657, %v753
    %v758 = vadd.f32 %v658, %v754
    %v759 = vadd.f32 %v659, %v755
    %s760 = sld [smem:[#allocation10 + $0x106]]
    %v761 = vstv %s760
    %v762 = vmul.f32 %v761, %v736
    %v763 = vmul.f32 %v761, %v737
    %v764 = vmul.f32 %v761, %v738
    %v765 = vmul.f32 %v761, %v739
    %v766 = vadd.f32 %v666, %v762
    %v767 = vadd.f32 %v667, %v763
    %v768 = vadd.f32 %v668, %v764
    %v769 = vadd.f32 %v669, %v765
    %s770 = sld [smem:[#allocation10 + $0x186]]
    %v771 = vstv %s770
    %v772 = vmul.f32 %v771, %v736
    %v773 = vmul.f32 %v771, %v737
    %v774 = vmul.f32 %v771, %v738
    %v775 = vmul.f32 %v771, %v739
    %v776 = vadd.f32 %v676, %v772
    %v777 = vadd.f32 %v677, %v773
    %v778 = vadd.f32 %v678, %v774
    %v779 = vadd.f32 %v679, %v775
    %s780 = sld [smem:[#allocation10 + $0x206]]
    %v781 = vstv %s780
    %v782 = vmul.f32 %v781, %v736
    %v783 = vmul.f32 %v781, %v737
    %v784 = vmul.f32 %v781, %v738
    %v785 = vmul.f32 %v781, %v739
    %v786 = vadd.f32 %v686, %v782
    %v787 = vadd.f32 %v687, %v783
    %v788 = vadd.f32 %v688, %v784
    %v789 = vadd.f32 %v689, %v785
    %s790 = sld [smem:[#allocation10 + $0x286]]
    %v791 = vstv %s790
    %v792 = vmul.f32 %v791, %v736
    %v793 = vmul.f32 %v791, %v737
    %v794 = vmul.f32 %v791, %v738
    %v795 = vmul.f32 %v791, %v739
    %v796 = vadd.f32 %v696, %v792
    %v797 = vadd.f32 %v697, %v793
    %v798 = vadd.f32 %v698, %v794
    %v799 = vadd.f32 %v699, %v795
    %s800 = sld [smem:[#allocation10 + $0x306]]
    %v801 = vstv %s800
    %v802 = vmul.f32 %v801, %v736
    %v803 = vmul.f32 %v801, %v737
    %v804 = vmul.f32 %v801, %v738
    %v805 = vmul.f32 %v801, %v739
    %v806 = vadd.f32 %v706, %v802
    %v807 = vadd.f32 %v707, %v803
    %v808 = vadd.f32 %v708, %v804
    %v809 = vadd.f32 %v709, %v805
    %s810 = sld [smem:[#allocation10 + $0x386]]
    %v811 = vstv %s810
    %v812 = vmul.f32 %v811, %v736
    %v813 = vmul.f32 %v811, %v737
    %v814 = vmul.f32 %v811, %v738
    %v815 = vmul.f32 %v811, %v739
    %v816 = vadd.f32 %v716, %v812
    %v817 = vadd.f32 %v717, %v813
    %v818 = vadd.f32 %v718, %v814
    %v819 = vadd.f32 %v719, %v815
    %s820 = sld [smem:[#allocation3 + $0x7]]
    %v821 = vstv %s820
    %v822 = vmul.f32 %v100, %v821
    %v823 = vmul.f32 %v101, %v821
    %v824 = vmul.f32 %v102, %v821
    %v825 = vmul.f32 %v103, %v821
    %s826 = sld [smem:[#allocation8 + $0x7]]
    %v827 = vstv %s826
    %v828 = vadd.f32 %v822, %v827
    %v829 = vadd.f32 %v823, %v827
    %v830 = vadd.f32 %v824, %v827
    %v831 = vadd.f32 %v825, %v827
    %vm832 = vcmp.gt.f32.partialorder %v828, 0.0
    %vm833 = vcmp.gt.f32.partialorder %v829, 0.0
    %vm834 = vcmp.gt.f32.partialorder %v830, 0.0
    %vm835 = vcmp.gt.f32.partialorder %v831, 0.0
    %v836 = vsel %vm832, %v828, -0.01
    %v837 = vsel %vm833, %v829, -0.01
    %v838 = vsel %vm834, %v830, -0.01
    %v839 = vsel %vm835, %v831, -0.01
    %s840 = sld [smem:[#allocation10 + $0x7]]
    %v841 = vstv %s840
    %v842 = vmul.f32 %v841, %v836
    %v843 = vmul.f32 %v841, %v837
    %v844 = vmul.f32 %v841, %v838
    %v845 = vmul.f32 %v841, %v839
    %v846 = vadd.f32 %v746, %v842
    %v847 = vadd.f32 %v747, %v843
    %v848 = vadd.f32 %v748, %v844
    %v849 = vadd.f32 %v749, %v845
    %s850 = sld [smem:[#allocation10 + $0x87]]
    %v851 = vstv %s850
    %v852 = vmul.f32 %v851, %v836
    %v853 = vmul.f32 %v851, %v837
    %v854 = vmul.f32 %v851, %v838
    %v855 = vmul.f32 %v851, %v839
    %v856 = vadd.f32 %v756, %v852
    %v857 = vadd.f32 %v757, %v853
    %v858 = vadd.f32 %v758, %v854
    %v859 = vadd.f32 %v759, %v855
    %s860 = sld [smem:[#allocation10 + $0x107]]
    %v861 = vstv %s860
    %v862 = vmul.f32 %v861, %v836
    %v863 = vmul.f32 %v861, %v837
    %v864 = vmul.f32 %v861, %v838
    %v865 = vmul.f32 %v861, %v839
    %v866 = vadd.f32 %v766, %v862
    %v867 = vadd.f32 %v767, %v863
    %v868 = vadd.f32 %v768, %v864
    %v869 = vadd.f32 %v769, %v865
    %s870 = sld [smem:[#allocation10 + $0x187]]
    %v871 = vstv %s870
    %v872 = vmul.f32 %v871, %v836
    %v873 = vmul.f32 %v871, %v837
    %v874 = vmul.f32 %v871, %v838
    %v875 = vmul.f32 %v871, %v839
    %v876 = vadd.f32 %v776, %v872
    %v877 = vadd.f32 %v777, %v873
    %v878 = vadd.f32 %v778, %v874
    %v879 = vadd.f32 %v779, %v875
    %s880 = sld [smem:[#allocation10 + $0x207]]
    %v881 = vstv %s880
    %v882 = vmul.f32 %v881, %v836
    %v883 = vmul.f32 %v881, %v837
    %v884 = vmul.f32 %v881, %v838
    %v885 = vmul.f32 %v881, %v839
    %v886 = vadd.f32 %v786, %v882
    %v887 = vadd.f32 %v787, %v883
    %v888 = vadd.f32 %v788, %v884
    %v889 = vadd.f32 %v789, %v885
    %s890 = sld [smem:[#allocation10 + $0x287]]
    %v891 = vstv %s890
    %v892 = vmul.f32 %v891, %v836
    %v893 = vmul.f32 %v891, %v837
    %v894 = vmul.f32 %v891, %v838
    %v895 = vmul.f32 %v891, %v839
    %v896 = vadd.f32 %v796, %v892
    %v897 = vadd.f32 %v797, %v893
    %v898 = vadd.f32 %v798, %v894
    %v899 = vadd.f32 %v799, %v895
    %s900 = sld [smem:[#allocation10 + $0x307]]
    %v901 = vstv %s900
    %v902 = vmul.f32 %v901, %v836
    %v903 = vmul.f32 %v901, %v837
    %v904 = vmul.f32 %v901, %v838
    %v905 = vmul.f32 %v901, %v839
    %v906 = vadd.f32 %v806, %v902
    %v907 = vadd.f32 %v807, %v903
    %v908 = vadd.f32 %v808, %v904
    %v909 = vadd.f32 %v809, %v905
    %s910 = sld [smem:[#allocation10 + $0x387]]
    %v911 = vstv %s910
    %v912 = vmul.f32 %v911, %v836
    %v913 = vmul.f32 %v911, %v837
    %v914 = vmul.f32 %v911, %v838
    %v915 = vmul.f32 %v911, %v839
    %v916 = vadd.f32 %v816, %v912
    %v917 = vadd.f32 %v817, %v913
    %v918 = vadd.f32 %v818, %v914
    %v919 = vadd.f32 %v819, %v915
    %s920 = sld [smem:[#allocation3 + $0x8]]
    %v921 = vstv %s920
    %v922 = vmul.f32 %v100, %v921
    %v923 = vmul.f32 %v101, %v921
    %v924 = vmul.f32 %v102, %v921
    %v925 = vmul.f32 %v103, %v921
    %s926 = sld [smem:[#allocation8 + $0x8]]
    %v927 = vstv %s926
    %v928 = vadd.f32 %v922, %v927
    %v929 = vadd.f32 %v923, %v927
    %v930 = vadd.f32 %v924, %v927
    %v931 = vadd.f32 %v925, %v927
    %vm932 = vcmp.gt.f32.partialorder %v928, 0.0
    %vm933 = vcmp.gt.f32.partialorder %v929, 0.0
    %vm934 = vcmp.gt.f32.partialorder %v930, 0.0
    %vm935 = vcmp.gt.f32.partialorder %v931, 0.0
    %v936 = vsel %vm932, %v928, -0.01
    %v937 = vsel %vm933, %v929, -0.01
    %v938 = vsel %vm934, %v930, -0.01
    %v939 = vsel %vm935, %v931, -0.01
    %s940 = sld [smem:[#allocation10 + $0x8]]
    %v941 = vstv %s940
    %v942 = vmul.f32 %v941, %v936
    %v943 = vmul.f32 %v941, %v937
    %v944 = vmul.f32 %v941, %v938
    %v945 = vmul.f32 %v941, %v939
    %v946 = vadd.f32 %v846, %v942
    %v947 = vadd.f32 %v847, %v943
    %v948 = vadd.f32 %v848, %v944
    %v949 = vadd.f32 %v849, %v945
    %s950 = sld [smem:[#allocation10 + $0x88]]
    %v951 = vstv %s950
    %v952 = vmul.f32 %v951, %v936
    %v953 = vmul.f32 %v951, %v937
    %v954 = vmul.f32 %v951, %v938
    %v955 = vmul.f32 %v951, %v939
    %v956 = vadd.f32 %v856, %v952
    %v957 = vadd.f32 %v857, %v953
    %v958 = vadd.f32 %v858, %v954
    %v959 = vadd.f32 %v859, %v955
    %s960 = sld [smem:[#allocation10 + $0x108]]
    %v961 = vstv %s960
    %v962 = vmul.f32 %v961, %v936
    %v963 = vmul.f32 %v961, %v937
    %v964 = vmul.f32 %v961, %v938
    %v965 = vmul.f32 %v961, %v939
    %v966 = vadd.f32 %v866, %v962
    %v967 = vadd.f32 %v867, %v963
    %v968 = vadd.f32 %v868, %v964
    %v969 = vadd.f32 %v869, %v965
    %s970 = sld [smem:[#allocation10 + $0x188]]
    %v971 = vstv %s970
    %v972 = vmul.f32 %v971, %v936
    %v973 = vmul.f32 %v971, %v937
    %v974 = vmul.f32 %v971, %v938
    %v975 = vmul.f32 %v971, %v939
    %v976 = vadd.f32 %v876, %v972
    %v977 = vadd.f32 %v877, %v973
    %v978 = vadd.f32 %v878, %v974
    %v979 = vadd.f32 %v879, %v975
    %s980 = sld [smem:[#allocation10 + $0x208]]
    %v981 = vstv %s980
    %v982 = vmul.f32 %v981, %v936
    %v983 = vmul.f32 %v981, %v937
    %v984 = vmul.f32 %v981, %v938
    %v985 = vmul.f32 %v981, %v939
    %v986 = vadd.f32 %v886, %v982
    %v987 = vadd.f32 %v887, %v983
    %v988 = vadd.f32 %v888, %v984
    %v989 = vadd.f32 %v889, %v985
    %s990 = sld [smem:[#allocation10 + $0x288]]
    %v991 = vstv %s990
    %v992 = vmul.f32 %v991, %v936
    %v993 = vmul.f32 %v991, %v937
    %v994 = vmul.f32 %v991, %v938
    %v995 = vmul.f32 %v991, %v939
    %v996 = vadd.f32 %v896, %v992
    %v997 = vadd.f32 %v897, %v993
    %v998 = vadd.f32 %v898, %v994
    %v999 = vadd.f32 %v899, %v995
    %s1000 = sld [smem:[#allocation10 + $0x308]]
    %v1001 = vstv %s1000
    %v1002 = vmul.f32 %v1001, %v936
    %v1003 = vmul.f32 %v1001, %v937
    %v1004 = vmul.f32 %v1001, %v938
    %v1005 = vmul.f32 %v1001, %v939
    %v1006 = vadd.f32 %v906, %v1002
    %v1007 = vadd.f32 %v907, %v1003
    %v1008 = vadd.f32 %v908, %v1004
    %v1009 = vadd.f32 %v909, %v1005
    %s1010 = sld [smem:[#allocation10 + $0x388]]
    %v1011 = vstv %s1010
    %v1012 = vmul.f32 %v1011, %v936
    %v1013 = vmul.f32 %v1011, %v937
    %v1014 = vmul.f32 %v1011, %v938
    %v1015 = vmul.f32 %v1011, %v939
    %v1016 = vadd.f32 %v916, %v1012
    %v1017 = vadd.f32 %v917, %v1013
    %v1018 = vadd.f32 %v918, %v1014
    %v1019 = vadd.f32 %v919, %v1015
    %s1020 = sld [smem:[#allocation3 + $0x9]]
    %v1021 = vstv %s1020
    %v1022 = vmul.f32 %v100, %v1021
    %v1023 = vmul.f32 %v101, %v1021
    %v1024 = vmul.f32 %v102, %v1021
    %v1025 = vmul.f32 %v103, %v1021
    %s1026 = sld [smem:[#allocation8 + $0x9]]
    %v1027 = vstv %s1026
    %v1028 = vadd.f32 %v1022, %v1027
    %v1029 = vadd.f32 %v1023, %v1027
    %v1030 = vadd.f32 %v1024, %v1027
    %v1031 = vadd.f32 %v1025, %v1027
    %vm1032 = vcmp.gt.f32.partialorder %v1028, 0.0
    %vm1033 = vcmp.gt.f32.partialorder %v1029, 0.0
    %vm1034 = vcmp.gt.f32.partialorder %v1030, 0.0
    %vm1035 = vcmp.gt.f32.partialorder %v1031, 0.0
    %v1036 = vsel %vm1032, %v1028, -0.01
    %v1037 = vsel %vm1033, %v1029, -0.01
    %v1038 = vsel %vm1034, %v1030, -0.01
    %v1039 = vsel %vm1035, %v1031, -0.01
    %s1040 = sld [smem:[#allocation10 + $0x9]]
    %v1041 = vstv %s1040
    %v1042 = vmul.f32 %v1041, %v1036
    %v1043 = vmul.f32 %v1041, %v1037
    %v1044 = vmul.f32 %v1041, %v1038
    %v1045 = vmul.f32 %v1041, %v1039
    %v1046 = vadd.f32 %v946, %v1042
    %v1047 = vadd.f32 %v947, %v1043
    %v1048 = vadd.f32 %v948, %v1044
    %v1049 = vadd.f32 %v949, %v1045
    %s1050 = sld [smem:[#allocation10 + $0x89]]
    %v1051 = vstv %s1050
    %v1052 = vmul.f32 %v1051, %v1036
    %v1053 = vmul.f32 %v1051, %v1037
    %v1054 = vmul.f32 %v1051, %v1038
    %v1055 = vmul.f32 %v1051, %v1039
    %v1056 = vadd.f32 %v956, %v1052
    %v1057 = vadd.f32 %v957, %v1053
    %v1058 = vadd.f32 %v958, %v1054
    %v1059 = vadd.f32 %v959, %v1055
    %s1060 = sld [smem:[#allocation10 + $0x109]]
    %v1061 = vstv %s1060
    %v1062 = vmul.f32 %v1061, %v1036
    %v1063 = vmul.f32 %v1061, %v1037
    %v1064 = vmul.f32 %v1061, %v1038
    %v1065 = vmul.f32 %v1061, %v1039
    %v1066 = vadd.f32 %v966, %v1062
    %v1067 = vadd.f32 %v967, %v1063
    %v1068 = vadd.f32 %v968, %v1064
    %v1069 = vadd.f32 %v969, %v1065
    %s1070 = sld [smem:[#allocation10 + $0x189]]
    %v1071 = vstv %s1070
    %v1072 = vmul.f32 %v1071, %v1036
    %v1073 = vmul.f32 %v1071, %v1037
    %v1074 = vmul.f32 %v1071, %v1038
    %v1075 = vmul.f32 %v1071, %v1039
    %v1076 = vadd.f32 %v976, %v1072
    %v1077 = vadd.f32 %v977, %v1073
    %v1078 = vadd.f32 %v978, %v1074
    %v1079 = vadd.f32 %v979, %v1075
    %s1080 = sld [smem:[#allocation10 + $0x209]]
    %v1081 = vstv %s1080
    %v1082 = vmul.f32 %v1081, %v1036
    %v1083 = vmul.f32 %v1081, %v1037
    %v1084 = vmul.f32 %v1081, %v1038
    %v1085 = vmul.f32 %v1081, %v1039
    %v1086 = vadd.f32 %v986, %v1082
    %v1087 = vadd.f32 %v987, %v1083
    %v1088 = vadd.f32 %v988, %v1084
    %v1089 = vadd.f32 %v989, %v1085
    %s1090 = sld [smem:[#allocation10 + $0x289]]
    %v1091 = vstv %s1090
    %v1092 = vmul.f32 %v1091, %v1036
    %v1093 = vmul.f32 %v1091, %v1037
    %v1094 = vmul.f32 %v1091, %v1038
    %v1095 = vmul.f32 %v1091, %v1039
    %v1096 = vadd.f32 %v996, %v1092
    %v1097 = vadd.f32 %v997, %v1093
    %v1098 = vadd.f32 %v998, %v1094
    %v1099 = vadd.f32 %v999, %v1095
    %s1100 = sld [smem:[#allocation10 + $0x309]]
    %v1101 = vstv %s1100
    %v1102 = vmul.f32 %v1101, %v1036
    %v1103 = vmul.f32 %v1101, %v1037
    %v1104 = vmul.f32 %v1101, %v1038
    %v1105 = vmul.f32 %v1101, %v1039
    %v1106 = vadd.f32 %v1006, %v1102
    %v1107 = vadd.f32 %v1007, %v1103
    %v1108 = vadd.f32 %v1008, %v1104
    %v1109 = vadd.f32 %v1009, %v1105
    %s1110 = sld [smem:[#allocation10 + $0x389]]
    %v1111 = vstv %s1110
    %v1112 = vmul.f32 %v1111, %v1036
    %v1113 = vmul.f32 %v1111, %v1037
    %v1114 = vmul.f32 %v1111, %v1038
    %v1115 = vmul.f32 %v1111, %v1039
    %v1116 = vadd.f32 %v1016, %v1112
    %v1117 = vadd.f32 %v1017, %v1113
    %v1118 = vadd.f32 %v1018, %v1114
    %v1119 = vadd.f32 %v1019, %v1115
    %s1120 = sld [smem:[#allocation3 + $0xa]]
    %v1121 = vstv %s1120
    %v1122 = vmul.f32 %v100, %v1121
    %v1123 = vmul.f32 %v101, %v1121
    %v1124 = vmul.f32 %v102, %v1121
    %v1125 = vmul.f32 %v103, %v1121
    %s1126 = sld [smem:[#allocation8 + $0xa]]
    %v1127 = vstv %s1126
    %v1128 = vadd.f32 %v1122, %v1127
    %v1129 = vadd.f32 %v1123, %v1127
    %v1130 = vadd.f32 %v1124, %v1127
    %v1131 = vadd.f32 %v1125, %v1127
    %vm1132 = vcmp.gt.f32.partialorder %v1128, 0.0
    %vm1133 = vcmp.gt.f32.partialorder %v1129, 0.0
    %vm1134 = vcmp.gt.f32.partialorder %v1130, 0.0
    %vm1135 = vcmp.gt.f32.partialorder %v1131, 0.0
    %v1136 = vsel %vm1132, %v1128, -0.01
    %v1137 = vsel %vm1133, %v1129, -0.01
    %v1138 = vsel %vm1134, %v1130, -0.01
    %v1139 = vsel %vm1135, %v1131, -0.01
    %s1140 = sld [smem:[#allocation10 + $0xa]]
    %v1141 = vstv %s1140
    %v1142 = vmul.f32 %v1141, %v1136
    %v1143 = vmul.f32 %v1141, %v1137
    %v1144 = vmul.f32 %v1141, %v1138
    %v1145 = vmul.f32 %v1141, %v1139
    %v1146 = vadd.f32 %v1046, %v1142
    %v1147 = vadd.f32 %v1047, %v1143
    %v1148 = vadd.f32 %v1048, %v1144
    %v1149 = vadd.f32 %v1049, %v1145
    %s1150 = sld [smem:[#allocation10 + $0x8a]]
    %v1151 = vstv %s1150
    %v1152 = vmul.f32 %v1151, %v1136
    %v1153 = vmul.f32 %v1151, %v1137
    %v1154 = vmul.f32 %v1151, %v1138
    %v1155 = vmul.f32 %v1151, %v1139
    %v1156 = vadd.f32 %v1056, %v1152
    %v1157 = vadd.f32 %v1057, %v1153
    %v1158 = vadd.f32 %v1058, %v1154
    %v1159 = vadd.f32 %v1059, %v1155
    %s1160 = sld [smem:[#allocation10 + $0x10a]]
    %v1161 = vstv %s1160
    %v1162 = vmul.f32 %v1161, %v1136
    %v1163 = vmul.f32 %v1161, %v1137
    %v1164 = vmul.f32 %v1161, %v1138
    %v1165 = vmul.f32 %v1161, %v1139
    %v1166 = vadd.f32 %v1066, %v1162
    %v1167 = vadd.f32 %v1067, %v1163
    %v1168 = vadd.f32 %v1068, %v1164
    %v1169 = vadd.f32 %v1069, %v1165
    %s1170 = sld [smem:[#allocation10 + $0x18a]]
    %v1171 = vstv %s1170
    %v1172 = vmul.f32 %v1171, %v1136
    %v1173 = vmul.f32 %v1171, %v1137
    %v1174 = vmul.f32 %v1171, %v1138
    %v1175 = vmul.f32 %v1171, %v1139
    %v1176 = vadd.f32 %v1076, %v1172
    %v1177 = vadd.f32 %v1077, %v1173
    %v1178 = vadd.f32 %v1078, %v1174
    %v1179 = vadd.f32 %v1079, %v1175
    %s1180 = sld [smem:[#allocation10 + $0x20a]]
    %v1181 = vstv %s1180
    %v1182 = vmul.f32 %v1181, %v1136
    %v1183 = vmul.f32 %v1181, %v1137
    %v1184 = vmul.f32 %v1181, %v1138
    %v1185 = vmul.f32 %v1181, %v1139
    %v1186 = vadd.f32 %v1086, %v1182
    %v1187 = vadd.f32 %v1087, %v1183
    %v1188 = vadd.f32 %v1088, %v1184
    %v1189 = vadd.f32 %v1089, %v1185
    %s1190 = sld [smem:[#allocation10 + $0x28a]]
    %v1191 = vstv %s1190
    %v1192 = vmul.f32 %v1191, %v1136
    %v1193 = vmul.f32 %v1191, %v1137
    %v1194 = vmul.f32 %v1191, %v1138
    %v1195 = vmul.f32 %v1191, %v1139
    %v1196 = vadd.f32 %v1096, %v1192
    %v1197 = vadd.f32 %v1097, %v1193
    %v1198 = vadd.f32 %v1098, %v1194
    %v1199 = vadd.f32 %v1099, %v1195
    %s1200 = sld [smem:[#allocation10 + $0x30a]]
    %v1201 = vstv %s1200
    %v1202 = vmul.f32 %v1201, %v1136
    %v1203 = vmul.f32 %v1201, %v1137
    %v1204 = vmul.f32 %v1201, %v1138
    %v1205 = vmul.f32 %v1201, %v1139
    %v1206 = vadd.f32 %v1106, %v1202
    %v1207 = vadd.f32 %v1107, %v1203
    %v1208 = vadd.f32 %v1108, %v1204
    %v1209 = vadd.f32 %v1109, %v1205
    %s1210 = sld [smem:[#allocation10 + $0x38a]]
    %v1211 = vstv %s1210
    %v1212 = vmul.f32 %v1211, %v1136
    %v1213 = vmul.f32 %v1211, %v1137
    %v1214 = vmul.f32 %v1211, %v1138
    %v1215 = vmul.f32 %v1211, %v1139
    %v1216 = vadd.f32 %v1116, %v1212
    %v1217 = vadd.f32 %v1117, %v1213
    %v1218 = vadd.f32 %v1118, %v1214
    %v1219 = vadd.f32 %v1119, %v1215
    %s1220 = sld [smem:[#allocation3 + $0xb]]
    %v1221 = vstv %s1220
    %v1222 = vmul.f32 %v100, %v1221
    %v1223 = vmul.f32 %v101, %v1221
    %v1224 = vmul.f32 %v102, %v1221
    %v1225 = vmul.f32 %v103, %v1221
    %s1226 = sld [smem:[#allocation8 + $0xb]]
    %v1227 = vstv %s1226
    %v1228 = vadd.f32 %v1222, %v1227
    %v1229 = vadd.f32 %v1223, %v1227
    %v1230 = vadd.f32 %v1224, %v1227
    %v1231 = vadd.f32 %v1225, %v1227
    %vm1232 = vcmp.gt.f32.partialorder %v1228, 0.0
    %vm1233 = vcmp.gt.f32.partialorder %v1229, 0.0
    %vm1234 = vcmp.gt.f32.partialorder %v1230, 0.0
    %vm1235 = vcmp.gt.f32.partialorder %v1231, 0.0
    %v1236 = vsel %vm1232, %v1228, -0.01
    %v1237 = vsel %vm1233, %v1229, -0.01
    %v1238 = vsel %vm1234, %v1230, -0.01
    %v1239 = vsel %vm1235, %v1231, -0.01
    %s1240 = sld [smem:[#allocation10 + $0xb]]
    %v1241 = vstv %s1240
    %v1242 = vmul.f32 %v1241, %v1236
    %v1243 = vmul.f32 %v1241, %v1237
    %v1244 = vmul.f32 %v1241, %v1238
    %v1245 = vmul.f32 %v1241, %v1239
    %v1246 = vadd.f32 %v1146, %v1242
    %v1247 = vadd.f32 %v1147, %v1243
    %v1248 = vadd.f32 %v1148, %v1244
    %v1249 = vadd.f32 %v1149, %v1245
    %s1250 = sld [smem:[#allocation10 + $0x8b]]
    %v1251 = vstv %s1250
    %v1252 = vmul.f32 %v1251, %v1236
    %v1253 = vmul.f32 %v1251, %v1237
    %v1254 = vmul.f32 %v1251, %v1238
    %v1255 = vmul.f32 %v1251, %v1239
    %v1256 = vadd.f32 %v1156, %v1252
    %v1257 = vadd.f32 %v1157, %v1253
    %v1258 = vadd.f32 %v1158, %v1254
    %v1259 = vadd.f32 %v1159, %v1255
    %s1260 = sld [smem:[#allocation10 + $0x10b]]
    %v1261 = vstv %s1260
    %v1262 = vmul.f32 %v1261, %v1236
    %v1263 = vmul.f32 %v1261, %v1237
    %v1264 = vmul.f32 %v1261, %v1238
    %v1265 = vmul.f32 %v1261, %v1239
    %v1266 = vadd.f32 %v1166, %v1262
    %v1267 = vadd.f32 %v1167, %v1263
    %v1268 = vadd.f32 %v1168, %v1264
    %v1269 = vadd.f32 %v1169, %v1265
    %s1270 = sld [smem:[#allocation10 + $0x18b]]
    %v1271 = vstv %s1270
    %v1272 = vmul.f32 %v1271, %v1236
    %v1273 = vmul.f32 %v1271, %v1237
    %v1274 = vmul.f32 %v1271, %v1238
    %v1275 = vmul.f32 %v1271, %v1239
    %v1276 = vadd.f32 %v1176, %v1272
    %v1277 = vadd.f32 %v1177, %v1273
    %v1278 = vadd.f32 %v1178, %v1274
    %v1279 = vadd.f32 %v1179, %v1275
    %s1280 = sld [smem:[#allocation10 + $0x20b]]
    %v1281 = vstv %s1280
    %v1282 = vmul.f32 %v1281, %v1236
    %v1283 = vmul.f32 %v1281, %v1237
    %v1284 = vmul.f32 %v1281, %v1238
    %v1285 = vmul.f32 %v1281, %v1239
    %v1286 = vadd.f32 %v1186, %v1282
    %v1287 = vadd.f32 %v1187, %v1283
    %v1288 = vadd.f32 %v1188, %v1284
    %v1289 = vadd.f32 %v1189, %v1285
    %s1290 = sld [smem:[#allocation10 + $0x28b]]
    %v1291 = vstv %s1290
    %v1292 = vmul.f32 %v1291, %v1236
    %v1293 = vmul.f32 %v1291, %v1237
    %v1294 = vmul.f32 %v1291, %v1238
    %v1295 = vmul.f32 %v1291, %v1239
    %v1296 = vadd.f32 %v1196, %v1292
    %v1297 = vadd.f32 %v1197, %v1293
    %v1298 = vadd.f32 %v1198, %v1294
    %v1299 = vadd.f32 %v1199, %v1295
    %s1300 = sld [smem:[#allocation10 + $0x30b]]
    %v1301 = vstv %s1300
    %v1302 = vmul.f32 %v1301, %v1236
    %v1303 = vmul.f32 %v1301, %v1237
    %v1304 = vmul.f32 %v1301, %v1238
    %v1305 = vmul.f32 %v1301, %v1239
    %v1306 = vadd.f32 %v1206, %v1302
    %v1307 = vadd.f32 %v1207, %v1303
    %v1308 = vadd.f32 %v1208, %v1304
    %v1309 = vadd.f32 %v1209, %v1305
    %s1310 = sld [smem:[#allocation10 + $0x38b]]
    %v1311 = vstv %s1310
    %v1312 = vmul.f32 %v1311, %v1236
    %v1313 = vmul.f32 %v1311, %v1237
    %v1314 = vmul.f32 %v1311, %v1238
    %v1315 = vmul.f32 %v1311, %v1239
    %v1316 = vadd.f32 %v1216, %v1312
    %v1317 = vadd.f32 %v1217, %v1313
    %v1318 = vadd.f32 %v1218, %v1314
    %v1319 = vadd.f32 %v1219, %v1315
    %s1320 = sld [smem:[#allocation3 + $0xc]]
    %v1321 = vstv %s1320
    %v1322 = vmul.f32 %v100, %v1321
    %v1323 = vmul.f32 %v101, %v1321
    %v1324 = vmul.f32 %v102, %v1321
    %v1325 = vmul.f32 %v103, %v1321
    %s1326 = sld [smem:[#allocation8 + $0xc]]
    %v1327 = vstv %s1326
    %v1328 = vadd.f32 %v1322, %v1327
    %v1329 = vadd.f32 %v1323, %v1327
    %v1330 = vadd.f32 %v1324, %v1327
    %v1331 = vadd.f32 %v1325, %v1327
    %vm1332 = vcmp.gt.f32.partialorder %v1328, 0.0
    %vm1333 = vcmp.gt.f32.partialorder %v1329, 0.0
    %vm1334 = vcmp.gt.f32.partialorder %v1330, 0.0
    %vm1335 = vcmp.gt.f32.partialorder %v1331, 0.0
    %v1336 = vsel %vm1332, %v1328, -0.01
    %v1337 = vsel %vm1333, %v1329, -0.01
    %v1338 = vsel %vm1334, %v1330, -0.01
    %v1339 = vsel %vm1335, %v1331, -0.01
    %s1340 = sld [smem:[#allocation10 + $0xc]]
    %v1341 = vstv %s1340
    %v1342 = vmul.f32 %v1341, %v1336
    %v1343 = vmul.f32 %v1341, %v1337
    %v1344 = vmul.f32 %v1341, %v1338
    %v1345 = vmul.f32 %v1341, %v1339
    %v1346 = vadd.f32 %v1246, %v1342
    %v1347 = vadd.f32 %v1247, %v1343
    %v1348 = vadd.f32 %v1248, %v1344
    %v1349 = vadd.f32 %v1249, %v1345
    %s1350 = sld [smem:[#allocation10 + $0x8c]]
    %v1351 = vstv %s1350
    %v1352 = vmul.f32 %v1351, %v1336
    %v1353 = vmul.f32 %v1351, %v1337
    %v1354 = vmul.f32 %v1351, %v1338
    %v1355 = vmul.f32 %v1351, %v1339
    %v1356 = vadd.f32 %v1256, %v1352
    %v1357 = vadd.f32 %v1257, %v1353
    %v1358 = vadd.f32 %v1258, %v1354
    %v1359 = vadd.f32 %v1259, %v1355
    %s1360 = sld [smem:[#allocation10 + $0x10c]]
    %v1361 = vstv %s1360
    %v1362 = vmul.f32 %v1361, %v1336
    %v1363 = vmul.f32 %v1361, %v1337
    %v1364 = vmul.f32 %v1361, %v1338
    %v1365 = vmul.f32 %v1361, %v1339
    %v1366 = vadd.f32 %v1266, %v1362
    %v1367 = vadd.f32 %v1267, %v1363
    %v1368 = vadd.f32 %v1268, %v1364
    %v1369 = vadd.f32 %v1269, %v1365
    %s1370 = sld [smem:[#allocation10 + $0x18c]]
    %v1371 = vstv %s1370
    %v1372 = vmul.f32 %v1371, %v1336
    %v1373 = vmul.f32 %v1371, %v1337
    %v1374 = vmul.f32 %v1371, %v1338
    %v1375 = vmul.f32 %v1371, %v1339
    %v1376 = vadd.f32 %v1276, %v1372
    %v1377 = vadd.f32 %v1277, %v1373
    %v1378 = vadd.f32 %v1278, %v1374
    %v1379 = vadd.f32 %v1279, %v1375
    %s1380 = sld [smem:[#allocation10 + $0x20c]]
    %v1381 = vstv %s1380
    %v1382 = vmul.f32 %v1381, %v1336
    %v1383 = vmul.f32 %v1381, %v1337
    %v1384 = vmul.f32 %v1381, %v1338
    %v1385 = vmul.f32 %v1381, %v1339
    %v1386 = vadd.f32 %v1286, %v1382
    %v1387 = vadd.f32 %v1287, %v1383
    %v1388 = vadd.f32 %v1288, %v1384
    %v1389 = vadd.f32 %v1289, %v1385
    %s1390 = sld [smem:[#allocation10 + $0x28c]]
    %v1391 = vstv %s1390
    %v1392 = vmul.f32 %v1391, %v1336
    %v1393 = vmul.f32 %v1391, %v1337
    %v1394 = vmul.f32 %v1391, %v1338
    %v1395 = vmul.f32 %v1391, %v1339
    %v1396 = vadd.f32 %v1296, %v1392
    %v1397 = vadd.f32 %v1297, %v1393
    %v1398 = vadd.f32 %v1298, %v1394
    %v1399 = vadd.f32 %v1299, %v1395
    %s1400 = sld [smem:[#allocation10 + $0x30c]]
    %v1401 = vstv %s1400
    %v1402 = vmul.f32 %v1401, %v1336
    %v1403 = vmul.f32 %v1401, %v1337
    %v1404 = vmul.f32 %v1401, %v1338
    %v1405 = vmul.f32 %v1401, %v1339
    %v1406 = vadd.f32 %v1306, %v1402
    %v1407 = vadd.f32 %v1307, %v1403
    %v1408 = vadd.f32 %v1308, %v1404
    %v1409 = vadd.f32 %v1309, %v1405
    %s1410 = sld [smem:[#allocation10 + $0x38c]]
    %v1411 = vstv %s1410
    %v1412 = vmul.f32 %v1411, %v1336
    %v1413 = vmul.f32 %v1411, %v1337
    %v1414 = vmul.f32 %v1411, %v1338
    %v1415 = vmul.f32 %v1411, %v1339
    %v1416 = vadd.f32 %v1316, %v1412
    %v1417 = vadd.f32 %v1317, %v1413
    %v1418 = vadd.f32 %v1318, %v1414
    %v1419 = vadd.f32 %v1319, %v1415
    %s1420 = sld [smem:[#allocation3 + $0xd]]
    %v1421 = vstv %s1420
    %v1422 = vmul.f32 %v100, %v1421
    %v1423 = vmul.f32 %v101, %v1421
    %v1424 = vmul.f32 %v102, %v1421
    %v1425 = vmul.f32 %v103, %v1421
    %s1426 = sld [smem:[#allocation8 + $0xd]]
    %v1427 = vstv %s1426
    %v1428 = vadd.f32 %v1422, %v1427
    %v1429 = vadd.f32 %v1423, %v1427
    %v1430 = vadd.f32 %v1424, %v1427
    %v1431 = vadd.f32 %v1425, %v1427
    %vm1432 = vcmp.gt.f32.partialorder %v1428, 0.0
    %vm1433 = vcmp.gt.f32.partialorder %v1429, 0.0
    %vm1434 = vcmp.gt.f32.partialorder %v1430, 0.0
    %vm1435 = vcmp.gt.f32.partialorder %v1431, 0.0
    %v1436 = vsel %vm1432, %v1428, -0.01
    %v1437 = vsel %vm1433, %v1429, -0.01
    %v1438 = vsel %vm1434, %v1430, -0.01
    %v1439 = vsel %vm1435, %v1431, -0.01
    %s1440 = sld [smem:[#allocation10 + $0xd]]
    %v1441 = vstv %s1440
    %v1442 = vmul.f32 %v1441, %v1436
    %v1443 = vmul.f32 %v1441, %v1437
    %v1444 = vmul.f32 %v1441, %v1438
    %v1445 = vmul.f32 %v1441, %v1439
    %v1446 = vadd.f32 %v1346, %v1442
    %v1447 = vadd.f32 %v1347, %v1443
    %v1448 = vadd.f32 %v1348, %v1444
    %v1449 = vadd.f32 %v1349, %v1445
    %s1450 = sld [smem:[#allocation10 + $0x8d]]
    %v1451 = vstv %s1450
    %v1452 = vmul.f32 %v1451, %v1436
    %v1453 = vmul.f32 %v1451, %v1437
    %v1454 = vmul.f32 %v1451, %v1438
    %v1455 = vmul.f32 %v1451, %v1439
    %v1456 = vadd.f32 %v1356, %v1452
    %v1457 = vadd.f32 %v1357, %v1453
    %v1458 = vadd.f32 %v1358, %v1454
    %v1459 = vadd.f32 %v1359, %v1455
    %s1460 = sld [smem:[#allocation10 + $0x10d]]
    %v1461 = vstv %s1460
    %v1462 = vmul.f32 %v1461, %v1436
    %v1463 = vmul.f32 %v1461, %v1437
    %v1464 = vmul.f32 %v1461, %v1438
    %v1465 = vmul.f32 %v1461, %v1439
    %v1466 = vadd.f32 %v1366, %v1462
    %v1467 = vadd.f32 %v1367, %v1463
    %v1468 = vadd.f32 %v1368, %v1464
    %v1469 = vadd.f32 %v1369, %v1465
    %s1470 = sld [smem:[#allocation10 + $0x18d]]
    %v1471 = vstv %s1470
    %v1472 = vmul.f32 %v1471, %v1436
    %v1473 = vmul.f32 %v1471, %v1437
    %v1474 = vmul.f32 %v1471, %v1438
    %v1475 = vmul.f32 %v1471, %v1439
    %v1476 = vadd.f32 %v1376, %v1472
    %v1477 = vadd.f32 %v1377, %v1473
    %v1478 = vadd.f32 %v1378, %v1474
    %v1479 = vadd.f32 %v1379, %v1475
    %s1480 = sld [smem:[#allocation10 + $0x20d]]
    %v1481 = vstv %s1480
    %v1482 = vmul.f32 %v1481, %v1436
    %v1483 = vmul.f32 %v1481, %v1437
    %v1484 = vmul.f32 %v1481, %v1438
    %v1485 = vmul.f32 %v1481, %v1439
    %v1486 = vadd.f32 %v1386, %v1482
    %v1487 = vadd.f32 %v1387, %v1483
    %v1488 = vadd.f32 %v1388, %v1484
    %v1489 = vadd.f32 %v1389, %v1485
    %s1490 = sld [smem:[#allocation10 + $0x28d]]
    %v1491 = vstv %s1490
    %v1492 = vmul.f32 %v1491, %v1436
    %v1493 = vmul.f32 %v1491, %v1437
    %v1494 = vmul.f32 %v1491, %v1438
    %v1495 = vmul.f32 %v1491, %v1439
    %v1496 = vadd.f32 %v1396, %v1492
    %v1497 = vadd.f32 %v1397, %v1493
    %v1498 = vadd.f32 %v1398, %v1494
    %v1499 = vadd.f32 %v1399, %v1495
    %s1500 = sld [smem:[#allocation10 + $0x30d]]
    %v1501 = vstv %s1500
    %v1502 = vmul.f32 %v1501, %v1436
    %v1503 = vmul.f32 %v1501, %v1437
    %v1504 = vmul.f32 %v1501, %v1438
    %v1505 = vmul.f32 %v1501, %v1439
    %v1506 = vadd.f32 %v1406, %v1502
    %v1507 = vadd.f32 %v1407, %v1503
    %v1508 = vadd.f32 %v1408, %v1504
    %v1509 = vadd.f32 %v1409, %v1505
    %s1510 = sld [smem:[#allocation10 + $0x38d]]
    %v1511 = vstv %s1510
    %v1512 = vmul.f32 %v1511, %v1436
    %v1513 = vmul.f32 %v1511, %v1437
    %v1514 = vmul.f32 %v1511, %v1438
    %v1515 = vmul.f32 %v1511, %v1439
    %v1516 = vadd.f32 %v1416, %v1512
    %v1517 = vadd.f32 %v1417, %v1513
    %v1518 = vadd.f32 %v1418, %v1514
    %v1519 = vadd.f32 %v1419, %v1515
    %s1520 = sld [smem:[#allocation3 + $0xe]]
    %v1521 = vstv %s1520
    %v1522 = vmul.f32 %v100, %v1521
    %v1523 = vmul.f32 %v101, %v1521
    %v1524 = vmul.f32 %v102, %v1521
    %v1525 = vmul.f32 %v103, %v1521
    %s1526 = sld [smem:[#allocation8 + $0xe]]
    %v1527 = vstv %s1526
    %v1528 = vadd.f32 %v1522, %v1527
    %v1529 = vadd.f32 %v1523, %v1527
    %v1530 = vadd.f32 %v1524, %v1527
    %v1531 = vadd.f32 %v1525, %v1527
    %vm1532 = vcmp.gt.f32.partialorder %v1528, 0.0
    %vm1533 = vcmp.gt.f32.partialorder %v1529, 0.0
    %vm1534 = vcmp.gt.f32.partialorder %v1530, 0.0
    %vm1535 = vcmp.gt.f32.partialorder %v1531, 0.0
    %v1536 = vsel %vm1532, %v1528, -0.01
    %v1537 = vsel %vm1533, %v1529, -0.01
    %v1538 = vsel %vm1534, %v1530, -0.01
    %v1539 = vsel %vm1535, %v1531, -0.01
    %s1540 = sld [smem:[#allocation10 + $0xe]]
    %v1541 = vstv %s1540
    %v1542 = vmul.f32 %v1541, %v1536
    %v1543 = vmul.f32 %v1541, %v1537
    %v1544 = vmul.f32 %v1541, %v1538
    %v1545 = vmul.f32 %v1541, %v1539
    %v1546 = vadd.f32 %v1446, %v1542
    %v1547 = vadd.f32 %v1447, %v1543
    %v1548 = vadd.f32 %v1448, %v1544
    %v1549 = vadd.f32 %v1449, %v1545
    %s1550 = sld [smem:[#allocation10 + $0x8e]]
    %v1551 = vstv %s1550
    %v1552 = vmul.f32 %v1551, %v1536
    %v1553 = vmul.f32 %v1551, %v1537
    %v1554 = vmul.f32 %v1551, %v1538
    %v1555 = vmul.f32 %v1551, %v1539
    %v1556 = vadd.f32 %v1456, %v1552
    %v1557 = vadd.f32 %v1457, %v1553
    %v1558 = vadd.f32 %v1458, %v1554
    %v1559 = vadd.f32 %v1459, %v1555
    %s1560 = sld [smem:[#allocation10 + $0x10e]]
    %v1561 = vstv %s1560
    %v1562 = vmul.f32 %v1561, %v1536
    %v1563 = vmul.f32 %v1561, %v1537
    %v1564 = vmul.f32 %v1561, %v1538
    %v1565 = vmul.f32 %v1561, %v1539
    %v1566 = vadd.f32 %v1466, %v1562
    %v1567 = vadd.f32 %v1467, %v1563
    %v1568 = vadd.f32 %v1468, %v1564
    %v1569 = vadd.f32 %v1469, %v1565
    %s1570 = sld [smem:[#allocation10 + $0x18e]]
    %v1571 = vstv %s1570
    %v1572 = vmul.f32 %v1571, %v1536
    %v1573 = vmul.f32 %v1571, %v1537
    %v1574 = vmul.f32 %v1571, %v1538
    %v1575 = vmul.f32 %v1571, %v1539
    %v1576 = vadd.f32 %v1476, %v1572
    %v1577 = vadd.f32 %v1477, %v1573
    %v1578 = vadd.f32 %v1478, %v1574
    %v1579 = vadd.f32 %v1479, %v1575
    %s1580 = sld [smem:[#allocation10 + $0x20e]]
    %v1581 = vstv %s1580
    %v1582 = vmul.f32 %v1581, %v1536
    %v1583 = vmul.f32 %v1581, %v1537
    %v1584 = vmul.f32 %v1581, %v1538
    %v1585 = vmul.f32 %v1581, %v1539
    %v1586 = vadd.f32 %v1486, %v1582
    %v1587 = vadd.f32 %v1487, %v1583
    %v1588 = vadd.f32 %v1488, %v1584
    %v1589 = vadd.f32 %v1489, %v1585
    %s1590 = sld [smem:[#allocation10 + $0x28e]]
    %v1591 = vstv %s1590
    %v1592 = vmul.f32 %v1591, %v1536
    %v1593 = vmul.f32 %v1591, %v1537
    %v1594 = vmul.f32 %v1591, %v1538
    %v1595 = vmul.f32 %v1591, %v1539
    %v1596 = vadd.f32 %v1496, %v1592
    %v1597 = vadd.f32 %v1497, %v1593
    %v1598 = vadd.f32 %v1498, %v1594
    %v1599 = vadd.f32 %v1499, %v1595
    %s1600 = sld [smem:[#allocation10 + $0x30e]]
    %v1601 = vstv %s1600
    %v1602 = vmul.f32 %v1601, %v1536
    %v1603 = vmul.f32 %v1601, %v1537
    %v1604 = vmul.f32 %v1601, %v1538
    %v1605 = vmul.f32 %v1601, %v1539
    %v1606 = vadd.f32 %v1506, %v1602
    %v1607 = vadd.f32 %v1507, %v1603
    %v1608 = vadd.f32 %v1508, %v1604
    %v1609 = vadd.f32 %v1509, %v1605
    %s1610 = sld [smem:[#allocation10 + $0x38e]]
    %v1611 = vstv %s1610
    %v1612 = vmul.f32 %v1611, %v1536
    %v1613 = vmul.f32 %v1611, %v1537
    %v1614 = vmul.f32 %v1611, %v1538
    %v1615 = vmul.f32 %v1611, %v1539
    %v1616 = vadd.f32 %v1516, %v1612
    %v1617 = vadd.f32 %v1517, %v1613
    %v1618 = vadd.f32 %v1518, %v1614
    %v1619 = vadd.f32 %v1519, %v1615
    %s1620 = sld [smem:[#allocation3 + $0xf]]
    %v1621 = vstv %s1620
    %v1622 = vmul.f32 %v100, %v1621
    %v1623 = vmul.f32 %v101, %v1621
    %v1624 = vmul.f32 %v102, %v1621
    %v1625 = vmul.f32 %v103, %v1621
    %s1626 = sld [smem:[#allocation8 + $0xf]]
    %v1627 = vstv %s1626
    %v1628 = vadd.f32 %v1622, %v1627
    %v1629 = vadd.f32 %v1623, %v1627
    %v1630 = vadd.f32 %v1624, %v1627
    %v1631 = vadd.f32 %v1625, %v1627
    %vm1632 = vcmp.gt.f32.partialorder %v1628, 0.0
    %vm1633 = vcmp.gt.f32.partialorder %v1629, 0.0
    %vm1634 = vcmp.gt.f32.partialorder %v1630, 0.0
    %vm1635 = vcmp.gt.f32.partialorder %v1631, 0.0
    %v1636 = vsel %vm1632, %v1628, -0.01
    %v1637 = vsel %vm1633, %v1629, -0.01
    %v1638 = vsel %vm1634, %v1630, -0.01
    %v1639 = vsel %vm1635, %v1631, -0.01
    %s1640 = sld [smem:[#allocation10 + $0xf]]
    %v1641 = vstv %s1640
    %v1642 = vmul.f32 %v1641, %v1636
    %v1643 = vmul.f32 %v1641, %v1637
    %v1644 = vmul.f32 %v1641, %v1638
    %v1645 = vmul.f32 %v1641, %v1639
    %v1646 = vadd.f32 %v1546, %v1642
    %v1647 = vadd.f32 %v1547, %v1643
    %v1648 = vadd.f32 %v1548, %v1644
    %v1649 = vadd.f32 %v1549, %v1645
    %s1650 = sld [smem:[#allocation10 + $0x8f]]
    %v1651 = vstv %s1650
    %v1652 = vmul.f32 %v1651, %v1636
    %v1653 = vmul.f32 %v1651, %v1637
    %v1654 = vmul.f32 %v1651, %v1638
    %v1655 = vmul.f32 %v1651, %v1639
    %v1656 = vadd.f32 %v1556, %v1652
    %v1657 = vadd.f32 %v1557, %v1653
    %v1658 = vadd.f32 %v1558, %v1654
    %v1659 = vadd.f32 %v1559, %v1655
    %s1660 = sld [smem:[#allocation10 + $0x10f]]
    %v1661 = vstv %s1660
    %v1662 = vmul.f32 %v1661, %v1636
    %v1663 = vmul.f32 %v1661, %v1637
    %v1664 = vmul.f32 %v1661, %v1638
    %v1665 = vmul.f32 %v1661, %v1639
    %v1666 = vadd.f32 %v1566, %v1662
    %v1667 = vadd.f32 %v1567, %v1663
    %v1668 = vadd.f32 %v1568, %v1664
    %v1669 = vadd.f32 %v1569, %v1665
    %s1670 = sld [smem:[#allocation10 + $0x18f]]
    %v1671 = vstv %s1670
    %v1672 = vmul.f32 %v1671, %v1636
    %v1673 = vmul.f32 %v1671, %v1637
    %v1674 = vmul.f32 %v1671, %v1638
    %v1675 = vmul.f32 %v1671, %v1639
    %v1676 = vadd.f32 %v1576, %v1672
    %v1677 = vadd.f32 %v1577, %v1673
    %v1678 = vadd.f32 %v1578, %v1674
    %v1679 = vadd.f32 %v1579, %v1675
    %s1680 = sld [smem:[#allocation10 + $0x20f]]
    %v1681 = vstv %s1680
    %v1682 = vmul.f32 %v1681, %v1636
    %v1683 = vmul.f32 %v1681, %v1637
    %v1684 = vmul.f32 %v1681, %v1638
    %v1685 = vmul.f32 %v1681, %v1639
    %v1686 = vadd.f32 %v1586, %v1682
    %v1687 = vadd.f32 %v1587, %v1683
    %v1688 = vadd.f32 %v1588, %v1684
    %v1689 = vadd.f32 %v1589, %v1685
    %s1690 = sld [smem:[#allocation10 + $0x28f]]
    %v1691 = vstv %s1690
    %v1692 = vmul.f32 %v1691, %v1636
    %v1693 = vmul.f32 %v1691, %v1637
    %v1694 = vmul.f32 %v1691, %v1638
    %v1695 = vmul.f32 %v1691, %v1639
    %v1696 = vadd.f32 %v1596, %v1692
    %v1697 = vadd.f32 %v1597, %v1693
    %v1698 = vadd.f32 %v1598, %v1694
    %v1699 = vadd.f32 %v1599, %v1695
    %s1700 = sld [smem:[#allocation10 + $0x30f]]
    %v1701 = vstv %s1700
    %v1702 = vmul.f32 %v1701, %v1636
    %v1703 = vmul.f32 %v1701, %v1637
    %v1704 = vmul.f32 %v1701, %v1638
    %v1705 = vmul.f32 %v1701, %v1639
    %v1706 = vadd.f32 %v1606, %v1702
    %v1707 = vadd.f32 %v1607, %v1703
    %v1708 = vadd.f32 %v1608, %v1704
    %v1709 = vadd.f32 %v1609, %v1705
    %s1710 = sld [smem:[#allocation10 + $0x38f]]
    %v1711 = vstv %s1710
    %v1712 = vmul.f32 %v1711, %v1636
    %v1713 = vmul.f32 %v1711, %v1637
    %v1714 = vmul.f32 %v1711, %v1638
    %v1715 = vmul.f32 %v1711, %v1639
    %v1716 = vadd.f32 %v1616, %v1712
    %v1717 = vadd.f32 %v1617, %v1713
    %v1718 = vadd.f32 %v1618, %v1714
    %v1719 = vadd.f32 %v1619, %v1715
    %s1720 = sld [smem:[#allocation3 + $0x10]]
    %v1721 = vstv %s1720
    %v1722 = vmul.f32 %v100, %v1721
    %v1723 = vmul.f32 %v101, %v1721
    %v1724 = vmul.f32 %v102, %v1721
    %v1725 = vmul.f32 %v103, %v1721
    %s1726 = sld [smem:[#allocation8 + $0x10]]
    %v1727 = vstv %s1726
    %v1728 = vadd.f32 %v1722, %v1727
    %v1729 = vadd.f32 %v1723, %v1727
    %v1730 = vadd.f32 %v1724, %v1727
    %v1731 = vadd.f32 %v1725, %v1727
    %vm1732 = vcmp.gt.f32.partialorder %v1728, 0.0
    %vm1733 = vcmp.gt.f32.partialorder %v1729, 0.0
    %vm1734 = vcmp.gt.f32.partialorder %v1730, 0.0
    %vm1735 = vcmp.gt.f32.partialorder %v1731, 0.0
    %v1736 = vsel %vm1732, %v1728, -0.01
    %v1737 = vsel %vm1733, %v1729, -0.01
    %v1738 = vsel %vm1734, %v1730, -0.01
    %v1739 = vsel %vm1735, %v1731, -0.01
    %s1740 = sld [smem:[#allocation10 + $0x10]]
    %v1741 = vstv %s1740
    %v1742 = vmul.f32 %v1741, %v1736
    %v1743 = vmul.f32 %v1741, %v1737
    %v1744 = vmul.f32 %v1741, %v1738
    %v1745 = vmul.f32 %v1741, %v1739
    %v1746 = vadd.f32 %v1646, %v1742
    %v1747 = vadd.f32 %v1647, %v1743
    %v1748 = vadd.f32 %v1648, %v1744
    %v1749 = vadd.f32 %v1649, %v1745
    %s1750 = sld [smem:[#allocation10 + $0x90]]
    %v1751 = vstv %s1750
    %v1752 = vmul.f32 %v1751, %v1736
    %v1753 = vmul.f32 %v1751, %v1737
    %v1754 = vmul.f32 %v1751, %v1738
    %v1755 = vmul.f32 %v1751, %v1739
    %v1756 = vadd.f32 %v1656, %v1752
    %v1757 = vadd.f32 %v1657, %v1753
    %v1758 = vadd.f32 %v1658, %v1754
    %v1759 = vadd.f32 %v1659, %v1755
    %s1760 = sld [smem:[#allocation10 + $0x110]]
    %v1761 = vstv %s1760
    %v1762 = vmul.f32 %v1761, %v1736
    %v1763 = vmul.f32 %v1761, %v1737
    %v1764 = vmul.f32 %v1761, %v1738
    %v1765 = vmul.f32 %v1761, %v1739
    %v1766 = vadd.f32 %v1666, %v1762
    %v1767 = vadd.f32 %v1667, %v1763
    %v1768 = vadd.f32 %v1668, %v1764
    %v1769 = vadd.f32 %v1669, %v1765
    %s1770 = sld [smem:[#allocation10 + $0x190]]
    %v1771 = vstv %s1770
    %v1772 = vmul.f32 %v1771, %v1736
    %v1773 = vmul.f32 %v1771, %v1737
    %v1774 = vmul.f32 %v1771, %v1738
    %v1775 = vmul.f32 %v1771, %v1739
    %v1776 = vadd.f32 %v1676, %v1772
    %v1777 = vadd.f32 %v1677, %v1773
    %v1778 = vadd.f32 %v1678, %v1774
    %v1779 = vadd.f32 %v1679, %v1775
    %s1780 = sld [smem:[#allocation10 + $0x210]]
    %v1781 = vstv %s1780
    %v1782 = vmul.f32 %v1781, %v1736
    %v1783 = vmul.f32 %v1781, %v1737
    %v1784 = vmul.f32 %v1781, %v1738
    %v1785 = vmul.f32 %v1781, %v1739
    %v1786 = vadd.f32 %v1686, %v1782
    %v1787 = vadd.f32 %v1687, %v1783
    %v1788 = vadd.f32 %v1688, %v1784
    %v1789 = vadd.f32 %v1689, %v1785
    %s1790 = sld [smem:[#allocation10 + $0x290]]
    %v1791 = vstv %s1790
    %v1792 = vmul.f32 %v1791, %v1736
    %v1793 = vmul.f32 %v1791, %v1737
    %v1794 = vmul.f32 %v1791, %v1738
    %v1795 = vmul.f32 %v1791, %v1739
    %v1796 = vadd.f32 %v1696, %v1792
    %v1797 = vadd.f32 %v1697, %v1793
    %v1798 = vadd.f32 %v1698, %v1794
    %v1799 = vadd.f32 %v1699, %v1795
    %s1800 = sld [smem:[#allocation10 + $0x310]]
    %v1801 = vstv %s1800
    %v1802 = vmul.f32 %v1801, %v1736
    %v1803 = vmul.f32 %v1801, %v1737
    %v1804 = vmul.f32 %v1801, %v1738
    %v1805 = vmul.f32 %v1801, %v1739
    %v1806 = vadd.f32 %v1706, %v1802
    %v1807 = vadd.f32 %v1707, %v1803
    %v1808 = vadd.f32 %v1708, %v1804
    %v1809 = vadd.f32 %v1709, %v1805
    %s1810 = sld [smem:[#allocation10 + $0x390]]
    %v1811 = vstv %s1810
    %v1812 = vmul.f32 %v1811, %v1736
    %v1813 = vmul.f32 %v1811, %v1737
    %v1814 = vmul.f32 %v1811, %v1738
    %v1815 = vmul.f32 %v1811, %v1739
    %v1816 = vadd.f32 %v1716, %v1812
    %v1817 = vadd.f32 %v1717, %v1813
    %v1818 = vadd.f32 %v1718, %v1814
    %v1819 = vadd.f32 %v1719, %v1815
    %s1820 = sld [smem:[#allocation3 + $0x11]]
    %v1821 = vstv %s1820
    %v1822 = vmul.f32 %v100, %v1821
    %v1823 = vmul.f32 %v101, %v1821
    %v1824 = vmul.f32 %v102, %v1821
    %v1825 = vmul.f32 %v103, %v1821
    %s1826 = sld [smem:[#allocation8 + $0x11]]
    %v1827 = vstv %s1826
    %v1828 = vadd.f32 %v1822, %v1827
    %v1829 = vadd.f32 %v1823, %v1827
    %v1830 = vadd.f32 %v1824, %v1827
    %v1831 = vadd.f32 %v1825, %v1827
    %vm1832 = vcmp.gt.f32.partialorder %v1828, 0.0
    %vm1833 = vcmp.gt.f32.partialorder %v1829, 0.0
    %vm1834 = vcmp.gt.f32.partialorder %v1830, 0.0
    %vm1835 = vcmp.gt.f32.partialorder %v1831, 0.0
    %v1836 = vsel %vm1832, %v1828, -0.01
    %v1837 = vsel %vm1833, %v1829, -0.01
    %v1838 = vsel %vm1834, %v1830, -0.01
    %v1839 = vsel %vm1835, %v1831, -0.01
    %s1840 = sld [smem:[#allocation10 + $0x11]]
    %v1841 = vstv %s1840
    %v1842 = vmul.f32 %v1841, %v1836
    %v1843 = vmul.f32 %v1841, %v1837
    %v1844 = vmul.f32 %v1841, %v1838
    %v1845 = vmul.f32 %v1841, %v1839
    %v1846 = vadd.f32 %v1746, %v1842
    %v1847 = vadd.f32 %v1747, %v1843
    %v1848 = vadd.f32 %v1748, %v1844
    %v1849 = vadd.f32 %v1749, %v1845
    %s1850 = sld [smem:[#allocation10 + $0x91]]
    %v1851 = vstv %s1850
    %v1852 = vmul.f32 %v1851, %v1836
    %v1853 = vmul.f32 %v1851, %v1837
    %v1854 = vmul.f32 %v1851, %v1838
    %v1855 = vmul.f32 %v1851, %v1839
    %v1856 = vadd.f32 %v1756, %v1852
    %v1857 = vadd.f32 %v1757, %v1853
    %v1858 = vadd.f32 %v1758, %v1854
    %v1859 = vadd.f32 %v1759, %v1855
    %s1860 = sld [smem:[#allocation10 + $0x111]]
    %v1861 = vstv %s1860
    %v1862 = vmul.f32 %v1861, %v1836
    %v1863 = vmul.f32 %v1861, %v1837
    %v1864 = vmul.f32 %v1861, %v1838
    %v1865 = vmul.f32 %v1861, %v1839
    %v1866 = vadd.f32 %v1766, %v1862
    %v1867 = vadd.f32 %v1767, %v1863
    %v1868 = vadd.f32 %v1768, %v1864
    %v1869 = vadd.f32 %v1769, %v1865
    %s1870 = sld [smem:[#allocation10 + $0x191]]
    %v1871 = vstv %s1870
    %v1872 = vmul.f32 %v1871, %v1836
    %v1873 = vmul.f32 %v1871, %v1837
    %v1874 = vmul.f32 %v1871, %v1838
    %v1875 = vmul.f32 %v1871, %v1839
    %v1876 = vadd.f32 %v1776, %v1872
    %v1877 = vadd.f32 %v1777, %v1873
    %v1878 = vadd.f32 %v1778, %v1874
    %v1879 = vadd.f32 %v1779, %v1875
    %s1880 = sld [smem:[#allocation10 + $0x211]]
    %v1881 = vstv %s1880
    %v1882 = vmul.f32 %v1881, %v1836
    %v1883 = vmul.f32 %v1881, %v1837
    %v1884 = vmul.f32 %v1881, %v1838
    %v1885 = vmul.f32 %v1881, %v1839
    %v1886 = vadd.f32 %v1786, %v1882
    %v1887 = vadd.f32 %v1787, %v1883
    %v1888 = vadd.f32 %v1788, %v1884
    %v1889 = vadd.f32 %v1789, %v1885
    %s1890 = sld [smem:[#allocation10 + $0x291]]
    %v1891 = vstv %s1890
    %v1892 = vmul.f32 %v1891, %v1836
    %v1893 = vmul.f32 %v1891, %v1837
    %v1894 = vmul.f32 %v1891, %v1838
    %v1895 = vmul.f32 %v1891, %v1839
    %v1896 = vadd.f32 %v1796, %v1892
    %v1897 = vadd.f32 %v1797, %v1893
    %v1898 = vadd.f32 %v1798, %v1894
    %v1899 = vadd.f32 %v1799, %v1895
    %s1900 = sld [smem:[#allocation10 + $0x311]]
    %v1901 = vstv %s1900
    %v1902 = vmul.f32 %v1901, %v1836
    %v1903 = vmul.f32 %v1901, %v1837
    %v1904 = vmul.f32 %v1901, %v1838
    %v1905 = vmul.f32 %v1901, %v1839
    %v1906 = vadd.f32 %v1806, %v1902
    %v1907 = vadd.f32 %v1807, %v1903
    %v1908 = vadd.f32 %v1808, %v1904
    %v1909 = vadd.f32 %v1809, %v1905
    %s1910 = sld [smem:[#allocation10 + $0x391]]
    %v1911 = vstv %s1910
    %v1912 = vmul.f32 %v1911, %v1836
    %v1913 = vmul.f32 %v1911, %v1837
    %v1914 = vmul.f32 %v1911, %v1838
    %v1915 = vmul.f32 %v1911, %v1839
    %v1916 = vadd.f32 %v1816, %v1912
    %v1917 = vadd.f32 %v1817, %v1913
    %v1918 = vadd.f32 %v1818, %v1914
    %v1919 = vadd.f32 %v1819, %v1915
    %s1920 = sld [smem:[#allocation3 + $0x12]]
    %v1921 = vstv %s1920
    %v1922 = vmul.f32 %v100, %v1921
    %v1923 = vmul.f32 %v101, %v1921
    %v1924 = vmul.f32 %v102, %v1921
    %v1925 = vmul.f32 %v103, %v1921
    %s1926 = sld [smem:[#allocation8 + $0x12]]
    %v1927 = vstv %s1926
    %v1928 = vadd.f32 %v1922, %v1927
    %v1929 = vadd.f32 %v1923, %v1927
    %v1930 = vadd.f32 %v1924, %v1927
    %v1931 = vadd.f32 %v1925, %v1927
    %vm1932 = vcmp.gt.f32.partialorder %v1928, 0.0
    %vm1933 = vcmp.gt.f32.partialorder %v1929, 0.0
    %vm1934 = vcmp.gt.f32.partialorder %v1930, 0.0
    %vm1935 = vcmp.gt.f32.partialorder %v1931, 0.0
    %v1936 = vsel %vm1932, %v1928, -0.01
    %v1937 = vsel %vm1933, %v1929, -0.01
    %v1938 = vsel %vm1934, %v1930, -0.01
    %v1939 = vsel %vm1935, %v1931, -0.01
    %s1940 = sld [smem:[#allocation10 + $0x12]]
    %v1941 = vstv %s1940
    %v1942 = vmul.f32 %v1941, %v1936
    %v1943 = vmul.f32 %v1941, %v1937
    %v1944 = vmul.f32 %v1941, %v1938
    %v1945 = vmul.f32 %v1941, %v1939
    %v1946 = vadd.f32 %v1846, %v1942
    %v1947 = vadd.f32 %v1847, %v1943
    %v1948 = vadd.f32 %v1848, %v1944
    %v1949 = vadd.f32 %v1849, %v1945
    %s1950 = sld [smem:[#allocation10 + $0x92]]
    %v1951 = vstv %s1950
    %v1952 = vmul.f32 %v1951, %v1936
    %v1953 = vmul.f32 %v1951, %v1937
    %v1954 = vmul.f32 %v1951, %v1938
    %v1955 = vmul.f32 %v1951, %v1939
    %v1956 = vadd.f32 %v1856, %v1952
    %v1957 = vadd.f32 %v1857, %v1953
    %v1958 = vadd.f32 %v1858, %v1954
    %v1959 = vadd.f32 %v1859, %v1955
    %s1960 = sld [smem:[#allocation10 + $0x112]]
    %v1961 = vstv %s1960
    %v1962 = vmul.f32 %v1961, %v1936
    %v1963 = vmul.f32 %v1961, %v1937
    %v1964 = vmul.f32 %v1961, %v1938
    %v1965 = vmul.f32 %v1961, %v1939
    %v1966 = vadd.f32 %v1866, %v1962
    %v1967 = vadd.f32 %v1867, %v1963
    %v1968 = vadd.f32 %v1868, %v1964
    %v1969 = vadd.f32 %v1869, %v1965
    %s1970 = sld [smem:[#allocation10 + $0x192]]
    %v1971 = vstv %s1970
    %v1972 = vmul.f32 %v1971, %v1936
    %v1973 = vmul.f32 %v1971, %v1937
    %v1974 = vmul.f32 %v1971, %v1938
    %v1975 = vmul.f32 %v1971, %v1939
    %v1976 = vadd.f32 %v1876, %v1972
    %v1977 = vadd.f32 %v1877, %v1973
    %v1978 = vadd.f32 %v1878, %v1974
    %v1979 = vadd.f32 %v1879, %v1975
    %s1980 = sld [smem:[#allocation10 + $0x212]]
    %v1981 = vstv %s1980
    %v1982 = vmul.f32 %v1981, %v1936
    %v1983 = vmul.f32 %v1981, %v1937
    %v1984 = vmul.f32 %v1981, %v1938
    %v1985 = vmul.f32 %v1981, %v1939
    %v1986 = vadd.f32 %v1886, %v1982
    %v1987 = vadd.f32 %v1887, %v1983
    %v1988 = vadd.f32 %v1888, %v1984
    %v1989 = vadd.f32 %v1889, %v1985
    %s1990 = sld [smem:[#allocation10 + $0x292]]
    %v1991 = vstv %s1990
    %v1992 = vmul.f32 %v1991, %v1936
    %v1993 = vmul.f32 %v1991, %v1937
    %v1994 = vmul.f32 %v1991, %v1938
    %v1995 = vmul.f32 %v1991, %v1939
    %v1996 = vadd.f32 %v1896, %v1992
    %v1997 = vadd.f32 %v1897, %v1993
    %v1998 = vadd.f32 %v1898, %v1994
    %v1999 = vadd.f32 %v1899, %v1995
    %s2000 = sld [smem:[#allocation10 + $0x312]]
    %v2001 = vstv %s2000
    %v2002 = vmul.f32 %v2001, %v1936
    %v2003 = vmul.f32 %v2001, %v1937
    %v2004 = vmul.f32 %v2001, %v1938
    %v2005 = vmul.f32 %v2001, %v1939
    %v2006 = vadd.f32 %v1906, %v2002
    %v2007 = vadd.f32 %v1907, %v2003
    %v2008 = vadd.f32 %v1908, %v2004
    %v2009 = vadd.f32 %v1909, %v2005
    %s2010 = sld [smem:[#allocation10 + $0x392]]
    %v2011 = vstv %s2010
    %v2012 = vmul.f32 %v2011, %v1936
    %v2013 = vmul.f32 %v2011, %v1937
    %v2014 = vmul.f32 %v2011, %v1938
    %v2015 = vmul.f32 %v2011, %v1939
    %v2016 = vadd.f32 %v1916, %v2012
    %v2017 = vadd.f32 %v1917, %v2013
    %v2018 = vadd.f32 %v1918, %v2014
    %v2019 = vadd.f32 %v1919, %v2015
    %s2020 = sld [smem:[#allocation3 + $0x13]]
    %v2021 = vstv %s2020
    %v2022 = vmul.f32 %v100, %v2021
    %v2023 = vmul.f32 %v101, %v2021
    %v2024 = vmul.f32 %v102, %v2021
    %v2025 = vmul.f32 %v103, %v2021
    %s2026 = sld [smem:[#allocation8 + $0x13]]
    %v2027 = vstv %s2026
    %v2028 = vadd.f32 %v2022, %v2027
    %v2029 = vadd.f32 %v2023, %v2027
    %v2030 = vadd.f32 %v2024, %v2027
    %v2031 = vadd.f32 %v2025, %v2027
    %vm2032 = vcmp.gt.f32.partialorder %v2028, 0.0
    %vm2033 = vcmp.gt.f32.partialorder %v2029, 0.0
    %vm2034 = vcmp.gt.f32.partialorder %v2030, 0.0
    %vm2035 = vcmp.gt.f32.partialorder %v2031, 0.0
    %v2036 = vsel %vm2032, %v2028, -0.01
    %v2037 = vsel %vm2033, %v2029, -0.01
    %v2038 = vsel %vm2034, %v2030, -0.01
    %v2039 = vsel %vm2035, %v2031, -0.01
    %s2040 = sld [smem:[#allocation10 + $0x13]]
    %v2041 = vstv %s2040
    %v2042 = vmul.f32 %v2041, %v2036
    %v2043 = vmul.f32 %v2041, %v2037
    %v2044 = vmul.f32 %v2041, %v2038
    %v2045 = vmul.f32 %v2041, %v2039
    %v2046 = vadd.f32 %v1946, %v2042
    %v2047 = vadd.f32 %v1947, %v2043
    %v2048 = vadd.f32 %v1948, %v2044
    %v2049 = vadd.f32 %v1949, %v2045
    %s2050 = sld [smem:[#allocation10 + $0x93]]
    %v2051 = vstv %s2050
    %v2052 = vmul.f32 %v2051, %v2036
    %v2053 = vmul.f32 %v2051, %v2037
    %v2054 = vmul.f32 %v2051, %v2038
    %v2055 = vmul.f32 %v2051, %v2039
    %v2056 = vadd.f32 %v1956, %v2052
    %v2057 = vadd.f32 %v1957, %v2053
    %v2058 = vadd.f32 %v1958, %v2054
    %v2059 = vadd.f32 %v1959, %v2055
    %s2060 = sld [smem:[#allocation10 + $0x113]]
    %v2061 = vstv %s2060
    %v2062 = vmul.f32 %v2061, %v2036
    %v2063 = vmul.f32 %v2061, %v2037
    %v2064 = vmul.f32 %v2061, %v2038
    %v2065 = vmul.f32 %v2061, %v2039
    %v2066 = vadd.f32 %v1966, %v2062
    %v2067 = vadd.f32 %v1967, %v2063
    %v2068 = vadd.f32 %v1968, %v2064
    %v2069 = vadd.f32 %v1969, %v2065
    %s2070 = sld [smem:[#allocation10 + $0x193]]
    %v2071 = vstv %s2070
    %v2072 = vmul.f32 %v2071, %v2036
    %v2073 = vmul.f32 %v2071, %v2037
    %v2074 = vmul.f32 %v2071, %v2038
    %v2075 = vmul.f32 %v2071, %v2039
    %v2076 = vadd.f32 %v1976, %v2072
    %v2077 = vadd.f32 %v1977, %v2073
    %v2078 = vadd.f32 %v1978, %v2074
    %v2079 = vadd.f32 %v1979, %v2075
    %s2080 = sld [smem:[#allocation10 + $0x213]]
    %v2081 = vstv %s2080
    %v2082 = vmul.f32 %v2081, %v2036
    %v2083 = vmul.f32 %v2081, %v2037
    %v2084 = vmul.f32 %v2081, %v2038
    %v2085 = vmul.f32 %v2081, %v2039
    %v2086 = vadd.f32 %v1986, %v2082
    %v2087 = vadd.f32 %v1987, %v2083
    %v2088 = vadd.f32 %v1988, %v2084
    %v2089 = vadd.f32 %v1989, %v2085
    %s2090 = sld [smem:[#allocation10 + $0x293]]
    %v2091 = vstv %s2090
    %v2092 = vmul.f32 %v2091, %v2036
    %v2093 = vmul.f32 %v2091, %v2037
    %v2094 = vmul.f32 %v2091, %v2038
    %v2095 = vmul.f32 %v2091, %v2039
    %v2096 = vadd.f32 %v1996, %v2092
    %v2097 = vadd.f32 %v1997, %v2093
    %v2098 = vadd.f32 %v1998, %v2094
    %v2099 = vadd.f32 %v1999, %v2095
    %s2100 = sld [smem:[#allocation10 + $0x313]]
    %v2101 = vstv %s2100
    %v2102 = vmul.f32 %v2101, %v2036
    %v2103 = vmul.f32 %v2101, %v2037
    %v2104 = vmul.f32 %v2101, %v2038
    %v2105 = vmul.f32 %v2101, %v2039
    %v2106 = vadd.f32 %v2006, %v2102
    %v2107 = vadd.f32 %v2007, %v2103
    %v2108 = vadd.f32 %v2008, %v2104
    %v2109 = vadd.f32 %v2009, %v2105
    %s2110 = sld [smem:[#allocation10 + $0x393]]
    %v2111 = vstv %s2110
    %v2112 = vmul.f32 %v2111, %v2036
    %v2113 = vmul.f32 %v2111, %v2037
    %v2114 = vmul.f32 %v2111, %v2038
    %v2115 = vmul.f32 %v2111, %v2039
    %v2116 = vadd.f32 %v2016, %v2112
    %v2117 = vadd.f32 %v2017, %v2113
    %v2118 = vadd.f32 %v2018, %v2114
    %v2119 = vadd.f32 %v2019, %v2115
    %s2120 = sld [smem:[#allocation3 + $0x14]]
    %v2121 = vstv %s2120
    %v2122 = vmul.f32 %v100, %v2121
    %v2123 = vmul.f32 %v101, %v2121
    %v2124 = vmul.f32 %v102, %v2121
    %v2125 = vmul.f32 %v103, %v2121
    %s2126 = sld [smem:[#allocation8 + $0x14]]
    %v2127 = vstv %s2126
    %v2128 = vadd.f32 %v2122, %v2127
    %v2129 = vadd.f32 %v2123, %v2127
    %v2130 = vadd.f32 %v2124, %v2127
    %v2131 = vadd.f32 %v2125, %v2127
    %vm2132 = vcmp.gt.f32.partialorder %v2128, 0.0
    %vm2133 = vcmp.gt.f32.partialorder %v2129, 0.0
    %vm2134 = vcmp.gt.f32.partialorder %v2130, 0.0
    %vm2135 = vcmp.gt.f32.partialorder %v2131, 0.0
    %v2136 = vsel %vm2132, %v2128, -0.01
    %v2137 = vsel %vm2133, %v2129, -0.01
    %v2138 = vsel %vm2134, %v2130, -0.01
    %v2139 = vsel %vm2135, %v2131, -0.01
    %s2140 = sld [smem:[#allocation10 + $0x14]]
    %v2141 = vstv %s2140
    %v2142 = vmul.f32 %v2141, %v2136
    %v2143 = vmul.f32 %v2141, %v2137
    %v2144 = vmul.f32 %v2141, %v2138
    %v2145 = vmul.f32 %v2141, %v2139
    %v2146 = vadd.f32 %v2046, %v2142
    %v2147 = vadd.f32 %v2047, %v2143
    %v2148 = vadd.f32 %v2048, %v2144
    %v2149 = vadd.f32 %v2049, %v2145
    %s2150 = sld [smem:[#allocation10 + $0x94]]
    %v2151 = vstv %s2150
    %v2152 = vmul.f32 %v2151, %v2136
    %v2153 = vmul.f32 %v2151, %v2137
    %v2154 = vmul.f32 %v2151, %v2138
    %v2155 = vmul.f32 %v2151, %v2139
    %v2156 = vadd.f32 %v2056, %v2152
    %v2157 = vadd.f32 %v2057, %v2153
    %v2158 = vadd.f32 %v2058, %v2154
    %v2159 = vadd.f32 %v2059, %v2155
    %s2160 = sld [smem:[#allocation10 + $0x114]]
    %v2161 = vstv %s2160
    %v2162 = vmul.f32 %v2161, %v2136
    %v2163 = vmul.f32 %v2161, %v2137
    %v2164 = vmul.f32 %v2161, %v2138
    %v2165 = vmul.f32 %v2161, %v2139
    %v2166 = vadd.f32 %v2066, %v2162
    %v2167 = vadd.f32 %v2067, %v2163
    %v2168 = vadd.f32 %v2068, %v2164
    %v2169 = vadd.f32 %v2069, %v2165
    %s2170 = sld [smem:[#allocation10 + $0x194]]
    %v2171 = vstv %s2170
    %v2172 = vmul.f32 %v2171, %v2136
    %v2173 = vmul.f32 %v2171, %v2137
    %v2174 = vmul.f32 %v2171, %v2138
    %v2175 = vmul.f32 %v2171, %v2139
    %v2176 = vadd.f32 %v2076, %v2172
    %v2177 = vadd.f32 %v2077, %v2173
    %v2178 = vadd.f32 %v2078, %v2174
    %v2179 = vadd.f32 %v2079, %v2175
    %s2180 = sld [smem:[#allocation10 + $0x214]]
    %v2181 = vstv %s2180
    %v2182 = vmul.f32 %v2181, %v2136
    %v2183 = vmul.f32 %v2181, %v2137
    %v2184 = vmul.f32 %v2181, %v2138
    %v2185 = vmul.f32 %v2181, %v2139
    %v2186 = vadd.f32 %v2086, %v2182
    %v2187 = vadd.f32 %v2087, %v2183
    %v2188 = vadd.f32 %v2088, %v2184
    %v2189 = vadd.f32 %v2089, %v2185
    %s2190 = sld [smem:[#allocation10 + $0x294]]
    %v2191 = vstv %s2190
    %v2192 = vmul.f32 %v2191, %v2136
    %v2193 = vmul.f32 %v2191, %v2137
    %v2194 = vmul.f32 %v2191, %v2138
    %v2195 = vmul.f32 %v2191, %v2139
    %v2196 = vadd.f32 %v2096, %v2192
    %v2197 = vadd.f32 %v2097, %v2193
    %v2198 = vadd.f32 %v2098, %v2194
    %v2199 = vadd.f32 %v2099, %v2195
    %s2200 = sld [smem:[#allocation10 + $0x314]]
    %v2201 = vstv %s2200
    %v2202 = vmul.f32 %v2201, %v2136
    %v2203 = vmul.f32 %v2201, %v2137
    %v2204 = vmul.f32 %v2201, %v2138
    %v2205 = vmul.f32 %v2201, %v2139
    %v2206 = vadd.f32 %v2106, %v2202
    %v2207 = vadd.f32 %v2107, %v2203
    %v2208 = vadd.f32 %v2108, %v2204
    %v2209 = vadd.f32 %v2109, %v2205
    %s2210 = sld [smem:[#allocation10 + $0x394]]
    %v2211 = vstv %s2210
    %v2212 = vmul.f32 %v2211, %v2136
    %v2213 = vmul.f32 %v2211, %v2137
    %v2214 = vmul.f32 %v2211, %v2138
    %v2215 = vmul.f32 %v2211, %v2139
    %v2216 = vadd.f32 %v2116, %v2212
    %v2217 = vadd.f32 %v2117, %v2213
    %v2218 = vadd.f32 %v2118, %v2214
    %v2219 = vadd.f32 %v2119, %v2215
    %s2220 = sld [smem:[#allocation3 + $0x15]]
    %v2221 = vstv %s2220
    %v2222 = vmul.f32 %v100, %v2221
    %v2223 = vmul.f32 %v101, %v2221
    %v2224 = vmul.f32 %v102, %v2221
    %v2225 = vmul.f32 %v103, %v2221
    %s2226 = sld [smem:[#allocation8 + $0x15]]
    %v2227 = vstv %s2226
    %v2228 = vadd.f32 %v2222, %v2227
    %v2229 = vadd.f32 %v2223, %v2227
    %v2230 = vadd.f32 %v2224, %v2227
    %v2231 = vadd.f32 %v2225, %v2227
    %vm2232 = vcmp.gt.f32.partialorder %v2228, 0.0
    %vm2233 = vcmp.gt.f32.partialorder %v2229, 0.0
    %vm2234 = vcmp.gt.f32.partialorder %v2230, 0.0
    %vm2235 = vcmp.gt.f32.partialorder %v2231, 0.0
    %v2236 = vsel %vm2232, %v2228, -0.01
    %v2237 = vsel %vm2233, %v2229, -0.01
    %v2238 = vsel %vm2234, %v2230, -0.01
    %v2239 = vsel %vm2235, %v2231, -0.01
    %s2240 = sld [smem:[#allocation10 + $0x15]]
    %v2241 = vstv %s2240
    %v2242 = vmul.f32 %v2241, %v2236
    %v2243 = vmul.f32 %v2241, %v2237
    %v2244 = vmul.f32 %v2241, %v2238
    %v2245 = vmul.f32 %v2241, %v2239
    %v2246 = vadd.f32 %v2146, %v2242
    %v2247 = vadd.f32 %v2147, %v2243
    %v2248 = vadd.f32 %v2148, %v2244
    %v2249 = vadd.f32 %v2149, %v2245
    %s2250 = sld [smem:[#allocation10 + $0x95]]
    %v2251 = vstv %s2250
    %v2252 = vmul.f32 %v2251, %v2236
    %v2253 = vmul.f32 %v2251, %v2237
    %v2254 = vmul.f32 %v2251, %v2238
    %v2255 = vmul.f32 %v2251, %v2239
    %v2256 = vadd.f32 %v2156, %v2252
    %v2257 = vadd.f32 %v2157, %v2253
    %v2258 = vadd.f32 %v2158, %v2254
    %v2259 = vadd.f32 %v2159, %v2255
    %s2260 = sld [smem:[#allocation10 + $0x115]]
    %v2261 = vstv %s2260
    %v2262 = vmul.f32 %v2261, %v2236
    %v2263 = vmul.f32 %v2261, %v2237
    %v2264 = vmul.f32 %v2261, %v2238
    %v2265 = vmul.f32 %v2261, %v2239
    %v2266 = vadd.f32 %v2166, %v2262
    %v2267 = vadd.f32 %v2167, %v2263
    %v2268 = vadd.f32 %v2168, %v2264
    %v2269 = vadd.f32 %v2169, %v2265
    %s2270 = sld [smem:[#allocation10 + $0x195]]
    %v2271 = vstv %s2270
    %v2272 = vmul.f32 %v2271, %v2236
    %v2273 = vmul.f32 %v2271, %v2237
    %v2274 = vmul.f32 %v2271, %v2238
    %v2275 = vmul.f32 %v2271, %v2239
    %v2276 = vadd.f32 %v2176, %v2272
    %v2277 = vadd.f32 %v2177, %v2273
    %v2278 = vadd.f32 %v2178, %v2274
    %v2279 = vadd.f32 %v2179, %v2275
    %s2280 = sld [smem:[#allocation10 + $0x215]]
    %v2281 = vstv %s2280
    %v2282 = vmul.f32 %v2281, %v2236
    %v2283 = vmul.f32 %v2281, %v2237
    %v2284 = vmul.f32 %v2281, %v2238
    %v2285 = vmul.f32 %v2281, %v2239
    %v2286 = vadd.f32 %v2186, %v2282
    %v2287 = vadd.f32 %v2187, %v2283
    %v2288 = vadd.f32 %v2188, %v2284
    %v2289 = vadd.f32 %v2189, %v2285
    %s2290 = sld [smem:[#allocation10 + $0x295]]
    %v2291 = vstv %s2290
    %v2292 = vmul.f32 %v2291, %v2236
    %v2293 = vmul.f32 %v2291, %v2237
    %v2294 = vmul.f32 %v2291, %v2238
    %v2295 = vmul.f32 %v2291, %v2239
    %v2296 = vadd.f32 %v2196, %v2292
    %v2297 = vadd.f32 %v2197, %v2293
    %v2298 = vadd.f32 %v2198, %v2294
    %v2299 = vadd.f32 %v2199, %v2295
    %s2300 = sld [smem:[#allocation10 + $0x315]]
    %v2301 = vstv %s2300
    %v2302 = vmul.f32 %v2301, %v2236
    %v2303 = vmul.f32 %v2301, %v2237
    %v2304 = vmul.f32 %v2301, %v2238
    %v2305 = vmul.f32 %v2301, %v2239
    %v2306 = vadd.f32 %v2206, %v2302
    %v2307 = vadd.f32 %v2207, %v2303
    %v2308 = vadd.f32 %v2208, %v2304
    %v2309 = vadd.f32 %v2209, %v2305
    %s2310 = sld [smem:[#allocation10 + $0x395]]
    %v2311 = vstv %s2310
    %v2312 = vmul.f32 %v2311, %v2236
    %v2313 = vmul.f32 %v2311, %v2237
    %v2314 = vmul.f32 %v2311, %v2238
    %v2315 = vmul.f32 %v2311, %v2239
    %v2316 = vadd.f32 %v2216, %v2312
    %v2317 = vadd.f32 %v2217, %v2313
    %v2318 = vadd.f32 %v2218, %v2314
    %v2319 = vadd.f32 %v2219, %v2315
    %s2320 = sld [smem:[#allocation3 + $0x16]]
    %v2321 = vstv %s2320
    %v2322 = vmul.f32 %v100, %v2321
    %v2323 = vmul.f32 %v101, %v2321
    %v2324 = vmul.f32 %v102, %v2321
    %v2325 = vmul.f32 %v103, %v2321
    %s2326 = sld [smem:[#allocation8 + $0x16]]
    %v2327 = vstv %s2326
    %v2328 = vadd.f32 %v2322, %v2327
    %v2329 = vadd.f32 %v2323, %v2327
    %v2330 = vadd.f32 %v2324, %v2327
    %v2331 = vadd.f32 %v2325, %v2327
    %vm2332 = vcmp.gt.f32.partialorder %v2328, 0.0
    %vm2333 = vcmp.gt.f32.partialorder %v2329, 0.0
    %vm2334 = vcmp.gt.f32.partialorder %v2330, 0.0
    %vm2335 = vcmp.gt.f32.partialorder %v2331, 0.0
    %v2336 = vsel %vm2332, %v2328, -0.01
    %v2337 = vsel %vm2333, %v2329, -0.01
    %v2338 = vsel %vm2334, %v2330, -0.01
    %v2339 = vsel %vm2335, %v2331, -0.01
    %s2340 = sld [smem:[#allocation10 + $0x16]]
    %v2341 = vstv %s2340
    %v2342 = vmul.f32 %v2341, %v2336
    %v2343 = vmul.f32 %v2341, %v2337
    %v2344 = vmul.f32 %v2341, %v2338
    %v2345 = vmul.f32 %v2341, %v2339
    %v2346 = vadd.f32 %v2246, %v2342
    %v2347 = vadd.f32 %v2247, %v2343
    %v2348 = vadd.f32 %v2248, %v2344
    %v2349 = vadd.f32 %v2249, %v2345
    %s2350 = sld [smem:[#allocation10 + $0x96]]
    %v2351 = vstv %s2350
    %v2352 = vmul.f32 %v2351, %v2336
    %v2353 = vmul.f32 %v2351, %v2337
    %v2354 = vmul.f32 %v2351, %v2338
    %v2355 = vmul.f32 %v2351, %v2339
    %v2356 = vadd.f32 %v2256, %v2352
    %v2357 = vadd.f32 %v2257, %v2353
    %v2358 = vadd.f32 %v2258, %v2354
    %v2359 = vadd.f32 %v2259, %v2355
    %s2360 = sld [smem:[#allocation10 + $0x116]]
    %v2361 = vstv %s2360
    %v2362 = vmul.f32 %v2361, %v2336
    %v2363 = vmul.f32 %v2361, %v2337
    %v2364 = vmul.f32 %v2361, %v2338
    %v2365 = vmul.f32 %v2361, %v2339
    %v2366 = vadd.f32 %v2266, %v2362
    %v2367 = vadd.f32 %v2267, %v2363
    %v2368 = vadd.f32 %v2268, %v2364
    %v2369 = vadd.f32 %v2269, %v2365
    %s2370 = sld [smem:[#allocation10 + $0x196]]
    %v2371 = vstv %s2370
    %v2372 = vmul.f32 %v2371, %v2336
    %v2373 = vmul.f32 %v2371, %v2337
    %v2374 = vmul.f32 %v2371, %v2338
    %v2375 = vmul.f32 %v2371, %v2339
    %v2376 = vadd.f32 %v2276, %v2372
    %v2377 = vadd.f32 %v2277, %v2373
    %v2378 = vadd.f32 %v2278, %v2374
    %v2379 = vadd.f32 %v2279, %v2375
    %s2380 = sld [smem:[#allocation10 + $0x216]]
    %v2381 = vstv %s2380
    %v2382 = vmul.f32 %v2381, %v2336
    %v2383 = vmul.f32 %v2381, %v2337
    %v2384 = vmul.f32 %v2381, %v2338
    %v2385 = vmul.f32 %v2381, %v2339
    %v2386 = vadd.f32 %v2286, %v2382
    %v2387 = vadd.f32 %v2287, %v2383
    %v2388 = vadd.f32 %v2288, %v2384
    %v2389 = vadd.f32 %v2289, %v2385
    %s2390 = sld [smem:[#allocation10 + $0x296]]
    %v2391 = vstv %s2390
    %v2392 = vmul.f32 %v2391, %v2336
    %v2393 = vmul.f32 %v2391, %v2337
    %v2394 = vmul.f32 %v2391, %v2338
    %v2395 = vmul.f32 %v2391, %v2339
    %v2396 = vadd.f32 %v2296, %v2392
    %v2397 = vadd.f32 %v2297, %v2393
    %v2398 = vadd.f32 %v2298, %v2394
    %v2399 = vadd.f32 %v2299, %v2395
    %s2400 = sld [smem:[#allocation10 + $0x316]]
    %v2401 = vstv %s2400
    %v2402 = vmul.f32 %v2401, %v2336
    %v2403 = vmul.f32 %v2401, %v2337
    %v2404 = vmul.f32 %v2401, %v2338
    %v2405 = vmul.f32 %v2401, %v2339
    %v2406 = vadd.f32 %v2306, %v2402
    %v2407 = vadd.f32 %v2307, %v2403
    %v2408 = vadd.f32 %v2308, %v2404
    %v2409 = vadd.f32 %v2309, %v2405
    %s2410 = sld [smem:[#allocation10 + $0x396]]
    %v2411 = vstv %s2410
    %v2412 = vmul.f32 %v2411, %v2336
    %v2413 = vmul.f32 %v2411, %v2337
    %v2414 = vmul.f32 %v2411, %v2338
    %v2415 = vmul.f32 %v2411, %v2339
    %v2416 = vadd.f32 %v2316, %v2412
    %v2417 = vadd.f32 %v2317, %v2413
    %v2418 = vadd.f32 %v2318, %v2414
    %v2419 = vadd.f32 %v2319, %v2415
    %s2420 = sld [smem:[#allocation3 + $0x17]]
    %v2421 = vstv %s2420
    %v2422 = vmul.f32 %v100, %v2421
    %v2423 = vmul.f32 %v101, %v2421
    %v2424 = vmul.f32 %v102, %v2421
    %v2425 = vmul.f32 %v103, %v2421
    %s2426 = sld [smem:[#allocation8 + $0x17]]
    %v2427 = vstv %s2426
    %v2428 = vadd.f32 %v2422, %v2427
    %v2429 = vadd.f32 %v2423, %v2427
    %v2430 = vadd.f32 %v2424, %v2427
    %v2431 = vadd.f32 %v2425, %v2427
    %vm2432 = vcmp.gt.f32.partialorder %v2428, 0.0
    %vm2433 = vcmp.gt.f32.partialorder %v2429, 0.0
    %vm2434 = vcmp.gt.f32.partialorder %v2430, 0.0
    %vm2435 = vcmp.gt.f32.partialorder %v2431, 0.0
    %v2436 = vsel %vm2432, %v2428, -0.01
    %v2437 = vsel %vm2433, %v2429, -0.01
    %v2438 = vsel %vm2434, %v2430, -0.01
    %v2439 = vsel %vm2435, %v2431, -0.01
    %s2440 = sld [smem:[#allocation10 + $0x17]]
    %v2441 = vstv %s2440
    %v2442 = vmul.f32 %v2441, %v2436
    %v2443 = vmul.f32 %v2441, %v2437
    %v2444 = vmul.f32 %v2441, %v2438
    %v2445 = vmul.f32 %v2441, %v2439
    %v2446 = vadd.f32 %v2346, %v2442
    %v2447 = vadd.f32 %v2347, %v2443
    %v2448 = vadd.f32 %v2348, %v2444
    %v2449 = vadd.f32 %v2349, %v2445
    %s2450 = sld [smem:[#allocation10 + $0x97]]
    %v2451 = vstv %s2450
    %v2452 = vmul.f32 %v2451, %v2436
    %v2453 = vmul.f32 %v2451, %v2437
    %v2454 = vmul.f32 %v2451, %v2438
    %v2455 = vmul.f32 %v2451, %v2439
    %v2456 = vadd.f32 %v2356, %v2452
    %v2457 = vadd.f32 %v2357, %v2453
    %v2458 = vadd.f32 %v2358, %v2454
    %v2459 = vadd.f32 %v2359, %v2455
    %s2460 = sld [smem:[#allocation10 + $0x117]]
    %v2461 = vstv %s2460
    %v2462 = vmul.f32 %v2461, %v2436
    %v2463 = vmul.f32 %v2461, %v2437
    %v2464 = vmul.f32 %v2461, %v2438
    %v2465 = vmul.f32 %v2461, %v2439
    %v2466 = vadd.f32 %v2366, %v2462
    %v2467 = vadd.f32 %v2367, %v2463
    %v2468 = vadd.f32 %v2368, %v2464
    %v2469 = vadd.f32 %v2369, %v2465
    %s2470 = sld [smem:[#allocation10 + $0x197]]
    %v2471 = vstv %s2470
    %v2472 = vmul.f32 %v2471, %v2436
    %v2473 = vmul.f32 %v2471, %v2437
    %v2474 = vmul.f32 %v2471, %v2438
    %v2475 = vmul.f32 %v2471, %v2439
    %v2476 = vadd.f32 %v2376, %v2472
    %v2477 = vadd.f32 %v2377, %v2473
    %v2478 = vadd.f32 %v2378, %v2474
    %v2479 = vadd.f32 %v2379, %v2475
    %s2480 = sld [smem:[#allocation10 + $0x217]]
    %v2481 = vstv %s2480
    %v2482 = vmul.f32 %v2481, %v2436
    %v2483 = vmul.f32 %v2481, %v2437
    %v2484 = vmul.f32 %v2481, %v2438
    %v2485 = vmul.f32 %v2481, %v2439
    %v2486 = vadd.f32 %v2386, %v2482
    %v2487 = vadd.f32 %v2387, %v2483
    %v2488 = vadd.f32 %v2388, %v2484
    %v2489 = vadd.f32 %v2389, %v2485
    %s2490 = sld [smem:[#allocation10 + $0x297]]
    %v2491 = vstv %s2490
    %v2492 = vmul.f32 %v2491, %v2436
    %v2493 = vmul.f32 %v2491, %v2437
    %v2494 = vmul.f32 %v2491, %v2438
    %v2495 = vmul.f32 %v2491, %v2439
    %v2496 = vadd.f32 %v2396, %v2492
    %v2497 = vadd.f32 %v2397, %v2493
    %v2498 = vadd.f32 %v2398, %v2494
    %v2499 = vadd.f32 %v2399, %v2495
    %s2500 = sld [smem:[#allocation10 + $0x317]]
    %v2501 = vstv %s2500
    %v2502 = vmul.f32 %v2501, %v2436
    %v2503 = vmul.f32 %v2501, %v2437
    %v2504 = vmul.f32 %v2501, %v2438
    %v2505 = vmul.f32 %v2501, %v2439
    %v2506 = vadd.f32 %v2406, %v2502
    %v2507 = vadd.f32 %v2407, %v2503
    %v2508 = vadd.f32 %v2408, %v2504
    %v2509 = vadd.f32 %v2409, %v2505
    %s2510 = sld [smem:[#allocation10 + $0x397]]
    %v2511 = vstv %s2510
    %v2512 = vmul.f32 %v2511, %v2436
    %v2513 = vmul.f32 %v2511, %v2437
    %v2514 = vmul.f32 %v2511, %v2438
    %v2515 = vmul.f32 %v2511, %v2439
    %v2516 = vadd.f32 %v2416, %v2512
    %v2517 = vadd.f32 %v2417, %v2513
    %v2518 = vadd.f32 %v2418, %v2514
    %v2519 = vadd.f32 %v2419, %v2515
    %s2520 = sld [smem:[#allocation3 + $0x18]]
    %v2521 = vstv %s2520
    %v2522 = vmul.f32 %v100, %v2521
    %v2523 = vmul.f32 %v101, %v2521
    %v2524 = vmul.f32 %v102, %v2521
    %v2525 = vmul.f32 %v103, %v2521
    %s2526 = sld [smem:[#allocation8 + $0x18]]
    %v2527 = vstv %s2526
    %v2528 = vadd.f32 %v2522, %v2527
    %v2529 = vadd.f32 %v2523, %v2527
    %v2530 = vadd.f32 %v2524, %v2527
    %v2531 = vadd.f32 %v2525, %v2527
    %vm2532 = vcmp.gt.f32.partialorder %v2528, 0.0
    %vm2533 = vcmp.gt.f32.partialorder %v2529, 0.0
    %vm2534 = vcmp.gt.f32.partialorder %v2530, 0.0
    %vm2535 = vcmp.gt.f32.partialorder %v2531, 0.0
    %v2536 = vsel %vm2532, %v2528, -0.01
    %v2537 = vsel %vm2533, %v2529, -0.01
    %v2538 = vsel %vm2534, %v2530, -0.01
    %v2539 = vsel %vm2535, %v2531, -0.01
    %s2540 = sld [smem:[#allocation10 + $0x18]]
    %v2541 = vstv %s2540
    %v2542 = vmul.f32 %v2541, %v2536
    %v2543 = vmul.f32 %v2541, %v2537
    %v2544 = vmul.f32 %v2541, %v2538
    %v2545 = vmul.f32 %v2541, %v2539
    %v2546 = vadd.f32 %v2446, %v2542
    %v2547 = vadd.f32 %v2447, %v2543
    %v2548 = vadd.f32 %v2448, %v2544
    %v2549 = vadd.f32 %v2449, %v2545
    %s2550 = sld [smem:[#allocation10 + $0x98]]
    %v2551 = vstv %s2550
    %v2552 = vmul.f32 %v2551, %v2536
    %v2553 = vmul.f32 %v2551, %v2537
    %v2554 = vmul.f32 %v2551, %v2538
    %v2555 = vmul.f32 %v2551, %v2539
    %v2556 = vadd.f32 %v2456, %v2552
    %v2557 = vadd.f32 %v2457, %v2553
    %v2558 = vadd.f32 %v2458, %v2554
    %v2559 = vadd.f32 %v2459, %v2555
    %s2560 = sld [smem:[#allocation10 + $0x118]]
    %v2561 = vstv %s2560
    %v2562 = vmul.f32 %v2561, %v2536
    %v2563 = vmul.f32 %v2561, %v2537
    %v2564 = vmul.f32 %v2561, %v2538
    %v2565 = vmul.f32 %v2561, %v2539
    %v2566 = vadd.f32 %v2466, %v2562
    %v2567 = vadd.f32 %v2467, %v2563
    %v2568 = vadd.f32 %v2468, %v2564
    %v2569 = vadd.f32 %v2469, %v2565
    %s2570 = sld [smem:[#allocation10 + $0x198]]
    %v2571 = vstv %s2570
    %v2572 = vmul.f32 %v2571, %v2536
    %v2573 = vmul.f32 %v2571, %v2537
    %v2574 = vmul.f32 %v2571, %v2538
    %v2575 = vmul.f32 %v2571, %v2539
    %v2576 = vadd.f32 %v2476, %v2572
    %v2577 = vadd.f32 %v2477, %v2573
    %v2578 = vadd.f32 %v2478, %v2574
    %v2579 = vadd.f32 %v2479, %v2575
    %s2580 = sld [smem:[#allocation10 + $0x218]]
    %v2581 = vstv %s2580
    %v2582 = vmul.f32 %v2581, %v2536
    %v2583 = vmul.f32 %v2581, %v2537
    %v2584 = vmul.f32 %v2581, %v2538
    %v2585 = vmul.f32 %v2581, %v2539
    %v2586 = vadd.f32 %v2486, %v2582
    %v2587 = vadd.f32 %v2487, %v2583
    %v2588 = vadd.f32 %v2488, %v2584
    %v2589 = vadd.f32 %v2489, %v2585
    %s2590 = sld [smem:[#allocation10 + $0x298]]
    %v2591 = vstv %s2590
    %v2592 = vmul.f32 %v2591, %v2536
    %v2593 = vmul.f32 %v2591, %v2537
    %v2594 = vmul.f32 %v2591, %v2538
    %v2595 = vmul.f32 %v2591, %v2539
    %v2596 = vadd.f32 %v2496, %v2592
    %v2597 = vadd.f32 %v2497, %v2593
    %v2598 = vadd.f32 %v2498, %v2594
    %v2599 = vadd.f32 %v2499, %v2595
    %s2600 = sld [smem:[#allocation10 + $0x318]]
    %v2601 = vstv %s2600
    %v2602 = vmul.f32 %v2601, %v2536
    %v2603 = vmul.f32 %v2601, %v2537
    %v2604 = vmul.f32 %v2601, %v2538
    %v2605 = vmul.f32 %v2601, %v2539
    %v2606 = vadd.f32 %v2506, %v2602
    %v2607 = vadd.f32 %v2507, %v2603
    %v2608 = vadd.f32 %v2508, %v2604
    %v2609 = vadd.f32 %v2509, %v2605
    %s2610 = sld [smem:[#allocation10 + $0x398]]
    %v2611 = vstv %s2610
    %v2612 = vmul.f32 %v2611, %v2536
    %v2613 = vmul.f32 %v2611, %v2537
    %v2614 = vmul.f32 %v2611, %v2538
    %v2615 = vmul.f32 %v2611, %v2539
    %v2616 = vadd.f32 %v2516, %v2612
    %v2617 = vadd.f32 %v2517, %v2613
    %v2618 = vadd.f32 %v2518, %v2614
    %v2619 = vadd.f32 %v2519, %v2615
    %s2620 = sld [smem:[#allocation3 + $0x19]]
    %v2621 = vstv %s2620
    %v2622 = vmul.f32 %v100, %v2621
    %v2623 = vmul.f32 %v101, %v2621
    %v2624 = vmul.f32 %v102, %v2621
    %v2625 = vmul.f32 %v103, %v2621
    %s2626 = sld [smem:[#allocation8 + $0x19]]
    %v2627 = vstv %s2626
    %v2628 = vadd.f32 %v2622, %v2627
    %v2629 = vadd.f32 %v2623, %v2627
    %v2630 = vadd.f32 %v2624, %v2627
    %v2631 = vadd.f32 %v2625, %v2627
    %vm2632 = vcmp.gt.f32.partialorder %v2628, 0.0
    %vm2633 = vcmp.gt.f32.partialorder %v2629, 0.0
    %vm2634 = vcmp.gt.f32.partialorder %v2630, 0.0
    %vm2635 = vcmp.gt.f32.partialorder %v2631, 0.0
    %v2636 = vsel %vm2632, %v2628, -0.01
    %v2637 = vsel %vm2633, %v2629, -0.01
    %v2638 = vsel %vm2634, %v2630, -0.01
    %v2639 = vsel %vm2635, %v2631, -0.01
    %s2640 = sld [smem:[#allocation10 + $0x19]]
    %v2641 = vstv %s2640
    %v2642 = vmul.f32 %v2641, %v2636
    %v2643 = vmul.f32 %v2641, %v2637
    %v2644 = vmul.f32 %v2641, %v2638
    %v2645 = vmul.f32 %v2641, %v2639
    %v2646 = vadd.f32 %v2546, %v2642
    %v2647 = vadd.f32 %v2547, %v2643
    %v2648 = vadd.f32 %v2548, %v2644
    %v2649 = vadd.f32 %v2549, %v2645
    %s2650 = sld [smem:[#allocation10 + $0x99]]
    %v2651 = vstv %s2650
    %v2652 = vmul.f32 %v2651, %v2636
    %v2653 = vmul.f32 %v2651, %v2637
    %v2654 = vmul.f32 %v2651, %v2638
    %v2655 = vmul.f32 %v2651, %v2639
    %v2656 = vadd.f32 %v2556, %v2652
    %v2657 = vadd.f32 %v2557, %v2653
    %v2658 = vadd.f32 %v2558, %v2654
    %v2659 = vadd.f32 %v2559, %v2655
    %s2660 = sld [smem:[#allocation10 + $0x119]]
    %v2661 = vstv %s2660
    %v2662 = vmul.f32 %v2661, %v2636
    %v2663 = vmul.f32 %v2661, %v2637
    %v2664 = vmul.f32 %v2661, %v2638
    %v2665 = vmul.f32 %v2661, %v2639
    %v2666 = vadd.f32 %v2566, %v2662
    %v2667 = vadd.f32 %v2567, %v2663
    %v2668 = vadd.f32 %v2568, %v2664
    %v2669 = vadd.f32 %v2569, %v2665
    %s2670 = sld [smem:[#allocation10 + $0x199]]
    %v2671 = vstv %s2670
    %v2672 = vmul.f32 %v2671, %v2636
    %v2673 = vmul.f32 %v2671, %v2637
    %v2674 = vmul.f32 %v2671, %v2638
    %v2675 = vmul.f32 %v2671, %v2639
    %v2676 = vadd.f32 %v2576, %v2672
    %v2677 = vadd.f32 %v2577, %v2673
    %v2678 = vadd.f32 %v2578, %v2674
    %v2679 = vadd.f32 %v2579, %v2675
    %s2680 = sld [smem:[#allocation10 + $0x219]]
    %v2681 = vstv %s2680
    %v2682 = vmul.f32 %v2681, %v2636
    %v2683 = vmul.f32 %v2681, %v2637
    %v2684 = vmul.f32 %v2681, %v2638
    %v2685 = vmul.f32 %v2681, %v2639
    %v2686 = vadd.f32 %v2586, %v2682
    %v2687 = vadd.f32 %v2587, %v2683
    %v2688 = vadd.f32 %v2588, %v2684
    %v2689 = vadd.f32 %v2589, %v2685
    %s2690 = sld [smem:[#allocation10 + $0x299]]
    %v2691 = vstv %s2690
    %v2692 = vmul.f32 %v2691, %v2636
    %v2693 = vmul.f32 %v2691, %v2637
    %v2694 = vmul.f32 %v2691, %v2638
    %v2695 = vmul.f32 %v2691, %v2639
    %v2696 = vadd.f32 %v2596, %v2692
    %v2697 = vadd.f32 %v2597, %v2693
    %v2698 = vadd.f32 %v2598, %v2694
    %v2699 = vadd.f32 %v2599, %v2695
    %s2700 = sld [smem:[#allocation10 + $0x319]]
    %v2701 = vstv %s2700
    %v2702 = vmul.f32 %v2701, %v2636
    %v2703 = vmul.f32 %v2701, %v2637
    %v2704 = vmul.f32 %v2701, %v2638
    %v2705 = vmul.f32 %v2701, %v2639
    %v2706 = vadd.f32 %v2606, %v2702
    %v2707 = vadd.f32 %v2607, %v2703
    %v2708 = vadd.f32 %v2608, %v2704
    %v2709 = vadd.f32 %v2609, %v2705
    %s2710 = sld [smem:[#allocation10 + $0x399]]
    %v2711 = vstv %s2710
    %v2712 = vmul.f32 %v2711, %v2636
    %v2713 = vmul.f32 %v2711, %v2637
    %v2714 = vmul.f32 %v2711, %v2638
    %v2715 = vmul.f32 %v2711, %v2639
    %v2716 = vadd.f32 %v2616, %v2712
    %v2717 = vadd.f32 %v2617, %v2713
    %v2718 = vadd.f32 %v2618, %v2714
    %v2719 = vadd.f32 %v2619, %v2715
    %s2720 = sld [smem:[#allocation3 + $0x1a]]
    %v2721 = vstv %s2720
    %v2722 = vmul.f32 %v100, %v2721
    %v2723 = vmul.f32 %v101, %v2721
    %v2724 = vmul.f32 %v102, %v2721
    %v2725 = vmul.f32 %v103, %v2721
    %s2726 = sld [smem:[#allocation8 + $0x1a]]
    %v2727 = vstv %s2726
    %v2728 = vadd.f32 %v2722, %v2727
    %v2729 = vadd.f32 %v2723, %v2727
    %v2730 = vadd.f32 %v2724, %v2727
    %v2731 = vadd.f32 %v2725, %v2727
    %vm2732 = vcmp.gt.f32.partialorder %v2728, 0.0
    %vm2733 = vcmp.gt.f32.partialorder %v2729, 0.0
    %vm2734 = vcmp.gt.f32.partialorder %v2730, 0.0
    %vm2735 = vcmp.gt.f32.partialorder %v2731, 0.0
    %v2736 = vsel %vm2732, %v2728, -0.01
    %v2737 = vsel %vm2733, %v2729, -0.01
    %v2738 = vsel %vm2734, %v2730, -0.01
    %v2739 = vsel %vm2735, %v2731, -0.01
    %s2740 = sld [smem:[#allocation10 + $0x1a]]
    %v2741 = vstv %s2740
    %v2742 = vmul.f32 %v2741, %v2736
    %v2743 = vmul.f32 %v2741, %v2737
    %v2744 = vmul.f32 %v2741, %v2738
    %v2745 = vmul.f32 %v2741, %v2739
    %v2746 = vadd.f32 %v2646, %v2742
    %v2747 = vadd.f32 %v2647, %v2743
    %v2748 = vadd.f32 %v2648, %v2744
    %v2749 = vadd.f32 %v2649, %v2745
    %s2750 = sld [smem:[#allocation10 + $0x9a]]
    %v2751 = vstv %s2750
    %v2752 = vmul.f32 %v2751, %v2736
    %v2753 = vmul.f32 %v2751, %v2737
    %v2754 = vmul.f32 %v2751, %v2738
    %v2755 = vmul.f32 %v2751, %v2739
    %v2756 = vadd.f32 %v2656, %v2752
    %v2757 = vadd.f32 %v2657, %v2753
    %v2758 = vadd.f32 %v2658, %v2754
    %v2759 = vadd.f32 %v2659, %v2755
    %s2760 = sld [smem:[#allocation10 + $0x11a]]
    %v2761 = vstv %s2760
    %v2762 = vmul.f32 %v2761, %v2736
    %v2763 = vmul.f32 %v2761, %v2737
    %v2764 = vmul.f32 %v2761, %v2738
    %v2765 = vmul.f32 %v2761, %v2739
    %v2766 = vadd.f32 %v2666, %v2762
    %v2767 = vadd.f32 %v2667, %v2763
    %v2768 = vadd.f32 %v2668, %v2764
    %v2769 = vadd.f32 %v2669, %v2765
    %s2770 = sld [smem:[#allocation10 + $0x19a]]
    %v2771 = vstv %s2770
    %v2772 = vmul.f32 %v2771, %v2736
    %v2773 = vmul.f32 %v2771, %v2737
    %v2774 = vmul.f32 %v2771, %v2738
    %v2775 = vmul.f32 %v2771, %v2739
    %v2776 = vadd.f32 %v2676, %v2772
    %v2777 = vadd.f32 %v2677, %v2773
    %v2778 = vadd.f32 %v2678, %v2774
    %v2779 = vadd.f32 %v2679, %v2775
    %s2780 = sld [smem:[#allocation10 + $0x21a]]
    %v2781 = vstv %s2780
    %v2782 = vmul.f32 %v2781, %v2736
    %v2783 = vmul.f32 %v2781, %v2737
    %v2784 = vmul.f32 %v2781, %v2738
    %v2785 = vmul.f32 %v2781, %v2739
    %v2786 = vadd.f32 %v2686, %v2782
    %v2787 = vadd.f32 %v2687, %v2783
    %v2788 = vadd.f32 %v2688, %v2784
    %v2789 = vadd.f32 %v2689, %v2785
    %s2790 = sld [smem:[#allocation10 + $0x29a]]
    %v2791 = vstv %s2790
    %v2792 = vmul.f32 %v2791, %v2736
    %v2793 = vmul.f32 %v2791, %v2737
    %v2794 = vmul.f32 %v2791, %v2738
    %v2795 = vmul.f32 %v2791, %v2739
    %v2796 = vadd.f32 %v2696, %v2792
    %v2797 = vadd.f32 %v2697, %v2793
    %v2798 = vadd.f32 %v2698, %v2794
    %v2799 = vadd.f32 %v2699, %v2795
    %s2800 = sld [smem:[#allocation10 + $0x31a]]
    %v2801 = vstv %s2800
    %v2802 = vmul.f32 %v2801, %v2736
    %v2803 = vmul.f32 %v2801, %v2737
    %v2804 = vmul.f32 %v2801, %v2738
    %v2805 = vmul.f32 %v2801, %v2739
    %v2806 = vadd.f32 %v2706, %v2802
    %v2807 = vadd.f32 %v2707, %v2803
    %v2808 = vadd.f32 %v2708, %v2804
    %v2809 = vadd.f32 %v2709, %v2805
    %s2810 = sld [smem:[#allocation10 + $0x39a]]
    %v2811 = vstv %s2810
    %v2812 = vmul.f32 %v2811, %v2736
    %v2813 = vmul.f32 %v2811, %v2737
    %v2814 = vmul.f32 %v2811, %v2738
    %v2815 = vmul.f32 %v2811, %v2739
    %v2816 = vadd.f32 %v2716, %v2812
    %v2817 = vadd.f32 %v2717, %v2813
    %v2818 = vadd.f32 %v2718, %v2814
    %v2819 = vadd.f32 %v2719, %v2815
    %s2820 = sld [smem:[#allocation3 + $0x1b]]
    %v2821 = vstv %s2820
    %v2822 = vmul.f32 %v100, %v2821
    %v2823 = vmul.f32 %v101, %v2821
    %v2824 = vmul.f32 %v102, %v2821
    %v2825 = vmul.f32 %v103, %v2821
    %s2826 = sld [smem:[#allocation8 + $0x1b]]
    %v2827 = vstv %s2826
    %v2828 = vadd.f32 %v2822, %v2827
    %v2829 = vadd.f32 %v2823, %v2827
    %v2830 = vadd.f32 %v2824, %v2827
    %v2831 = vadd.f32 %v2825, %v2827
    %vm2832 = vcmp.gt.f32.partialorder %v2828, 0.0
    %vm2833 = vcmp.gt.f32.partialorder %v2829, 0.0
    %vm2834 = vcmp.gt.f32.partialorder %v2830, 0.0
    %vm2835 = vcmp.gt.f32.partialorder %v2831, 0.0
    %v2836 = vsel %vm2832, %v2828, -0.01
    %v2837 = vsel %vm2833, %v2829, -0.01
    %v2838 = vsel %vm2834, %v2830, -0.01
    %v2839 = vsel %vm2835, %v2831, -0.01
    %s2840 = sld [smem:[#allocation10 + $0x1b]]
    %v2841 = vstv %s2840
    %v2842 = vmul.f32 %v2841, %v2836
    %v2843 = vmul.f32 %v2841, %v2837
    %v2844 = vmul.f32 %v2841, %v2838
    %v2845 = vmul.f32 %v2841, %v2839
    %v2846 = vadd.f32 %v2746, %v2842
    %v2847 = vadd.f32 %v2747, %v2843
    %v2848 = vadd.f32 %v2748, %v2844
    %v2849 = vadd.f32 %v2749, %v2845
    %s2850 = sld [smem:[#allocation10 + $0x9b]]
    %v2851 = vstv %s2850
    %v2852 = vmul.f32 %v2851, %v2836
    %v2853 = vmul.f32 %v2851, %v2837
    %v2854 = vmul.f32 %v2851, %v2838
    %v2855 = vmul.f32 %v2851, %v2839
    %v2856 = vadd.f32 %v2756, %v2852
    %v2857 = vadd.f32 %v2757, %v2853
    %v2858 = vadd.f32 %v2758, %v2854
    %v2859 = vadd.f32 %v2759, %v2855
    %s2860 = sld [smem:[#allocation10 + $0x11b]]
    %v2861 = vstv %s2860
    %v2862 = vmul.f32 %v2861, %v2836
    %v2863 = vmul.f32 %v2861, %v2837
    %v2864 = vmul.f32 %v2861, %v2838
    %v2865 = vmul.f32 %v2861, %v2839
    %v2866 = vadd.f32 %v2766, %v2862
    %v2867 = vadd.f32 %v2767, %v2863
    %v2868 = vadd.f32 %v2768, %v2864
    %v2869 = vadd.f32 %v2769, %v2865
    %s2870 = sld [smem:[#allocation10 + $0x19b]]
    %v2871 = vstv %s2870
    %v2872 = vmul.f32 %v2871, %v2836
    %v2873 = vmul.f32 %v2871, %v2837
    %v2874 = vmul.f32 %v2871, %v2838
    %v2875 = vmul.f32 %v2871, %v2839
    %v2876 = vadd.f32 %v2776, %v2872
    %v2877 = vadd.f32 %v2777, %v2873
    %v2878 = vadd.f32 %v2778, %v2874
    %v2879 = vadd.f32 %v2779, %v2875
    %s2880 = sld [smem:[#allocation10 + $0x21b]]
    %v2881 = vstv %s2880
    %v2882 = vmul.f32 %v2881, %v2836
    %v2883 = vmul.f32 %v2881, %v2837
    %v2884 = vmul.f32 %v2881, %v2838
    %v2885 = vmul.f32 %v2881, %v2839
    %v2886 = vadd.f32 %v2786, %v2882
    %v2887 = vadd.f32 %v2787, %v2883
    %v2888 = vadd.f32 %v2788, %v2884
    %v2889 = vadd.f32 %v2789, %v2885
    %s2890 = sld [smem:[#allocation10 + $0x29b]]
    %v2891 = vstv %s2890
    %v2892 = vmul.f32 %v2891, %v2836
    %v2893 = vmul.f32 %v2891, %v2837
    %v2894 = vmul.f32 %v2891, %v2838
    %v2895 = vmul.f32 %v2891, %v2839
    %v2896 = vadd.f32 %v2796, %v2892
    %v2897 = vadd.f32 %v2797, %v2893
    %v2898 = vadd.f32 %v2798, %v2894
    %v2899 = vadd.f32 %v2799, %v2895
    %s2900 = sld [smem:[#allocation10 + $0x31b]]
    %v2901 = vstv %s2900
    %v2902 = vmul.f32 %v2901, %v2836
    %v2903 = vmul.f32 %v2901, %v2837
    %v2904 = vmul.f32 %v2901, %v2838
    %v2905 = vmul.f32 %v2901, %v2839
    %v2906 = vadd.f32 %v2806, %v2902
    %v2907 = vadd.f32 %v2807, %v2903
    %v2908 = vadd.f32 %v2808, %v2904
    %v2909 = vadd.f32 %v2809, %v2905
    %s2910 = sld [smem:[#allocation10 + $0x39b]]
    %v2911 = vstv %s2910
    %v2912 = vmul.f32 %v2911, %v2836
    %v2913 = vmul.f32 %v2911, %v2837
    %v2914 = vmul.f32 %v2911, %v2838
    %v2915 = vmul.f32 %v2911, %v2839
    %v2916 = vadd.f32 %v2816, %v2912
    %v2917 = vadd.f32 %v2817, %v2913
    %v2918 = vadd.f32 %v2818, %v2914
    %v2919 = vadd.f32 %v2819, %v2915
    %s2920 = sld [smem:[#allocation3 + $0x1c]]
    %v2921 = vstv %s2920
    %v2922 = vmul.f32 %v100, %v2921
    %v2923 = vmul.f32 %v101, %v2921
    %v2924 = vmul.f32 %v102, %v2921
    %v2925 = vmul.f32 %v103, %v2921
    %s2926 = sld [smem:[#allocation8 + $0x1c]]
    %v2927 = vstv %s2926
    %v2928 = vadd.f32 %v2922, %v2927
    %v2929 = vadd.f32 %v2923, %v2927
    %v2930 = vadd.f32 %v2924, %v2927
    %v2931 = vadd.f32 %v2925, %v2927
    %vm2932 = vcmp.gt.f32.partialorder %v2928, 0.0
    %vm2933 = vcmp.gt.f32.partialorder %v2929, 0.0
    %vm2934 = vcmp.gt.f32.partialorder %v2930, 0.0
    %vm2935 = vcmp.gt.f32.partialorder %v2931, 0.0
    %v2936 = vsel %vm2932, %v2928, -0.01
    %v2937 = vsel %vm2933, %v2929, -0.01
    %v2938 = vsel %vm2934, %v2930, -0.01
    %v2939 = vsel %vm2935, %v2931, -0.01
    %s2940 = sld [smem:[#allocation10 + $0x1c]]
    %v2941 = vstv %s2940
    %v2942 = vmul.f32 %v2941, %v2936
    %v2943 = vmul.f32 %v2941, %v2937
    %v2944 = vmul.f32 %v2941, %v2938
    %v2945 = vmul.f32 %v2941, %v2939
    %v2946 = vadd.f32 %v2846, %v2942
    %v2947 = vadd.f32 %v2847, %v2943
    %v2948 = vadd.f32 %v2848, %v2944
    %v2949 = vadd.f32 %v2849, %v2945
    %s2950 = sld [smem:[#allocation10 + $0x9c]]
    %v2951 = vstv %s2950
    %v2952 = vmul.f32 %v2951, %v2936
    %v2953 = vmul.f32 %v2951, %v2937
    %v2954 = vmul.f32 %v2951, %v2938
    %v2955 = vmul.f32 %v2951, %v2939
    %v2956 = vadd.f32 %v2856, %v2952
    %v2957 = vadd.f32 %v2857, %v2953
    %v2958 = vadd.f32 %v2858, %v2954
    %v2959 = vadd.f32 %v2859, %v2955
    %s2960 = sld [smem:[#allocation10 + $0x11c]]
    %v2961 = vstv %s2960
    %v2962 = vmul.f32 %v2961, %v2936
    %v2963 = vmul.f32 %v2961, %v2937
    %v2964 = vmul.f32 %v2961, %v2938
    %v2965 = vmul.f32 %v2961, %v2939
    %v2966 = vadd.f32 %v2866, %v2962
    %v2967 = vadd.f32 %v2867, %v2963
    %v2968 = vadd.f32 %v2868, %v2964
    %v2969 = vadd.f32 %v2869, %v2965
    %s2970 = sld [smem:[#allocation10 + $0x19c]]
    %v2971 = vstv %s2970
    %v2972 = vmul.f32 %v2971, %v2936
    %v2973 = vmul.f32 %v2971, %v2937
    %v2974 = vmul.f32 %v2971, %v2938
    %v2975 = vmul.f32 %v2971, %v2939
    %v2976 = vadd.f32 %v2876, %v2972
    %v2977 = vadd.f32 %v2877, %v2973
    %v2978 = vadd.f32 %v2878, %v2974
    %v2979 = vadd.f32 %v2879, %v2975
    %s2980 = sld [smem:[#allocation10 + $0x21c]]
    %v2981 = vstv %s2980
    %v2982 = vmul.f32 %v2981, %v2936
    %v2983 = vmul.f32 %v2981, %v2937
    %v2984 = vmul.f32 %v2981, %v2938
    %v2985 = vmul.f32 %v2981, %v2939
    %v2986 = vadd.f32 %v2886, %v2982
    %v2987 = vadd.f32 %v2887, %v2983
    %v2988 = vadd.f32 %v2888, %v2984
    %v2989 = vadd.f32 %v2889, %v2985
    %s2990 = sld [smem:[#allocation10 + $0x29c]]
    %v2991 = vstv %s2990
    %v2992 = vmul.f32 %v2991, %v2936
    %v2993 = vmul.f32 %v2991, %v2937
    %v2994 = vmul.f32 %v2991, %v2938
    %v2995 = vmul.f32 %v2991, %v2939
    %v2996 = vadd.f32 %v2896, %v2992
    %v2997 = vadd.f32 %v2897, %v2993
    %v2998 = vadd.f32 %v2898, %v2994
    %v2999 = vadd.f32 %v2899, %v2995
    %s3000 = sld [smem:[#allocation10 + $0x31c]]
    %v3001 = vstv %s3000
    %v3002 = vmul.f32 %v3001, %v2936
    %v3003 = vmul.f32 %v3001, %v2937
    %v3004 = vmul.f32 %v3001, %v2938
    %v3005 = vmul.f32 %v3001, %v2939
    %v3006 = vadd.f32 %v2906, %v3002
    %v3007 = vadd.f32 %v2907, %v3003
    %v3008 = vadd.f32 %v2908, %v3004
    %v3009 = vadd.f32 %v2909, %v3005
    %s3010 = sld [smem:[#allocation10 + $0x39c]]
    %v3011 = vstv %s3010
    %v3012 = vmul.f32 %v3011, %v2936
    %v3013 = vmul.f32 %v3011, %v2937
    %v3014 = vmul.f32 %v3011, %v2938
    %v3015 = vmul.f32 %v3011, %v2939
    %v3016 = vadd.f32 %v2916, %v3012
    %v3017 = vadd.f32 %v2917, %v3013
    %v3018 = vadd.f32 %v2918, %v3014
    %v3019 = vadd.f32 %v2919, %v3015
    %s3020 = sld [smem:[#allocation3 + $0x1d]]
    %v3021 = vstv %s3020
    %v3022 = vmul.f32 %v100, %v3021
    %v3023 = vmul.f32 %v101, %v3021
    %v3024 = vmul.f32 %v102, %v3021
    %v3025 = vmul.f32 %v103, %v3021
    %s3026 = sld [smem:[#allocation8 + $0x1d]]
    %v3027 = vstv %s3026
    %v3028 = vadd.f32 %v3022, %v3027
    %v3029 = vadd.f32 %v3023, %v3027
    %v3030 = vadd.f32 %v3024, %v3027
    %v3031 = vadd.f32 %v3025, %v3027
    %vm3032 = vcmp.gt.f32.partialorder %v3028, 0.0
    %vm3033 = vcmp.gt.f32.partialorder %v3029, 0.0
    %vm3034 = vcmp.gt.f32.partialorder %v3030, 0.0
    %vm3035 = vcmp.gt.f32.partialorder %v3031, 0.0
    %v3036 = vsel %vm3032, %v3028, -0.01
    %v3037 = vsel %vm3033, %v3029, -0.01
    %v3038 = vsel %vm3034, %v3030, -0.01
    %v3039 = vsel %vm3035, %v3031, -0.01
    %s3040 = sld [smem:[#allocation10 + $0x1d]]
    %v3041 = vstv %s3040
    %v3042 = vmul.f32 %v3041, %v3036
    %v3043 = vmul.f32 %v3041, %v3037
    %v3044 = vmul.f32 %v3041, %v3038
    %v3045 = vmul.f32 %v3041, %v3039
    %v3046 = vadd.f32 %v2946, %v3042
    %v3047 = vadd.f32 %v2947, %v3043
    %v3048 = vadd.f32 %v2948, %v3044
    %v3049 = vadd.f32 %v2949, %v3045
    %s3050 = sld [smem:[#allocation10 + $0x9d]]
    %v3051 = vstv %s3050
    %v3052 = vmul.f32 %v3051, %v3036
    %v3053 = vmul.f32 %v3051, %v3037
    %v3054 = vmul.f32 %v3051, %v3038
    %v3055 = vmul.f32 %v3051, %v3039
    %v3056 = vadd.f32 %v2956, %v3052
    %v3057 = vadd.f32 %v2957, %v3053
    %v3058 = vadd.f32 %v2958, %v3054
    %v3059 = vadd.f32 %v2959, %v3055
    %s3060 = sld [smem:[#allocation10 + $0x11d]]
    %v3061 = vstv %s3060
    %v3062 = vmul.f32 %v3061, %v3036
    %v3063 = vmul.f32 %v3061, %v3037
    %v3064 = vmul.f32 %v3061, %v3038
    %v3065 = vmul.f32 %v3061, %v3039
    %v3066 = vadd.f32 %v2966, %v3062
    %v3067 = vadd.f32 %v2967, %v3063
    %v3068 = vadd.f32 %v2968, %v3064
    %v3069 = vadd.f32 %v2969, %v3065
    %s3070 = sld [smem:[#allocation10 + $0x19d]]
    %v3071 = vstv %s3070
    %v3072 = vmul.f32 %v3071, %v3036
    %v3073 = vmul.f32 %v3071, %v3037
    %v3074 = vmul.f32 %v3071, %v3038
    %v3075 = vmul.f32 %v3071, %v3039
    %v3076 = vadd.f32 %v2976, %v3072
    %v3077 = vadd.f32 %v2977, %v3073
    %v3078 = vadd.f32 %v2978, %v3074
    %v3079 = vadd.f32 %v2979, %v3075
    %s3080 = sld [smem:[#allocation10 + $0x21d]]
    %v3081 = vstv %s3080
    %v3082 = vmul.f32 %v3081, %v3036
    %v3083 = vmul.f32 %v3081, %v3037
    %v3084 = vmul.f32 %v3081, %v3038
    %v3085 = vmul.f32 %v3081, %v3039
    %v3086 = vadd.f32 %v2986, %v3082
    %v3087 = vadd.f32 %v2987, %v3083
    %v3088 = vadd.f32 %v2988, %v3084
    %v3089 = vadd.f32 %v2989, %v3085
    %s3090 = sld [smem:[#allocation10 + $0x29d]]
    %v3091 = vstv %s3090
    %v3092 = vmul.f32 %v3091, %v3036
    %v3093 = vmul.f32 %v3091, %v3037
    %v3094 = vmul.f32 %v3091, %v3038
    %v3095 = vmul.f32 %v3091, %v3039
    %v3096 = vadd.f32 %v2996, %v3092
    %v3097 = vadd.f32 %v2997, %v3093
    %v3098 = vadd.f32 %v2998, %v3094
    %v3099 = vadd.f32 %v2999, %v3095
    %s3100 = sld [smem:[#allocation10 + $0x31d]]
    %v3101 = vstv %s3100
    %v3102 = vmul.f32 %v3101, %v3036
    %v3103 = vmul.f32 %v3101, %v3037
    %v3104 = vmul.f32 %v3101, %v3038
    %v3105 = vmul.f32 %v3101, %v3039
    %v3106 = vadd.f32 %v3006, %v3102
    %v3107 = vadd.f32 %v3007, %v3103
    %v3108 = vadd.f32 %v3008, %v3104
    %v3109 = vadd.f32 %v3009, %v3105
    %s3110 = sld [smem:[#allocation10 + $0x39d]]
    %v3111 = vstv %s3110
    %v3112 = vmul.f32 %v3111, %v3036
    %v3113 = vmul.f32 %v3111, %v3037
    %v3114 = vmul.f32 %v3111, %v3038
    %v3115 = vmul.f32 %v3111, %v3039
    %v3116 = vadd.f32 %v3016, %v3112
    %v3117 = vadd.f32 %v3017, %v3113
    %v3118 = vadd.f32 %v3018, %v3114
    %v3119 = vadd.f32 %v3019, %v3115
    %s3120 = sld [smem:[#allocation3 + $0x1e]]
    %v3121 = vstv %s3120
    %v3122 = vmul.f32 %v100, %v3121
    %v3123 = vmul.f32 %v101, %v3121
    %v3124 = vmul.f32 %v102, %v3121
    %v3125 = vmul.f32 %v103, %v3121
    %s3126 = sld [smem:[#allocation8 + $0x1e]]
    %v3127 = vstv %s3126
    %v3128 = vadd.f32 %v3122, %v3127
    %v3129 = vadd.f32 %v3123, %v3127
    %v3130 = vadd.f32 %v3124, %v3127
    %v3131 = vadd.f32 %v3125, %v3127
    %vm3132 = vcmp.gt.f32.partialorder %v3128, 0.0
    %vm3133 = vcmp.gt.f32.partialorder %v3129, 0.0
    %vm3134 = vcmp.gt.f32.partialorder %v3130, 0.0
    %vm3135 = vcmp.gt.f32.partialorder %v3131, 0.0
    %v3136 = vsel %vm3132, %v3128, -0.01
    %v3137 = vsel %vm3133, %v3129, -0.01
    %v3138 = vsel %vm3134, %v3130, -0.01
    %v3139 = vsel %vm3135, %v3131, -0.01
    %s3140 = sld [smem:[#allocation10 + $0x1e]]
    %v3141 = vstv %s3140
    %v3142 = vmul.f32 %v3141, %v3136
    %v3143 = vmul.f32 %v3141, %v3137
    %v3144 = vmul.f32 %v3141, %v3138
    %v3145 = vmul.f32 %v3141, %v3139
    %v3146 = vadd.f32 %v3046, %v3142
    %v3147 = vadd.f32 %v3047, %v3143
    %v3148 = vadd.f32 %v3048, %v3144
    %v3149 = vadd.f32 %v3049, %v3145
    %s3150 = sld [smem:[#allocation10 + $0x9e]]
    %v3151 = vstv %s3150
    %v3152 = vmul.f32 %v3151, %v3136
    %v3153 = vmul.f32 %v3151, %v3137
    %v3154 = vmul.f32 %v3151, %v3138
    %v3155 = vmul.f32 %v3151, %v3139
    %v3156 = vadd.f32 %v3056, %v3152
    %v3157 = vadd.f32 %v3057, %v3153
    %v3158 = vadd.f32 %v3058, %v3154
    %v3159 = vadd.f32 %v3059, %v3155
    %s3160 = sld [smem:[#allocation10 + $0x11e]]
    %v3161 = vstv %s3160
    %v3162 = vmul.f32 %v3161, %v3136
    %v3163 = vmul.f32 %v3161, %v3137
    %v3164 = vmul.f32 %v3161, %v3138
    %v3165 = vmul.f32 %v3161, %v3139
    %v3166 = vadd.f32 %v3066, %v3162
    %v3167 = vadd.f32 %v3067, %v3163
    %v3168 = vadd.f32 %v3068, %v3164
    %v3169 = vadd.f32 %v3069, %v3165
    %s3170 = sld [smem:[#allocation10 + $0x19e]]
    %v3171 = vstv %s3170
    %v3172 = vmul.f32 %v3171, %v3136
    %v3173 = vmul.f32 %v3171, %v3137
    %v3174 = vmul.f32 %v3171, %v3138
    %v3175 = vmul.f32 %v3171, %v3139
    %v3176 = vadd.f32 %v3076, %v3172
    %v3177 = vadd.f32 %v3077, %v3173
    %v3178 = vadd.f32 %v3078, %v3174
    %v3179 = vadd.f32 %v3079, %v3175
    %s3180 = sld [smem:[#allocation10 + $0x21e]]
    %v3181 = vstv %s3180
    %v3182 = vmul.f32 %v3181, %v3136
    %v3183 = vmul.f32 %v3181, %v3137
    %v3184 = vmul.f32 %v3181, %v3138
    %v3185 = vmul.f32 %v3181, %v3139
    %v3186 = vadd.f32 %v3086, %v3182
    %v3187 = vadd.f32 %v3087, %v3183
    %v3188 = vadd.f32 %v3088, %v3184
    %v3189 = vadd.f32 %v3089, %v3185
    %s3190 = sld [smem:[#allocation10 + $0x29e]]
    %v3191 = vstv %s3190
    %v3192 = vmul.f32 %v3191, %v3136
    %v3193 = vmul.f32 %v3191, %v3137
    %v3194 = vmul.f32 %v3191, %v3138
    %v3195 = vmul.f32 %v3191, %v3139
    %v3196 = vadd.f32 %v3096, %v3192
    %v3197 = vadd.f32 %v3097, %v3193
    %v3198 = vadd.f32 %v3098, %v3194
    %v3199 = vadd.f32 %v3099, %v3195
    %s3200 = sld [smem:[#allocation10 + $0x31e]]
    %v3201 = vstv %s3200
    %v3202 = vmul.f32 %v3201, %v3136
    %v3203 = vmul.f32 %v3201, %v3137
    %v3204 = vmul.f32 %v3201, %v3138
    %v3205 = vmul.f32 %v3201, %v3139
    %v3206 = vadd.f32 %v3106, %v3202
    %v3207 = vadd.f32 %v3107, %v3203
    %v3208 = vadd.f32 %v3108, %v3204
    %v3209 = vadd.f32 %v3109, %v3205
    %s3210 = sld [smem:[#allocation10 + $0x39e]]
    %v3211 = vstv %s3210
    %v3212 = vmul.f32 %v3211, %v3136
    %v3213 = vmul.f32 %v3211, %v3137
    %v3214 = vmul.f32 %v3211, %v3138
    %v3215 = vmul.f32 %v3211, %v3139
    %v3216 = vadd.f32 %v3116, %v3212
    %v3217 = vadd.f32 %v3117, %v3213
    %v3218 = vadd.f32 %v3118, %v3214
    %v3219 = vadd.f32 %v3119, %v3215
    %s3220 = sld [smem:[#allocation3 + $0x1f]]
    %v3221 = vstv %s3220
    %v3222 = vmul.f32 %v100, %v3221
    %v3223 = vmul.f32 %v101, %v3221
    %v3224 = vmul.f32 %v102, %v3221
    %v3225 = vmul.f32 %v103, %v3221
    %s3226 = sld [smem:[#allocation8 + $0x1f]]
    %v3227 = vstv %s3226
    %v3228 = vadd.f32 %v3222, %v3227
    %v3229 = vadd.f32 %v3223, %v3227
    %v3230 = vadd.f32 %v3224, %v3227
    %v3231 = vadd.f32 %v3225, %v3227
    %vm3232 = vcmp.gt.f32.partialorder %v3228, 0.0
    %vm3233 = vcmp.gt.f32.partialorder %v3229, 0.0
    %vm3234 = vcmp.gt.f32.partialorder %v3230, 0.0
    %vm3235 = vcmp.gt.f32.partialorder %v3231, 0.0
    %v3236 = vsel %vm3232, %v3228, -0.01
    %v3237 = vsel %vm3233, %v3229, -0.01
    %v3238 = vsel %vm3234, %v3230, -0.01
    %v3239 = vsel %vm3235, %v3231, -0.01
    %s3240 = sld [smem:[#allocation10 + $0x1f]]
    %v3241 = vstv %s3240
    %v3242 = vmul.f32 %v3241, %v3236
    %v3243 = vmul.f32 %v3241, %v3237
    %v3244 = vmul.f32 %v3241, %v3238
    %v3245 = vmul.f32 %v3241, %v3239
    %v3246 = vadd.f32 %v3146, %v3242
    %v3247 = vadd.f32 %v3147, %v3243
    %v3248 = vadd.f32 %v3148, %v3244
    %v3249 = vadd.f32 %v3149, %v3245
    %s3250 = sld [smem:[#allocation10 + $0x9f]]
    %v3251 = vstv %s3250
    %v3252 = vmul.f32 %v3251, %v3236
    %v3253 = vmul.f32 %v3251, %v3237
    %v3254 = vmul.f32 %v3251, %v3238
    %v3255 = vmul.f32 %v3251, %v3239
    %v3256 = vadd.f32 %v3156, %v3252
    %v3257 = vadd.f32 %v3157, %v3253
    %v3258 = vadd.f32 %v3158, %v3254
    %v3259 = vadd.f32 %v3159, %v3255
    %s3260 = sld [smem:[#allocation10 + $0x11f]]
    %v3261 = vstv %s3260
    %v3262 = vmul.f32 %v3261, %v3236
    %v3263 = vmul.f32 %v3261, %v3237
    %v3264 = vmul.f32 %v3261, %v3238
    %v3265 = vmul.f32 %v3261, %v3239
    %v3266 = vadd.f32 %v3166, %v3262
    %v3267 = vadd.f32 %v3167, %v3263
    %v3268 = vadd.f32 %v3168, %v3264
    %v3269 = vadd.f32 %v3169, %v3265
    %s3270 = sld [smem:[#allocation10 + $0x19f]]
    %v3271 = vstv %s3270
    %v3272 = vmul.f32 %v3271, %v3236
    %v3273 = vmul.f32 %v3271, %v3237
    %v3274 = vmul.f32 %v3271, %v3238
    %v3275 = vmul.f32 %v3271, %v3239
    %v3276 = vadd.f32 %v3176, %v3272
    %v3277 = vadd.f32 %v3177, %v3273
    %v3278 = vadd.f32 %v3178, %v3274
    %v3279 = vadd.f32 %v3179, %v3275
    %s3280 = sld [smem:[#allocation10 + $0x21f]]
    %v3281 = vstv %s3280
    %v3282 = vmul.f32 %v3281, %v3236
    %v3283 = vmul.f32 %v3281, %v3237
    %v3284 = vmul.f32 %v3281, %v3238
    %v3285 = vmul.f32 %v3281, %v3239
    %v3286 = vadd.f32 %v3186, %v3282
    %v3287 = vadd.f32 %v3187, %v3283
    %v3288 = vadd.f32 %v3188, %v3284
    %v3289 = vadd.f32 %v3189, %v3285
    %s3290 = sld [smem:[#allocation10 + $0x29f]]
    %v3291 = vstv %s3290
    %v3292 = vmul.f32 %v3291, %v3236
    %v3293 = vmul.f32 %v3291, %v3237
    %v3294 = vmul.f32 %v3291, %v3238
    %v3295 = vmul.f32 %v3291, %v3239
    %v3296 = vadd.f32 %v3196, %v3292
    %v3297 = vadd.f32 %v3197, %v3293
    %v3298 = vadd.f32 %v3198, %v3294
    %v3299 = vadd.f32 %v3199, %v3295
    %s3300 = sld [smem:[#allocation10 + $0x31f]]
    %v3301 = vstv %s3300
    %v3302 = vmul.f32 %v3301, %v3236
    %v3303 = vmul.f32 %v3301, %v3237
    %v3304 = vmul.f32 %v3301, %v3238
    %v3305 = vmul.f32 %v3301, %v3239
    %v3306 = vadd.f32 %v3206, %v3302
    %v3307 = vadd.f32 %v3207, %v3303
    %v3308 = vadd.f32 %v3208, %v3304
    %v3309 = vadd.f32 %v3209, %v3305
    %s3310 = sld [smem:[#allocation10 + $0x39f]]
    %v3311 = vstv %s3310
    %v3312 = vmul.f32 %v3311, %v3236
    %v3313 = vmul.f32 %v3311, %v3237
    %v3314 = vmul.f32 %v3311, %v3238
    %v3315 = vmul.f32 %v3311, %v3239
    %v3316 = vadd.f32 %v3216, %v3312
    %v3317 = vadd.f32 %v3217, %v3313
    %v3318 = vadd.f32 %v3218, %v3314
    %v3319 = vadd.f32 %v3219, %v3315
    %s3320 = sld [smem:[#allocation2]]
    %v3321 = vstv %s3320
    %s3322 = sld [smem:[#allocation12]]
    %vm3323 = vcmp.gt.f32.partialorder %v3246, 0.0
    %vm3324 = vcmp.gt.f32.partialorder %v3247, 0.0
    %vm3325 = vcmp.gt.f32.partialorder %v3248, 0.0
    %vm3326 = vcmp.gt.f32.partialorder %v3249, 0.0
    %v3327 = vsel %vm3323, %v3246, -0.01
    %v3328 = vsel %vm3324, %v3247, -0.01
    %v3329 = vsel %vm3325, %v3248, -0.01
    %v3330 = vsel %vm3326, %v3249, -0.01
    %v3331 = vstv %s3322
    %v3332 = vmul.f32 %v3331, %v3327
    %v3333 = vmul.f32 %v3331, %v3328
    %v3334 = vmul.f32 %v3331, %v3329
    %v3335 = vmul.f32 %v3331, %v3330
    %v3336 = vadd.f32 %v3321, %v3332
    %v3337 = vadd.f32 %v3321, %v3333
    %v3338 = vadd.f32 %v3321, %v3334
    %v3339 = vadd.f32 %v3321, %v3335
    %s3340 = sld [smem:[#allocation12 + $0x1]]
    %vm3341 = vcmp.gt.f32.partialorder %v3256, 0.0
    %vm3342 = vcmp.gt.f32.partialorder %v3257, 0.0
    %vm3343 = vcmp.gt.f32.partialorder %v3258, 0.0
    %vm3344 = vcmp.gt.f32.partialorder %v3259, 0.0
    %v3345 = vsel %vm3341, %v3256, -0.01
    %v3346 = vsel %vm3342, %v3257, -0.01
    %v3347 = vsel %vm3343, %v3258, -0.01
    %v3348 = vsel %vm3344, %v3259, -0.01
    %v3349 = vstv %s3340
    %v3350 = vmul.f32 %v3349, %v3345
    %v3351 = vmul.f32 %v3349, %v3346
    %v3352 = vmul.f32 %v3349, %v3347
    %v3353 = vmul.f32 %v3349, %v3348
    %v3354 = vadd.f32 %v3336, %v3350
    %v3355 = vadd.f32 %v3337, %v3351
    %v3356 = vadd.f32 %v3338, %v3352
    %v3357 = vadd.f32 %v3339, %v3353
    %s3358 = sld [smem:[#allocation12 + $0x2]]
    %vm3359 = vcmp.gt.f32.partialorder %v3266, 0.0
    %vm3360 = vcmp.gt.f32.partialorder %v3267, 0.0
    %vm3361 = vcmp.gt.f32.partialorder %v3268, 0.0
    %vm3362 = vcmp.gt.f32.partialorder %v3269, 0.0
    %v3363 = vsel %vm3359, %v3266, -0.01
    %v3364 = vsel %vm3360, %v3267, -0.01
    %v3365 = vsel %vm3361, %v3268, -0.01
    %v3366 = vsel %vm3362, %v3269, -0.01
    %v3367 = vstv %s3358
    %v3368 = vmul.f32 %v3367, %v3363
    %v3369 = vmul.f32 %v3367, %v3364
    %v3370 = vmul.f32 %v3367, %v3365
    %v3371 = vmul.f32 %v3367, %v3366
    %v3372 = vadd.f32 %v3354, %v3368
    %v3373 = vadd.f32 %v3355, %v3369
    %v3374 = vadd.f32 %v3356, %v3370
    %v3375 = vadd.f32 %v3357, %v3371
    %s3376 = sld [smem:[#allocation12 + $0x3]]
    %vm3377 = vcmp.gt.f32.partialorder %v3276, 0.0
    %vm3378 = vcmp.gt.f32.partialorder %v3277, 0.0
    %vm3379 = vcmp.gt.f32.partialorder %v3278, 0.0
    %vm3380 = vcmp.gt.f32.partialorder %v3279, 0.0
    %v3381 = vsel %vm3377, %v3276, -0.01
    %v3382 = vsel %vm3378, %v3277, -0.01
    %v3383 = vsel %vm3379, %v3278, -0.01
    %v3384 = vsel %vm3380, %v3279, -0.01
    %v3385 = vstv %s3376
    %v3386 = vmul.f32 %v3385, %v3381
    %v3387 = vmul.f32 %v3385, %v3382
    %v3388 = vmul.f32 %v3385, %v3383
    %v3389 = vmul.f32 %v3385, %v3384
    %v3390 = vadd.f32 %v3372, %v3386
    %v3391 = vadd.f32 %v3373, %v3387
    %v3392 = vadd.f32 %v3374, %v3388
    %v3393 = vadd.f32 %v3375, %v3389
    %s3394 = sld [smem:[#allocation12 + $0x4]]
    %vm3395 = vcmp.gt.f32.partialorder %v3286, 0.0
    %vm3396 = vcmp.gt.f32.partialorder %v3287, 0.0
    %vm3397 = vcmp.gt.f32.partialorder %v3288, 0.0
    %vm3398 = vcmp.gt.f32.partialorder %v3289, 0.0
    %v3399 = vsel %vm3395, %v3286, -0.01
    %v3400 = vsel %vm3396, %v3287, -0.01
    %v3401 = vsel %vm3397, %v3288, -0.01
    %v3402 = vsel %vm3398, %v3289, -0.01
    %v3403 = vstv %s3394
    %v3404 = vmul.f32 %v3403, %v3399
    %v3405 = vmul.f32 %v3403, %v3400
    %v3406 = vmul.f32 %v3403, %v3401
    %v3407 = vmul.f32 %v3403, %v3402
    %v3408 = vadd.f32 %v3390, %v3404
    %v3409 = vadd.f32 %v3391, %v3405
    %v3410 = vadd.f32 %v3392, %v3406
    %v3411 = vadd.f32 %v3393, %v3407
    %s3412 = sld [smem:[#allocation12 + $0x5]]
    %vm3413 = vcmp.gt.f32.partialorder %v3296, 0.0
    %vm3414 = vcmp.gt.f32.partialorder %v3297, 0.0
    %vm3415 = vcmp.gt.f32.partialorder %v3298, 0.0
    %vm3416 = vcmp.gt.f32.partialorder %v3299, 0.0
    %v3417 = vsel %vm3413, %v3296, -0.01
    %v3418 = vsel %vm3414, %v3297, -0.01
    %v3419 = vsel %vm3415, %v3298, -0.01
    %v3420 = vsel %vm3416, %v3299, -0.01
    %v3421 = vstv %s3412
    %v3422 = vmul.f32 %v3421, %v3417
    %v3423 = vmul.f32 %v3421, %v3418
    %v3424 = vmul.f32 %v3421, %v3419
    %v3425 = vmul.f32 %v3421, %v3420
    %v3426 = vadd.f32 %v3408, %v3422
    %v3427 = vadd.f32 %v3409, %v3423
    %v3428 = vadd.f32 %v3410, %v3424
    %v3429 = vadd.f32 %v3411, %v3425
    %s3430 = sld [smem:[#allocation12 + $0x6]]
    %vm3431 = vcmp.gt.f32.partialorder %v3306, 0.0
    %vm3432 = vcmp.gt.f32.partialorder %v3307, 0.0
    %vm3433 = vcmp.gt.f32.partialorder %v3308, 0.0
    %vm3434 = vcmp.gt.f32.partialorder %v3309, 0.0
    %v3435 = vsel %vm3431, %v3306, -0.01
    %v3436 = vsel %vm3432, %v3307, -0.01
    %v3437 = vsel %vm3433, %v3308, -0.01
    %v3438 = vsel %vm3434, %v3309, -0.01
    %v3439 = vstv %s3430
    %v3440 = vmul.f32 %v3439, %v3435
    %v3441 = vmul.f32 %v3439, %v3436
    %v3442 = vmul.f32 %v3439, %v3437
    %v3443 = vmul.f32 %v3439, %v3438
    %v3444 = vadd.f32 %v3426, %v3440
    %v3445 = vadd.f32 %v3427, %v3441
    %v3446 = vadd.f32 %v3428, %v3442
    %v3447 = vadd.f32 %v3429, %v3443
    %s3448 = sld [smem:[#allocation12 + $0x7]]
    %vm3449 = vcmp.gt.f32.partialorder %v3316, 0.0
    %vm3450 = vcmp.gt.f32.partialorder %v3317, 0.0
    %vm3451 = vcmp.gt.f32.partialorder %v3318, 0.0
    %vm3452 = vcmp.gt.f32.partialorder %v3319, 0.0
    %v3453 = vsel %vm3449, %v3316, -0.01
    %v3454 = vsel %vm3450, %v3317, -0.01
    %v3455 = vsel %vm3451, %v3318, -0.01
    %v3456 = vsel %vm3452, %v3319, -0.01
    %v3457 = vstv %s3448
    %v3458 = vmul.f32 %v3457, %v3453
    %v3459 = vmul.f32 %v3457, %v3454
    %v3460 = vmul.f32 %v3457, %v3455
    %v3461 = vmul.f32 %v3457, %v3456
    %v3462 = vadd.f32 %v3444, %v3458
    %v3463 = vadd.f32 %v3445, %v3459
    %v3464 = vadd.f32 %v3446, %v3460
    %v3465 = vadd.f32 %v3447, %v3461
    %3466 = vst [vmem:[#allocation15] sm:$0xff] %v3462
    %3467 = vst [vmem:[#allocation15 + $0x8] sm:$0xff] %v3463
    %3468 = vst [vmem:[#allocation15 + $0x10] sm:$0xff] %v3464
    %3469 = vst [vmem:[#allocation15 + $0x18] sm:$0xff] %v3465
    // Predicated region
    $region54: #{tpu_custom_call.1} parent=1 // pred_check
      _
    $region55: #{tpu_custom_call.1} parent=1 // pred_check_branch
      %3471 = sbr.rel (0) target = $region57
    $region56: #{tpu_custom_call.1} parent=1 // pred_region
      %s3473 = ssub.s32 512, 512
      %3474 = vsyncadd [#allocation5], %s3473
      %s3475 = sshll.u32 [#allocation15], 4
      %s3476 = int_to_ptr.vmem [resolvable:$true] %s3475
      %3481 = dma.vmem_to_hbm [thread:$0]  %s3476, 512, %s7, [#allocation5], 128, 128, 8
    $region57: #{tpu_custom_call.1} parent=1 // pred_fallthru
      _
    // Predicated region
    $region58: #{tpu_custom_call.1} parent=1 // pred_check
      _
    $region59: #{tpu_custom_call.1} parent=1 // pred_check_branch
      %3483 = sbr.rel (0) target = $region61
    $region60: #{tpu_custom_call.1} parent=1 // pred_region
      %3484 = dma.done [#allocation5], 512
    $region61: #{tpu_custom_call.1} parent=1 // pred_fallthru
      _
    %3485 = vsyncpa [#allocation4], 1
    %3486 = vsyncpa [#allocation5], 1
    %3487 = vsyncpa [#allocation6], 1
    %3488 = vsyncpa [#allocation7], 1
    %3489 = vsyncpa [#allocation9], 1
    %3490 = vsyncpa [#allocation13], 1

</llo_original>
